<compile_context>
chip_gen: v6e
topology: v6e:2x2x1
jax: 0.10.0
libtpu: 0.0.40
codegen_flags: <defaults>
</compile_context>

<pallas_src>
import functools

import jax
import jax.numpy as jnp
from jax.experimental import pallas as pl
from jax.experimental.pallas import tpu as pltpu

SELU_ALPHA = 1.6732632423543772
SELU_SCALE = 1.0507009873554805
LN_EPS = 1e-5

# Operand dtype for projection matmuls (f32 accumulation always kept via
# preferred_element_type).  Set to jnp.float32 for bit-exact parity.
MATMUL_DTYPE = jnp.bfloat16


def _round_up(x, m):
    return (x + m - 1) // m * m


def _row_tile(mp):
    """Row tile dividing mp (a multiple of 8), preferring >=2 grid steps
    (software pipelining + both v7x TensorCores)."""
    for t in (512, 256, 128, 64, 32, 16, 8):
        if mp % t == 0 and mp // t >= 2:
            return t
    return mp


# --------------------------------------------------------------------------
# LL linear + BatchNorm2d(1) (eval) + SELU, fused
# --------------------------------------------------------------------------
def _ll_bn_selu_kernel(x_ref, w_ref, b_ref, o_ref, *, bn_scale, bn_shift):
    x = x_ref[...].astype(MATMUL_DTYPE)
    y = jnp.dot(x, w_ref[...], preferred_element_type=jnp.float32) + b_ref[...]
    y = y * bn_scale + bn_shift                      # BatchNorm2d(1), eval mode
    y = SELU_SCALE * jnp.where(
        y > 0, y, SELU_ALPHA * (jnp.exp(jnp.minimum(y, 0.0)) - 1.0))
    o_ref[...] = y.astype(o_ref.dtype)


def ll_bn_selu(x, w, b, bn_scale, bn_shift):
    M, K = x.shape
    N = w.shape[1]
    Mp = _round_up(M, 8)
    if Mp != M:
        x = jnp.pad(x, ((0, Mp - M), (0, 0)))
    tm = _row_tile(Mp)
    # NOTE: bn_scale/bn_shift baked as Python floats -- valid only because
    # BatchNorm2d(1) has a single scalar channel and we run eval mode.
    out = pl.pallas_call(
        functools.partial(_ll_bn_selu_kernel,
                          bn_scale=float(bn_scale), bn_shift=float(bn_shift)),
        out_shape=jax.ShapeDtypeStruct((Mp, N), jnp.float32),
        grid=(Mp // tm,),
        in_specs=[pl.BlockSpec((tm, K), lambda i: (i, 0)),
                  pl.BlockSpec((K, N), lambda i: (0, 0)),
                  pl.BlockSpec((1, N), lambda i: (0, 0))],
        out_specs=pl.BlockSpec((tm, N), lambda i: (i, 0)),
        compiler_params=pltpu.CompilerParams(dimension_semantics=("parallel",)),
    )(x, w, b.reshape(1, N))
    return out[:M]


# --------------------------------------------------------------------------
# Whole conformer block in one kernel (gridded over batch)
# --------------------------------------------------------------------------
def _conformer_block_kernel(
    x_ref,
    ff1_g_ref, ff1_b_ref, ff1_w1_ref, ff1_b1_ref, ff1_w2_ref, ff1_b2_ref,
    attn_g_ref, attn_b_ref, wqkv_ref, rel_ref, wo_ref, bo_ref,
    conv_g_ref, conv_b_ref, pw1_w_ref, pw1_b_ref, dw_w_ref, dw_b_ref,
    bn_s_ref, bn_t_ref, pw2_w_ref, pw2_b_ref,
    ff2_g_ref, ff2_b_ref, ff2_w1_ref, ff2_b1_ref, ff2_w2_ref, ff2_b2_ref,
    post_g_ref, post_b_ref,
    o_ref,
    dconv_ref,
    *, heads, dim_head, n_valid, kernel_size, pad_l, write_off):
    Np, D = x_ref.shape
    scale = float(dim_head) ** -0.5

    def ln(v, g_ref, b_ref):
        mu = jnp.mean(v, axis=-1, keepdims=True)
        var = jnp.mean(jnp.square(v - mu), axis=-1, keepdims=True)
        return (v - mu) * jax.lax.rsqrt(var + LN_EPS) * g_ref[...] + b_ref[...]

    def proj(v, w_ref, b_ref=None):
        y = jnp.dot(v.astype(MATMUL_DTYPE), w_ref[...],
                    preferred_element_type=jnp.float32)
        return y if b_ref is None else y + b_ref[...]

    x = x_ref[...].astype(jnp.float32)                       # (Np, D)

    # ---- FF1 (half-step, pre-norm) ----
    h = ln(x, ff1_g_ref, ff1_b_ref)
    h = proj(h, ff1_w1_ref, ff1_b1_ref)
    h = h * jax.nn.sigmoid(h)                                # SiLU, f32
    h = proj(h, ff1_w2_ref, ff1_b2_ref)
    x = x + 0.5 * h

    # ---- MHSA with Shaw relative positions (pre-norm) ----
    h = ln(x, attn_g_ref, attn_b_ref)
    qkv = proj(h, wqkv_ref)                                  # (Np, 3*H*dh), f32
    hd = heads * dim_head
    rel = rel_ref[...]                                       # (dh, Np, Np) f32
    col = jax.lax.broadcasted_iota(jnp.int32, (Np, Np), 1)
    key_ok = col < n_valid                                   # mask padded keys
    head_outs = []
    for hh in range(heads):                                  # statically unrolled
        lo = hh * dim_head
        q = qkv[:, lo:lo + dim_head]
        k = qkv[:, hd + lo:hd + lo + dim_head]
        v = qkv[:, 2 * hd + lo:2 * hd + lo + dim_head]
        dots = jax.lax.dot_general(q, k, (((1,), (1,)), ((), ())),
                                   preferred_element_type=jnp.float32)  # (Np, Np)
        pos = jnp.zeros_like(dots)
        for d in range(dim_head):                            # Shaw bias, in-kernel
            pos = pos + q[:, d:d + 1] * rel[d]
        logits = (dots + pos) * scale
        logits = jnp.where(key_ok, logits, -1e30)
        m = jnp.max(logits, axis=-1, keepdims=True)
        p = jnp.exp(logits - m)
        attn = p / jnp.sum(p, axis=-1, keepdims=True)        # exact softmax
        head_outs.append(jnp.dot(attn, v, preferred_element_type=jnp.float32))
    h = jnp.concatenate(head_outs, axis=-1)                  # (Np, H*dh)
    h = proj(h, wo_ref, bo_ref)
    x = x + h

    # ---- Convolution module ----
    h = ln(x, conv_g_ref, conv_b_ref)
    pw1 = proj(h, pw1_w_ref, pw1_b_ref)                      # (Np, 2C) single matmul
    C = pw1.shape[-1] // 2
    glu = pw1[:, :C] * jax.nn.sigmoid(pw1[:, C:])            # GLU
    row = jax.lax.broadcasted_iota(jnp.int32, (Np, 1), 0)
    glu = jnp.where(row < n_valid, glu, 0.0)                 # true zero pad in time
    # In-kernel zero-padded buffer for the 'same' depthwise conv (aligned writes,
    # unaligned slicing only on the loaded value -- no XLA pad round trip).
    dconv_ref[...] = jnp.zeros_like(dconv_ref)
    dconv_ref[write_off:write_off + Np, :] = glu
    dpad = dconv_ref[...]                                    # (Ls, C)
    dw = dw_w_ref[...].astype(jnp.float32)                   # (K, C)
    base = write_off - pad_l
    acc = jnp.zeros((Np, C), jnp.float32)
    for k in range(kernel_size):                             # depthwise conv
        acc = acc + dpad[base + k:base + k + Np, :] * dw[k:k + 1, :]
    acc = acc + dw_b_ref[...]
    acc = acc * bn_s_ref[...] + bn_t_ref[...]                # BatchNorm1d, eval
    acc = acc * jax.nn.sigmoid(acc)                          # Swish
    h = proj(acc, pw2_w_ref, pw2_b_ref)
    x = x + h

    # ---- FF2 (half-step, pre-norm) + block post-LayerNorm ----
    h = ln(x, ff2_g_ref, ff2_b_ref)
    h = proj(h, ff2_w1_ref, ff2_b1_ref)
    h = h * jax.nn.sigmoid(h)
    h = proj(h, ff2_w2_ref, ff2_b2_ref)
    x = x + 0.5 * h
    x = ln(x, post_g_ref, post_b_ref)

    o_ref[...] = x.astype(o_ref.dtype)


def conformer_block(x3, p, rel, *, heads, dim_head, kernel_size, n_valid):
    B, Np, D = x3.shape
    pad_l = kernel_size // 2
    pad_r = kernel_size // 2 - (kernel_size + 1) % 2          # calc_same_padding
    write_off = _round_up(max(pad_l, 1), 8)
    C = p["dw_b"].shape[0]
    Ls = _round_up(write_off + Np + pad_r, 8)

    weights = [
        p["ff1_ln_g"].reshape(1, D), p["ff1_ln_b"].reshape(1, D),
        p["ff1_w1"], p["ff1_b1"].reshape(1, -1), p["ff1_w2"], p["ff1_b2"].reshape(1, D),
        p["attn_ln_g"].reshape(1, D), p["attn_ln_b"].reshape(1, D),
        p["wqkv"], rel, p["wo"], p["bo"].reshape(1, D),
        p["conv_ln_g"].reshape(1, D), p["conv_ln_b"].reshape(1, D),
        p["pw1_w"], p["pw1_b"].reshape(1, -1),
        p["dw_w"], p["dw_b"].reshape(1, C),
        p["bn1_scale"].reshape(1, C), p["bn1_shift"].reshape(1, C),
        p["pw2_w"], p["pw2_b"].reshape(1, D),
        p["ff2_ln_g"].reshape(1, D), p["ff2_ln_b"].reshape(1, D),
        p["ff2_w1"], p["ff2_b1"].reshape(1, -1), p["ff2_w2"], p["ff2_b2"].reshape(1, D),
        p["post_ln_g"].reshape(1, D), p["post_ln_b"].reshape(1, D),
    ]

    def bcast_spec(a):
        if a.ndim == 2:
            return pl.BlockSpec(a.shape, lambda b: (0, 0))
        return pl.BlockSpec(a.shape, lambda b: (0, 0, 0))

    in_specs = ([pl.BlockSpec((None, Np, D), lambda b: (b, 0, 0))]
                + [bcast_spec(a) for a in weights])

    return pl.pallas_call(
        functools.partial(_conformer_block_kernel, heads=heads, dim_head=dim_head,
                          n_valid=n_valid, kernel_size=kernel_size,
                          pad_l=pad_l, write_off=write_off),
        out_shape=jax.ShapeDtypeStruct((B, Np, D), jnp.float32),
        grid=(B,),
        in_specs=in_specs,
        out_specs=pl.BlockSpec((None, Np, D), lambda b: (b, 0, 0)),
        scratch_shapes=[pltpu.VMEM((Ls, C), jnp.float32)],
        compiler_params=pltpu.CompilerParams(dimension_semantics=("parallel",)),
    )(x3, *weights)


# --------------------------------------------------------------------------
# Model glue (class-token concat, rel-pos gather, fc5 stay in XLA)
# --------------------------------------------------------------------------
def my_model_forward(ssl_feats, params, cfg):
    """ssl_feats: (B, T, 1024) output of the (external) XLSR front-end."""
    B, T, F = ssl_feats.shape
    D = cfg["emb"]
    H, dh = cfg["heads"], cfg["dim_head"]
    K = cfg["kernel_size"]
    P = cfg["max_pos"]

    # self.LL + BatchNorm2d(1) (eval) + SELU fused in one kernel
    x = ll_bn_selu(ssl_feats.reshape(B * T, F), params["ll_w"], params["ll_b"],
                   params["bn_scale"], params["bn_shift"])
    x = x.reshape(B, T, D)

    # prepend class token (torch.vstack per batch element), pad time to multiple of 8
    cls = jnp.broadcast_to(params["class_token"].astype(jnp.float32), (B, 1, D))
    x = jnp.concatenate([cls, x], axis=1)
    N = T + 1
    Np = _round_up(N, 8)
    if Np != N:
        x = jnp.pad(x, ((0, 0), (0, Np - N), (0, 0)))

    # Shaw relative-position distances are identical for all blocks: hoisted.
    seq = jnp.arange(Np)
    dist = jnp.clip(seq[:, None] - seq[None, :], -P, P) + P   # (Np, Np) int

    for blk in params["blocks"]:
        # weight-only gather (no per-batch/head activation tensor in HBM)
        rel = jnp.transpose(blk["rel_pos_emb"][dist], (2, 0, 1))   # (dh, Np, Np)
        x = conformer_block(x, blk, rel, heads=H, dim_head=dh,
                            kernel_size=K, n_valid=N)

    emb = x[:, 0, :]
    # fc5: (B, D) x (D, 2) -- left to XLA, a dedicated kernel is pure overhead.
    out = emb @ params["fc5_w"] + params["fc5_b"]
    return out, emb


# --------------------------------------------------------------------------
# Deterministic parameter init (shapes from the module __init__)
# --------------------------------------------------------------------------
def init_params(key, cfg):
    D = cfg["emb"]
    H, dh = cfg["heads"], cfg["dim_head"]
    ffd = cfg["ff_mult"] * D
    inner = cfg["inner"]
    K = cfg["kernel_size"]
    kit = iter(jax.random.split(key, 64))

    def w(shape, scale=0.02):      # projection-matmul weights (MATMUL_DTYPE)
        return (jax.random.normal(next(kit), shape, jnp.float32) * scale
                ).astype(MATMUL_DTYPE)

    def wf(shape, scale=0.02):     # f32 (non-matmul) weights
        return jax.random.normal(next(kit), shape, jnp.float32) * scale

    zeros = lambda s: jnp.zeros(s, jnp.float32)
    ones = lambda s: jnp.ones(s, jnp.float32)

    block = dict(
        ff1_ln_g=ones((D,)), ff1_ln_b=zeros((D,)),
        ff1_w1=w((D, ffd)), ff1_b1=zeros((ffd,)),
        ff1_w2=w((ffd, D)), ff1_b2=zeros((D,)),
        attn_ln_g=ones((D,)), attn_ln_b=zeros((D,)),
        wqkv=w((D, 3 * H * dh)),                   # fused to_q | to_k | to_v (bias=False)
        wo=w((H * dh, D)), bo=zeros((D,)),
        rel_pos_emb=wf((2 * cfg["max_pos"] + 1, dh)),
        conv_ln_g=ones((D,)), conv_ln_b=zeros((D,)),
        pw1_w=w((D, 2 * inner)), pw1_b=zeros((2 * inner,)),   # [value | gate] fused
        dw_w=wf((K, inner)), dw_b=zeros((inner,)),
        bn1_scale=ones((inner,)) / jnp.sqrt(1.0 + 1e-5),
        bn1_shift=zeros((inner,)),
        pw2_w=w((inner, D)), pw2_b=zeros((D,)),
        ff2_ln_g=ones((D,)), ff2_ln_b=zeros((D,)),
        ff2_w1=w((D, ffd)), ff2_b1=zeros((ffd,)),
        ff2_w2=w((ffd, D)), ff2_b2=zeros((D,)),
        post_ln_g=ones((D,)), post_ln_b=zeros((D,)),
    )
    params = dict(
        ll_w=w((cfg["ssl_dim"], D)), ll_b=zeros((D,)),
        class_token=jax.random.uniform(next(kit), (1, D), jnp.float32),
        # _get_clones deepcopies one block -> all encoders share identical init.
        # NOTE: loading distinct trained per-block weights must replace this list.
        blocks=[block] * cfg["n_encoders"],
        fc5_w=wf((D, 2)), fc5_b=zeros((2,)),
        # BatchNorm2d(1) eval-mode constants (gamma=1, beta=0, rm=0, rv=1)
        bn_scale=1.0 / (1.0 + 1e-5) ** 0.5,
        bn_shift=0.0,
    )
    return params


# --------------------------------------------------------------------------
if __name__ == "__main__":
    cfg = dict(emb=32, heads=4, dim_head=8, ff_mult=4, inner=64,
               kernel_size=7, n_encoders=2, ssl_dim=1024, max_pos=512)

    key = jax.random.PRNGKey(0)
    kp, kx = jax.random.split(key)
    params = init_params(kp, cfg)

    B, T = 2, 8
    ssl_feats = jax.random.normal(kx, (B, T, cfg["ssl_dim"]), jnp.float32)

    fwd = jax.jit(lambda feats: my_model_forward(feats, params, cfg))
    out, emb = fwd(ssl_feats)
    out = jax.block_until_ready(out)
    emb = jax.block_until_ready(emb)

    assert out.shape == (B, 2), out.shape
    assert emb.shape == (B, cfg["emb"]), emb.shape
    assert jnp.all(jnp.isfinite(out)) and jnp.all(jnp.isfinite(emb))
    print("KERNEL_OK")
</pallas_src>

<mosaic_0001>
module attributes {stable_mosaic.version = 11 : i64} {
  func.func @_ll_bn_selu_kernel(%arg0: i32, %arg1: memref<8x1024xf32, #tpu.memory_space<vmem>>, %arg2: memref<1024x32xbf16, #tpu.memory_space<vmem>>, %arg3: memref<1x32xf32, #tpu.memory_space<vmem>>, %arg4: memref<8x32xf32, #tpu.memory_space<vmem>>) attributes {dimension_semantics = [#tpu.dimension_semantics<parallel>], iteration_bounds = array<i64: 2>, scalar_prefetch = 0 : i64, scratch_operands = 0 : i64, tpu.core_type = #tpu.core_type<tc>, window_params = [{transform_indices = @transform_0, window_bounds = array<i64: 8, 1024>}, {pipeline_mode = #tpu.pipeline_mode<synchronous>, transform_indices = @transform_1, window_bounds = array<i64: 1024, 32>}, {pipeline_mode = #tpu.pipeline_mode<synchronous>, transform_indices = @transform_2, window_bounds = array<i64: 1, 32>}, {transform_indices = @transform_3, window_bounds = array<i64: 8, 32>}]} {
    %c0 = arith.constant 0 : index
    %c0_0 = arith.constant 0 : index
    %0 = vector.load %arg1[%c0, %c0_0] : memref<8x1024xf32, #tpu.memory_space<vmem>>, vector<8x1024xf32>
    %1 = arith.truncf %0 : vector<8x1024xf32> to vector<8x1024xbf16>
    %c0_1 = arith.constant 0 : index
    %c0_2 = arith.constant 0 : index
    %2 = vector.load %arg2[%c0_1, %c0_2] : memref<1024x32xbf16, #tpu.memory_space<vmem>>, vector<1024x32xbf16>
    %cst = arith.constant dense<0.000000e+00> : vector<8x32xf32>
    %3 = tpu.matmul %1, %2, %cst {dimension_numbers = #tpu.dot_dimension_numbers<[1], [0], [0], [1], [0, 0, 1, 1], [], []>} : vector<8x1024xbf16>, vector<1024x32xbf16>, vector<8x32xf32> -> vector<8x32xf32>
    %c0_3 = arith.constant 0 : index
    %c0_4 = arith.constant 0 : index
    %4 = vector.load %arg3[%c0_3, %c0_4] : memref<1x32xf32, #tpu.memory_space<vmem>>, vector<1x32xf32>
    %5 = vector.broadcast %4 : vector<1x32xf32> to vector<8x32xf32>
    %6 = arith.addf %3, %5 : vector<8x32xf32>
    %cst_5 = arith.constant 0.999994993 : f32
    %7 = vector.broadcast %cst_5 : f32 to vector<8x32xf32>
    %8 = arith.mulf %6, %7 : vector<8x32xf32>
    %cst_6 = arith.constant 0.000000e+00 : f32
    %9 = vector.broadcast %cst_6 : f32 to vector<8x32xf32>
    %10 = arith.addf %8, %9 : vector<8x32xf32>
    %cst_7 = arith.constant 0.000000e+00 : f32
    %11 = vector.broadcast %cst_7 : f32 to vector<8x32xf32>
    %12 = arith.cmpf ogt, %10, %11 : vector<8x32xf32>
    %cst_8 = arith.constant 0.000000e+00 : f32
    %13 = vector.broadcast %cst_8 : f32 to vector<8x32xf32>
    %14 = arith.minimumf %10, %13 : vector<8x32xf32>
    %15 = math.exp %14 : vector<8x32xf32>
    %cst_9 = arith.constant 1.000000e+00 : f32
    %16 = vector.broadcast %cst_9 : f32 to vector<8x32xf32>
    %17 = arith.subf %15, %16 : vector<8x32xf32>
    %cst_10 = arith.constant 1.67326319 : f32
    %18 = vector.broadcast %cst_10 : f32 to vector<8x32xf32>
    %19 = arith.mulf %18, %17 : vector<8x32xf32>
    %20 = arith.select %12, %10, %19 : vector<8x32xi1>, vector<8x32xf32>
    %cst_11 = arith.constant 1.05070102 : f32
    %21 = vector.broadcast %cst_11 : f32 to vector<8x32xf32>
    %22 = arith.mulf %21, %20 : vector<8x32xf32>
    %c0_12 = arith.constant 0 : index
    %c0_13 = arith.constant 0 : index
    %23 = vector.load %arg4[%c0_12, %c0_13] : memref<8x32xf32, #tpu.memory_space<vmem>>, vector<8x32xf32>
    tpu.vector_store %arg4[%c0_12, %c0_13], %22 {strides = array<i32>} : memref<8x32xf32, #tpu.memory_space<vmem>>, vector<8x32xf32>,
    return
  }
  func.func @transform_0(%arg0: i32) -> (i32, i32) {
    %c0_i32 = arith.constant 0 : i32
    %c0_i32_0 = arith.constant 0 : i32
    return %arg0, %c0_i32 : i32, i32
  }
  func.func @transform_1(%arg0: i32) -> (i32, i32) {
    %c0_i32 = arith.constant 0 : i32
    %c0_i32_0 = arith.constant 0 : i32
    %c0_i32_1 = arith.constant 0 : i32
    return %c0_i32, %c0_i32_0 : i32, i32
  }
  func.func @transform_2(%arg0: i32) -> (i32, i32) {
    %c0_i32 = arith.constant 0 : i32
    %c0_i32_0 = arith.constant 0 : i32
    %c0_i32_1 = arith.constant 0 : i32
    return %c0_i32, %c0_i32_0 : i32, i32
  }
  func.func @transform_3(%arg0: i32) -> (i32, i32) {
    %c0_i32 = arith.constant 0 : i32
    %c0_i32_0 = arith.constant 0 : i32
    return %arg0, %c0_i32 : i32, i32
  }
}

module attributes {stable_mosaic.version = 11 : i64} {
  func.func @_conformer_block_kernel(%arg0: i32, %arg1: memref<1x16x32xf32, #tpu.memory_space<vmem>>, %arg2: memref<1x32xf32, #tpu.memory_space<vmem>>, %arg3: memref<1x32xf32, #tpu.memory_space<vmem>>, %arg4: memref<32x128xbf16, #tpu.memory_space<vmem>>, %arg5: memref<1x128xf32, #tpu.memory_space<vmem>>, %arg6: memref<128x32xbf16, #tpu.memory_space<vmem>>, %arg7: memref<1x32xf32, #tpu.memory_space<vmem>>, %arg8: memref<1x32xf32, #tpu.memory_space<vmem>>, %arg9: memref<1x32xf32, #tpu.memory_space<vmem>>, %arg10: memref<32x96xbf16, #tpu.memory_space<vmem>>, %arg11: memref<8x16x16xf32, #tpu.memory_space<vmem>>, %arg12: memref<32x32xbf16, #tpu.memory_space<vmem>>, %arg13: memref<1x32xf32, #tpu.memory_space<vmem>>, %arg14: memref<1x32xf32, #tpu.memory_space<vmem>>, %arg15: memref<1x32xf32, #tpu.memory_space<vmem>>, %arg16: memref<32x128xbf16, #tpu.memory_space<vmem>>, %arg17: memref<1x128xf32, #tpu.memory_space<vmem>>, %arg18: memref<7x64xf32, #tpu.memory_space<vmem>>, %arg19: memref<1x64xf32, #tpu.memory_space<vmem>>, %arg20: memref<1x64xf32, #tpu.memory_space<vmem>>, %arg21: memref<1x64xf32, #tpu.memory_space<vmem>>, %arg22: memref<64x32xbf16, #tpu.memory_space<vmem>>, %arg23: memref<1x32xf32, #tpu.memory_space<vmem>>, %arg24: memref<1x32xf32, #tpu.memory_space<vmem>>, %arg25: memref<1x32xf32, #tpu.memory_space<vmem>>, %arg26: memref<32x128xbf16, #tpu.memory_space<vmem>>, %arg27: memref<1x128xf32, #tpu.memory_space<vmem>>, %arg28: memref<128x32xbf16, #tpu.memory_space<vmem>>, %arg29: memref<1x32xf32, #tpu.memory_space<vmem>>, %arg30: memref<1x32xf32, #tpu.memory_space<vmem>>, %arg31: memref<1x32xf32, #tpu.memory_space<vmem>>, %arg32: memref<1x16x32xf32, #tpu.memory_space<vmem>>, %arg33: memref<32x64xf32, #tpu.memory_space<vmem>>) attributes {dimension_semantics = [#tpu.dimension_semantics<parallel>], iteration_bounds = array<i64: 2>, scalar_prefetch = 0 : i64, scratch_operands = 1 : i64, tpu.core_type = #tpu.core_type<tc>, window_params = [{transform_indices = @transform_0, window_bounds = array<i64: 1, 16, 32>}, {pipeline_mode = #tpu.pipeline_mode<synchronous>, transform_indices = @transform_1, window_bounds = array<i64: 1, 32>}, {pipeline_mode = #tpu.pipeline_mode<synchronous>, transform_indices = @transform_2, window_bounds = array<i64: 1, 32>}, {pipeline_mode = #tpu.pipeline_mode<synchronous>, transform_indices = @transform_3, window_bounds = array<i64: 32, 128>}, {pipeline_mode = #tpu.pipeline_mode<synchronous>, transform_indices = @transform_4, window_bounds = array<i64: 1, 128>}, {pipeline_mode = #tpu.pipeline_mode<synchronous>, transform_indices = @transform_5, window_bounds = array<i64: 128, 32>}, {pipeline_mode = #tpu.pipeline_mode<synchronous>, transform_indices = @transform_6, window_bounds = array<i64: 1, 32>}, {pipeline_mode = #tpu.pipeline_mode<synchronous>, transform_indices = @transform_7, window_bounds = array<i64: 1, 32>}, {pipeline_mode = #tpu.pipeline_mode<synchronous>, transform_indices = @transform_8, window_bounds = array<i64: 1, 32>}, {pipeline_mode = #tpu.pipeline_mode<synchronous>, transform_indices = @transform_9, window_bounds = array<i64: 32, 96>}, {pipeline_mode = #tpu.pipeline_mode<synchronous>, transform_indices = @transform_10, window_bounds = array<i64: 8, 16, 16>}, {pipeline_mode = #tpu.pipeline_mode<synchronous>, transform_indices = @transform_11, window_bounds = array<i64: 32, 32>}, {pipeline_mode = #tpu.pipeline_mode<synchronous>, transform_indices = @transform_12, window_bounds = array<i64: 1, 32>}, {pipeline_mode = #tpu.pipeline_mode<synchronous>, transform_indices = @transform_13, window_bounds = array<i64: 1, 32>}, {pipeline_mode = #tpu.pipeline_mode<synchronous>, transform_indices = @transform_14, window_bounds = array<i64: 1, 32>}, {pipeline_mode = #tpu.pipeline_mode<synchronous>, transform_indices = @transform_15, window_bounds = array<i64: 32, 128>}, {pipeline_mode = #tpu.pipeline_mode<synchronous>, transform_indices = @transform_16, window_bounds = array<i64: 1, 128>}, {pipeline_mode = #tpu.pipeline_mode<synchronous>, transform_indices = @transform_17, window_bounds = array<i64: 7, 64>}, {pipeline_mode = #tpu.pipeline_mode<synchronous>, transform_indices = @transform_18, window_bounds = array<i64: 1, 64>}, {pipeline_mode = #tpu.pipeline_mode<synchronous>, transform_indices = @transform_19, window_bounds = array<i64: 1, 64>}, {pipeline_mode = #tpu.pipeline_mode<synchronous>, transform_indices = @transform_20, window_bounds = array<i64: 1, 64>}, {pipeline_mode = #tpu.pipeline_mode<synchronous>, transform_indices = @transform_21, window_bounds = array<i64: 64, 32>}, {pipeline_mode = #tpu.pipeline_mode<synchronous>, transform_indices = @transform_22, window_bounds = array<i64: 1, 32>}, {pipeline_mode = #tpu.pipeline_mode<synchronous>, transform_indices = @transform_23, window_bounds = array<i64: 1, 32>}, {pipeline_mode = #tpu.pipeline_mode<synchronous>, transform_indices = @transform_24, window_bounds = array<i64: 1, 32>}, {pipeline_mode = #tpu.pipeline_mode<synchronous>, transform_indices = @transform_25, window_bounds = array<i64: 32, 128>}, {pipeline_mode = #tpu.pipeline_mode<synchronous>, transform_indices = @transform_26, window_bounds = array<i64: 1, 128>}, {pipeline_mode = #tpu.pipeline_mode<synchronous>, transform_indices = @transform_27, window_bounds = array<i64: 128, 32>}, {pipeline_mode = #tpu.pipeline_mode<synchronous>, transform_indices = @transform_28, window_bounds = array<i64: 1, 32>}, {pipeline_mode = #tpu.pipeline_mode<synchronous>, transform_indices = @transform_29, window_bounds = array<i64: 1, 32>}, {pipeline_mode = #tpu.pipeline_mode<synchronous>, transform_indices = @transform_30, window_bounds = array<i64: 1, 32>}, {transform_indices = @transform_31, window_bounds = array<i64: 1, 16, 32>}]} {
    %c0 = arith.constant 0 : index
    %c0_0 = arith.constant 0 : index
    %c0_1 = arith.constant 0 : index
    %0 = vector.load %arg1[%c0, %c0_0, %c0_1] : memref<1x16x32xf32, #tpu.memory_space<vmem>>, vector<1x16x32xf32>
    %1 = vector.shape_cast %0 : vector<1x16x32xf32> to vector<16x32xf32>
    %cst = arith.constant dense<0.000000e+00> : vector<16xf32>
    %2 = vector.multi_reduction <add>, %1, %cst [1] : vector<16x32xf32> to vector<16xf32>
    %3 = vector.shape_cast %2 : vector<16xf32> to vector<16x1xf32>
    %cst_2 = arith.constant 3.200000e+01 : f32
    %4 = vector.broadcast %cst_2 : f32 to vector<16x1xf32>
    %5 = arith.divf %3, %4 : vector<16x1xf32>
    %6 = vector.broadcast %5 : vector<16x1xf32> to vector<16x32xf32>
    %7 = arith.subf %1, %6 : vector<16x32xf32>
    %8 = arith.mulf %7, %7 : vector<16x32xf32>
    %cst_3 = arith.constant dense<0.000000e+00> : vector<16xf32>
    %9 = vector.multi_reduction <add>, %8, %cst_3 [1] : vector<16x32xf32> to vector<16xf32>
    %10 = vector.shape_cast %9 : vector<16xf32> to vector<16x1xf32>
    %cst_4 = arith.constant 3.200000e+01 : f32
    %11 = vector.broadcast %cst_4 : f32 to vector<16x1xf32>
    %12 = arith.divf %10, %11 : vector<16x1xf32>
    %13 = vector.broadcast %5 : vector<16x1xf32> to vector<16x32xf32>
    %14 = arith.subf %1, %13 : vector<16x32xf32>
    %cst_5 = arith.constant 9.99999974E-6 : f32
    %15 = vector.broadcast %cst_5 : f32 to vector<16x1xf32>
    %16 = arith.addf %12, %15 : vector<16x1xf32>
    %17 = math.rsqrt %16 : vector<16x1xf32>
    %18 = vector.broadcast %17 : vector<16x1xf32> to vector<16x32xf32>
    %19 = arith.mulf %14, %18 : vector<16x32xf32>
    %c0_6 = arith.constant 0 : index
    %c0_7 = arith.constant 0 : index
    %20 = vector.load %arg2[%c0_6, %c0_7] : memref<1x32xf32, #tpu.memory_space<vmem>>, vector<1x32xf32>
    %21 = vector.broadcast %20 : vector<1x32xf32> to vector<16x32xf32>
    %22 = arith.mulf %19, %21 : vector<16x32xf32>
    %c0_8 = arith.constant 0 : index
    %c0_9 = arith.constant 0 : index
    %23 = vector.load %arg3[%c0_8, %c0_9] : memref<1x32xf32, #tpu.memory_space<vmem>>, vector<1x32xf32>
    %24 = vector.broadcast %23 : vector<1x32xf32> to vector<16x32xf32>
    %25 = arith.addf %22, %24 : vector<16x32xf32>
    %26 = arith.truncf %25 : vector<16x32xf32> to vector<16x32xbf16>
    %c0_10 = arith.constant 0 : index
    %c0_11 = arith.constant 0 : index
    %27 = vector.load %arg4[%c0_10, %c0_11] : memref<32x128xbf16, #tpu.memory_space<vmem>>, vector<32x128xbf16>
    %cst_12 = arith.constant dense<0.000000e+00> : vector<16x128xf32>
    %28 = tpu.matmul %26, %27, %cst_12 {dimension_numbers = #tpu.dot_dimension_numbers<[1], [0], [0], [1], [0, 0, 1, 1], [], []>} : vector<16x32xbf16>, vector<32x128xbf16>, vector<16x128xf32> -> vector<16x128xf32>
    %c0_13 = arith.constant 0 : index
    %c0_14 = arith.constant 0 : index
    %29 = vector.load %arg5[%c0_13, %c0_14] : memref<1x128xf32, #tpu.memory_space<vmem>>, vector<1x128xf32>
    %30 = vector.broadcast %29 : vector<1x128xf32> to vector<16x128xf32>
    %31 = arith.addf %28, %30 : vector<16x128xf32>
    %32 = arith.negf %31 : vector<16x128xf32>
    %33 = math.exp %32 : vector<16x128xf32>
    %cst_15 = arith.constant 1.000000e+00 : f32
    %34 = vector.broadcast %cst_15 : f32 to vector<16x128xf32>
    %35 = arith.addf %34, %33 : vector<16x128xf32>
    %36 = arith.divf %34, %35 : vector<16x128xf32>
    %37 = arith.mulf %31, %36 : vector<16x128xf32>
    %38 = arith.truncf %37 : vector<16x128xf32> to vector<16x128xbf16>
    %c0_16 = arith.constant 0 : index
    %c0_17 = arith.constant 0 : index
    %39 = vector.load %arg6[%c0_16, %c0_17] : memref<128x32xbf16, #tpu.memory_space<vmem>>, vector<128x32xbf16>
    %cst_18 = arith.constant dense<0.000000e+00> : vector<16x32xf32>
    %40 = tpu.matmul %38, %39, %cst_18 {dimension_numbers = #tpu.dot_dimension_numbers<[1], [0], [0], [1], [0, 0, 1, 1], [], []>} : vector<16x128xbf16>, vector<128x32xbf16>, vector<16x32xf32> -> vector<16x32xf32>
    %c0_19 = arith.constant 0 : index
    %c0_20 = arith.constant 0 : index
    %41 = vector.load %arg7[%c0_19, %c0_20] : memref<1x32xf32, #tpu.memory_space<vmem>>, vector<1x32xf32>
    %42 = vector.broadcast %41 : vector<1x32xf32> to vector<16x32xf32>
    %43 = arith.addf %40, %42 : vector<16x32xf32>
    %cst_21 = arith.constant 5.000000e-01 : f32
    %44 = vector.broadcast %cst_21 : f32 to vector<16x32xf32>
    %45 = arith.mulf %44, %43 : vector<16x32xf32>
    %46 = arith.addf %1, %45 : vector<16x32xf32>
    %cst_22 = arith.constant dense<0.000000e+00> : vector<16xf32>
    %47 = vector.multi_reduction <add>, %46, %cst_22 [1] : vector<16x32xf32> to vector<16xf32>
    %48 = vector.shape_cast %47 : vector<16xf32> to vector<16x1xf32>
    %cst_23 = arith.constant 3.200000e+01 : f32
    %49 = vector.broadcast %cst_23 : f32 to vector<16x1xf32>
    %50 = arith.divf %48, %49 : vector<16x1xf32>
    %51 = vector.broadcast %50 : vector<16x1xf32> to vector<16x32xf32>
    %52 = arith.subf %46, %51 : vector<16x32xf32>
    %53 = arith.mulf %52, %52 : vector<16x32xf32>
    %cst_24 = arith.constant dense<0.000000e+00> : vector<16xf32>
    %54 = vector.multi_reduction <add>, %53, %cst_24 [1] : vector<16x32xf32> to vector<16xf32>
    %55 = vector.shape_cast %54 : vector<16xf32> to vector<16x1xf32>
    %cst_25 = arith.constant 3.200000e+01 : f32
    %56 = vector.broadcast %cst_25 : f32 to vector<16x1xf32>
    %57 = arith.divf %55, %56 : vector<16x1xf32>
    %58 = vector.broadcast %50 : vector<16x1xf32> to vector<16x32xf32>
    %59 = arith.subf %46, %58 : vector<16x32xf32>
    %cst_26 = arith.constant 9.99999974E-6 : f32
    %60 = vector.broadcast %cst_26 : f32 to vector<16x1xf32>
    %61 = arith.addf %57, %60 : vector<16x1xf32>
    %62 = math.rsqrt %61 : vector<16x1xf32>
    %63 = vector.broadcast %62 : vector<16x1xf32> to vector<16x32xf32>
    %64 = arith.mulf %59, %63 : vector<16x32xf32>
    %c0_27 = arith.constant 0 : index
    %c0_28 = arith.constant 0 : index
    %65 = vector.load %arg8[%c0_27, %c0_28] : memref<1x32xf32, #tpu.memory_space<vmem>>, vector<1x32xf32>
    %66 = vector.broadcast %65 : vector<1x32xf32> to vector<16x32xf32>
    %67 = arith.mulf %64, %66 : vector<16x32xf32>
    %c0_29 = arith.constant 0 : index
    %c0_30 = arith.constant 0 : index
    %68 = vector.load %arg9[%c0_29, %c0_30] : memref<1x32xf32, #tpu.memory_space<vmem>>, vector<1x32xf32>
    %69 = vector.broadcast %68 : vector<1x32xf32> to vector<16x32xf32>
    %70 = arith.addf %67, %69 : vector<16x32xf32>
    %71 = arith.truncf %70 : vector<16x32xf32> to vector<16x32xbf16>
    %c0_31 = arith.constant 0 : index
    %c0_32 = arith.constant 0 : index
    %72 = vector.load %arg10[%c0_31, %c0_32] : memref<32x96xbf16, #tpu.memory_space<vmem>>, vector<32x96xbf16>
    %cst_33 = arith.constant dense<0.000000e+00> : vector<16x96xf32>
    %73 = tpu.matmul %71, %72, %cst_33 {dimension_numbers = #tpu.dot_dimension_numbers<[1], [0], [0], [1], [0, 0, 1, 1], [], []>} : vector<16x32xbf16>, vector<32x96xbf16>, vector<16x96xf32> -> vector<16x96xf32>
    %c0_34 = arith.constant 0 : index
    %c0_35 = arith.constant 0 : index
    %c0_36 = arith.constant 0 : index
    %74 = vector.load %arg11[%c0_34, %c0_35, %c0_36] : memref<8x16x16xf32, #tpu.memory_space<vmem>>, vector<8x16x16xf32>
    %75 = tpu.iota {dimensions = array<i32: 1>} : vector<16x16xi32>
    %c9_i32 = arith.constant 9 : i32
    %76 = vector.broadcast %c9_i32 : i32 to vector<16x16xi32>
    %77 = arith.cmpi slt, %75, %76 : vector<16x16xi32>
    %78 = vector.extract_strided_slice %73 {offsets = [0, 0], sizes = [16, 8], strides = [1, 1]} : vector<16x96xf32> to vector<16x8xf32>
    %79 = vector.extract_strided_slice %73 {offsets = [0, 32], sizes = [16, 8], strides = [1, 1]} : vector<16x96xf32> to vector<16x8xf32>
    %80 = vector.extract_strided_slice %73 {offsets = [0, 64], sizes = [16, 8], strides = [1, 1]} : vector<16x96xf32> to vector<16x8xf32>
    %cst_37 = arith.constant dense<0.000000e+00> : vector<16x16xf32>
    %81 = tpu.matmul %78, %79, %cst_37 {dimension_numbers = #tpu.dot_dimension_numbers<[1], [1], [0], [0], [0, 0, 1, 0], [], []>} : vector<16x8xf32>, vector<16x8xf32>, vector<16x16xf32> -> vector<16x16xf32>
    %cst_38 = arith.constant 0.000000e+00 : f32
    %82 = vector.broadcast %cst_38 : f32 to vector<16x16xf32>
    %83 = vector.extract_strided_slice %78 {offsets = [0, 0], sizes = [16, 1], strides = [1, 1]} : vector<16x8xf32> to vector<16x1xf32>
    %84 = vector.extract_strided_slice %74 {offsets = [0, 0, 0], sizes = [1, 16, 16], strides = [1, 1, 1]} : vector<8x16x16xf32> to vector<1x16x16xf32>
    %85 = vector.shape_cast %84 : vector<1x16x16xf32> to vector<16x16xf32>
    %86 = vector.broadcast %83 : vector<16x1xf32> to vector<16x16xf32>
    %87 = arith.mulf %86, %85 : vector<16x16xf32>
    %88 = arith.addf %82, %87 : vector<16x16xf32>
    %89 = vector.extract_strided_slice %78 {offsets = [0, 1], sizes = [16, 1], strides = [1, 1]} : vector<16x8xf32> to vector<16x1xf32>
    %90 = vector.extract_strided_slice %74 {offsets = [1, 0, 0], sizes = [1, 16, 16], strides = [1, 1, 1]} : vector<8x16x16xf32> to vector<1x16x16xf32>
    %91 = vector.shape_cast %90 : vector<1x16x16xf32> to vector<16x16xf32>
    %92 = vector.broadcast %89 : vector<16x1xf32> to vector<16x16xf32>
    %93 = arith.mulf %92, %91 : vector<16x16xf32>
    %94 = arith.addf %88, %93 : vector<16x16xf32>
    %95 = vector.extract_strided_slice %78 {offsets = [0, 2], sizes = [16, 1], strides = [1, 1]} : vector<16x8xf32> to vector<16x1xf32>
    %96 = vector.extract_strided_slice %74 {offsets = [2, 0, 0], sizes = [1, 16, 16], strides = [1, 1, 1]} : vector<8x16x16xf32> to vector<1x16x16xf32>
    %97 = vector.shape_cast %96 : vector<1x16x16xf32> to vector<16x16xf32>
    %98 = vector.broadcast %95 : vector<16x1xf32> to vector<16x16xf32>
    %99 = arith.mulf %98, %97 : vector<16x16xf32>
    %100 = arith.addf %94, %99 : vector<16x16xf32>
    %101 = vector.extract_strided_slice %78 {offsets = [0, 3], sizes = [16, 1], strides = [1, 1]} : vector<16x8xf32> to vector<16x1xf32>
    %102 = vector.extract_strided_slice %74 {offsets = [3, 0, 0], sizes = [1, 16, 16], strides = [1, 1, 1]} : vector<8x16x16xf32> to vector<1x16x16xf32>
    %103 = vector.shape_cast %102 : vector<1x16x16xf32> to vector<16x16xf32>
    %104 = vector.broadcast %101 : vector<16x1xf32> to vector<16x16xf32>
    %105 = arith.mulf %104, %103 : vector<16x16xf32>
    %106 = arith.addf %100, %105 : vector<16x16xf32>
    %107 = vector.extract_strided_slice %78 {offsets = [0, 4], sizes = [16, 1], strides = [1, 1]} : vector<16x8xf32> to vector<16x1xf32>
    %108 = vector.extract_strided_slice %74 {offsets = [4, 0, 0], sizes = [1, 16, 16], strides = [1, 1, 1]} : vector<8x16x16xf32> to vector<1x16x16xf32>
    %109 = vector.shape_cast %108 : vector<1x16x16xf32> to vector<16x16xf32>
    %110 = vector.broadcast %107 : vector<16x1xf32> to vector<16x16xf32>
    %111 = arith.mulf %110, %109 : vector<16x16xf32>
    %112 = arith.addf %106, %111 : vector<16x16xf32>
    %113 = vector.extract_strided_slice %78 {offsets = [0, 5], sizes = [16, 1], strides = [1, 1]} : vector<16x8xf32> to vector<16x1xf32>
    %114 = vector.extract_strided_slice %74 {offsets = [5, 0, 0], sizes = [1, 16, 16], strides = [1, 1, 1]} : vector<8x16x16xf32> to vector<1x16x16xf32>
    %115 = vector.shape_cast %114 : vector<1x16x16xf32> to vector<16x16xf32>
    %116 = vector.broadcast %113 : vector<16x1xf32> to vector<16x16xf32>
    %117 = arith.mulf %116, %115 : vector<16x16xf32>
    %118 = arith.addf %112, %117 : vector<16x16xf32>
    %119 = vector.extract_strided_slice %78 {offsets = [0, 6], sizes = [16, 1], strides = [1, 1]} : vector<16x8xf32> to vector<16x1xf32>
    %120 = vector.extract_strided_slice %74 {offsets = [6, 0, 0], sizes = [1, 16, 16], strides = [1, 1, 1]} : vector<8x16x16xf32> to vector<1x16x16xf32>
    %121 = vector.shape_cast %120 : vector<1x16x16xf32> to vector<16x16xf32>
    %122 = vector.broadcast %119 : vector<16x1xf32> to vector<16x16xf32>
    %123 = arith.mulf %122, %121 : vector<16x16xf32>
    %124 = arith.addf %118, %123 : vector<16x16xf32>
    %125 = vector.extract_strided_slice %78 {offsets = [0, 7], sizes = [16, 1], strides = [1, 1]} : vector<16x8xf32> to vector<16x1xf32>
    %126 = vector.extract_strided_slice %74 {offsets = [7, 0, 0], sizes = [1, 16, 16], strides = [1, 1, 1]} : vector<8x16x16xf32> to vector<1x16x16xf32>
    %127 = vector.shape_cast %126 : vector<1x16x16xf32> to vector<16x16xf32>
    %128 = vector.broadcast %125 : vector<16x1xf32> to vector<16x16xf32>
    %129 = arith.mulf %128, %127 : vector<16x16xf32>
    %130 = arith.addf %124, %129 : vector<16x16xf32>
    %131 = arith.addf %81, %130 : vector<16x16xf32>
    %cst_39 = arith.constant 0.353553385 : f32
    %132 = vector.broadcast %cst_39 : f32 to vector<16x16xf32>
    %133 = arith.mulf %131, %132 : vector<16x16xf32>
    %cst_40 = arith.constant -1.000000e+30 : f32
    %134 = vector.broadcast %cst_40 : f32 to vector<16x16xf32>
    %135 = arith.select %77, %133, %134 : vector<16x16xi1>, vector<16x16xf32>
    %cst_41 = arith.constant dense<0xFF800000> : vector<16xf32>
    %136 = vector.multi_reduction <maximumf>, %135, %cst_41 [1] : vector<16x16xf32> to vector<16xf32>
    %137 = vector.shape_cast %136 : vector<16xf32> to vector<16x1xf32>
    %138 = vector.broadcast %137 : vector<16x1xf32> to vector<16x16xf32>
    %139 = arith.subf %135, %138 : vector<16x16xf32>
    %140 = math.exp %139 : vector<16x16xf32>
    %cst_42 = arith.constant dense<0.000000e+00> : vector<16xf32>
    %141 = vector.multi_reduction <add>, %140, %cst_42 [1] : vector<16x16xf32> to vector<16xf32>
    %142 = vector.shape_cast %141 : vector<16xf32> to vector<16x1xf32>
    %143 = vector.broadcast %142 : vector<16x1xf32> to vector<16x16xf32>
    %144 = arith.divf %140, %143 : vector<16x16xf32>
    %cst_43 = arith.constant dense<0.000000e+00> : vector<16x8xf32>
    %145 = tpu.matmul %144, %80, %cst_43 {dimension_numbers = #tpu.dot_dimension_numbers<[1], [0], [0], [1], [0, 0, 1, 1], [], []>} : vector<16x16xf32>, vector<16x8xf32>, vector<16x8xf32> -> vector<16x8xf32>
    %146 = vector.extract_strided_slice %73 {offsets = [0, 8], sizes = [16, 8], strides = [1, 1]} : vector<16x96xf32> to vector<16x8xf32>
    %147 = vector.extract_strided_slice %73 {offsets = [0, 40], sizes = [16, 8], strides = [1, 1]} : vector<16x96xf32> to vector<16x8xf32>
    %148 = vector.extract_strided_slice %73 {offsets = [0, 72], sizes = [16, 8], strides = [1, 1]} : vector<16x96xf32> to vector<16x8xf32>
    %cst_44 = arith.constant dense<0.000000e+00> : vector<16x16xf32>
    %149 = tpu.matmul %146, %147, %cst_44 {dimension_numbers = #tpu.dot_dimension_numbers<[1], [1], [0], [0], [0, 0, 1, 0], [], []>} : vector<16x8xf32>, vector<16x8xf32>, vector<16x16xf32> -> vector<16x16xf32>
    %cst_45 = arith.constant 0.000000e+00 : f32
    %150 = vector.broadcast %cst_45 : f32 to vector<16x16xf32>
    %151 = vector.extract_strided_slice %146 {offsets = [0, 0], sizes = [16, 1], strides = [1, 1]} : vector<16x8xf32> to vector<16x1xf32>
    %152 = vector.extract_strided_slice %74 {offsets = [0, 0, 0], sizes = [1, 16, 16], strides = [1, 1, 1]} : vector<8x16x16xf32> to vector<1x16x16xf32>
    %153 = vector.shape_cast %152 : vector<1x16x16xf32> to vector<16x16xf32>
    %154 = vector.broadcast %151 : vector<16x1xf32> to vector<16x16xf32>
    %155 = arith.mulf %154, %153 : vector<16x16xf32>
    %156 = arith.addf %150, %155 : vector<16x16xf32>
    %157 = vector.extract_strided_slice %146 {offsets = [0, 1], sizes = [16, 1], strides = [1, 1]} : vector<16x8xf32> to vector<16x1xf32>
    %158 = vector.extract_strided_slice %74 {offsets = [1, 0, 0], sizes = [1, 16, 16], strides = [1, 1, 1]} : vector<8x16x16xf32> to vector<1x16x16xf32>
    %159 = vector.shape_cast %158 : vector<1x16x16xf32> to vector<16x16xf32>
    %160 = vector.broadcast %157 : vector<16x1xf32> to vector<16x16xf32>
    %161 = arith.mulf %160, %159 : vector<16x16xf32>
    %162 = arith.addf %156, %161 : vector<16x16xf32>
    %163 = vector.extract_strided_slice %146 {offsets = [0, 2], sizes = [16, 1], strides = [1, 1]} : vector<16x8xf32> to vector<16x1xf32>
    %164 = vector.extract_strided_slice %74 {offsets = [2, 0, 0], sizes = [1, 16, 16], strides = [1, 1, 1]} : vector<8x16x16xf32> to vector<1x16x16xf32>
    %165 = vector.shape_cast %164 : vector<1x16x16xf32> to vector<16x16xf32>
    %166 = vector.broadcast %163 : vector<16x1xf32> to vector<16x16xf32>
    %167 = arith.mulf %166, %165 : vector<16x16xf32>
    %168 = arith.addf %162, %167 : vector<16x16xf32>
    %169 = vector.extract_strided_slice %146 {offsets = [0, 3], sizes = [16, 1], strides = [1, 1]} : vector<16x8xf32> to vector<16x1xf32>
    %170 = vector.extract_strided_slice %74 {offsets = [3, 0, 0], sizes = [1, 16, 16], strides = [1, 1, 1]} : vector<8x16x16xf32> to vector<1x16x16xf32>
    %171 = vector.shape_cast %170 : vector<1x16x16xf32> to vector<16x16xf32>
    %172 = vector.broadcast %169 : vector<16x1xf32> to vector<16x16xf32>
    %173 = arith.mulf %172, %171 : vector<16x16xf32>
    %174 = arith.addf %168, %173 : vector<16x16xf32>
    %175 = vector.extract_strided_slice %146 {offsets = [0, 4], sizes = [16, 1], strides = [1, 1]} : vector<16x8xf32> to vector<16x1xf32>
    %176 = vector.extract_strided_slice %74 {offsets = [4, 0, 0], sizes = [1, 16, 16], strides = [1, 1, 1]} : vector<8x16x16xf32> to vector<1x16x16xf32>
    %177 = vector.shape_cast %176 : vector<1x16x16xf32> to vector<16x16xf32>
    %178 = vector.broadcast %175 : vector<16x1xf32> to vector<16x16xf32>
    %179 = arith.mulf %178, %177 : vector<16x16xf32>
    %180 = arith.addf %174, %179 : vector<16x16xf32>
    %181 = vector.extract_strided_slice %146 {offsets = [0, 5], sizes = [16, 1], strides = [1, 1]} : vector<16x8xf32> to vector<16x1xf32>
    %182 = vector.extract_strided_slice %74 {offsets = [5, 0, 0], sizes = [1, 16, 16], strides = [1, 1, 1]} : vector<8x16x16xf32> to vector<1x16x16xf32>
    %183 = vector.shape_cast %182 : vector<1x16x16xf32> to vector<16x16xf32>
    %184 = vector.broadcast %181 : vector<16x1xf32> to vector<16x16xf32>
    %185 = arith.mulf %184, %183 : vector<16x16xf32>
    %186 = arith.addf %180, %185 : vector<16x16xf32>
    %187 = vector.extract_strided_slice %146 {offsets = [0, 6], sizes = [16, 1], strides = [1, 1]} : vector<16x8xf32> to vector<16x1xf32>
    %188 = vector.extract_strided_slice %74 {offsets = [6, 0, 0], sizes = [1, 16, 16], strides = [1, 1, 1]} : vector<8x16x16xf32> to vector<1x16x16xf32>
    %189 = vector.shape_cast %188 : vector<1x16x16xf32> to vector<16x16xf32>
    %190 = vector.broadcast %187 : vector<16x1xf32> to vector<16x16xf32>
    %191 = arith.mulf %190, %189 : vector<16x16xf32>
    %192 = arith.addf %186, %191 : vector<16x16xf32>
    %193 = vector.extract_strided_slice %146 {offsets = [0, 7], sizes = [16, 1], strides = [1, 1]} : vector<16x8xf32> to vector<16x1xf32>
    %194 = vector.extract_strided_slice %74 {offsets = [7, 0, 0], sizes = [1, 16, 16], strides = [1, 1, 1]} : vector<8x16x16xf32> to vector<1x16x16xf32>
    %195 = vector.shape_cast %194 : vector<1x16x16xf32> to vector<16x16xf32>
    %196 = vector.broadcast %193 : vector<16x1xf32> to vector<16x16xf32>
    %197 = arith.mulf %196, %195 : vector<16x16xf32>
    %198 = arith.addf %192, %197 : vector<16x16xf32>
    %199 = arith.addf %149, %198 : vector<16x16xf32>
    %cst_46 = arith.constant 0.353553385 : f32
    %200 = vector.broadcast %cst_46 : f32 to vector<16x16xf32>
    %201 = arith.mulf %199, %200 : vector<16x16xf32>
    %cst_47 = arith.constant -1.000000e+30 : f32
    %202 = vector.broadcast %cst_47 : f32 to vector<16x16xf32>
    %203 = arith.select %77, %201, %202 : vector<16x16xi1>, vector<16x16xf32>
    %cst_48 = arith.constant dense<0xFF800000> : vector<16xf32>
    %204 = vector.multi_reduction <maximumf>, %203, %cst_48 [1] : vector<16x16xf32> to vector<16xf32>
    %205 = vector.shape_cast %204 : vector<16xf32> to vector<16x1xf32>
    %206 = vector.broadcast %205 : vector<16x1xf32> to vector<16x16xf32>
    %207 = arith.subf %203, %206 : vector<16x16xf32>
    %208 = math.exp %207 : vector<16x16xf32>
    %cst_49 = arith.constant dense<0.000000e+00> : vector<16xf32>
    %209 = vector.multi_reduction <add>, %208, %cst_49 [1] : vector<16x16xf32> to vector<16xf32>
    %210 = vector.shape_cast %209 : vector<16xf32> to vector<16x1xf32>
    %211 = vector.broadcast %210 : vector<16x1xf32> to vector<16x16xf32>
    %212 = arith.divf %208, %211 : vector<16x16xf32>
    %cst_50 = arith.constant dense<0.000000e+00> : vector<16x8xf32>
    %213 = tpu.matmul %212, %148, %cst_50 {dimension_numbers = #tpu.dot_dimension_numbers<[1], [0], [0], [1], [0, 0, 1, 1], [], []>} : vector<16x16xf32>, vector<16x8xf32>, vector<16x8xf32> -> vector<16x8xf32>
    %214 = vector.extract_strided_slice %73 {offsets = [0, 16], sizes = [16, 8], strides = [1, 1]} : vector<16x96xf32> to vector<16x8xf32>
    %215 = vector.extract_strided_slice %73 {offsets = [0, 48], sizes = [16, 8], strides = [1, 1]} : vector<16x96xf32> to vector<16x8xf32>
    %216 = vector.extract_strided_slice %73 {offsets = [0, 80], sizes = [16, 8], strides = [1, 1]} : vector<16x96xf32> to vector<16x8xf32>
    %cst_51 = arith.constant dense<0.000000e+00> : vector<16x16xf32>
    %217 = tpu.matmul %214, %215, %cst_51 {dimension_numbers = #tpu.dot_dimension_numbers<[1], [1], [0], [0], [0, 0, 1, 0], [], []>} : vector<16x8xf32>, vector<16x8xf32>, vector<16x16xf32> -> vector<16x16xf32>
    %cst_52 = arith.constant 0.000000e+00 : f32
    %218 = vector.broadcast %cst_52 : f32 to vector<16x16xf32>
    %219 = vector.extract_strided_slice %214 {offsets = [0, 0], sizes = [16, 1], strides = [1, 1]} : vector<16x8xf32> to vector<16x1xf32>
    %220 = vector.extract_strided_slice %74 {offsets = [0, 0, 0], sizes = [1, 16, 16], strides = [1, 1, 1]} : vector<8x16x16xf32> to vector<1x16x16xf32>
    %221 = vector.shape_cast %220 : vector<1x16x16xf32> to vector<16x16xf32>
    %222 = vector.broadcast %219 : vector<16x1xf32> to vector<16x16xf32>
    %223 = arith.mulf %222, %221 : vector<16x16xf32>
    %224 = arith.addf %218, %223 : vector<16x16xf32>
    %225 = vector.extract_strided_slice %214 {offsets = [0, 1], sizes = [16, 1], strides = [1, 1]} : vector<16x8xf32> to vector<16x1xf32>
    %226 = vector.extract_strided_slice %74 {offsets = [1, 0, 0], sizes = [1, 16, 16], strides = [1, 1, 1]} : vector<8x16x16xf32> to vector<1x16x16xf32>
    %227 = vector.shape_cast %226 : vector<1x16x16xf32> to vector<16x16xf32>
    %228 = vector.broadcast %225 : vector<16x1xf32> to vector<16x16xf32>
    %229 = arith.mulf %228, %227 : vector<16x16xf32>
    %230 = arith.addf %224, %229 : vector<16x16xf32>
    %231 = vector.extract_strided_slice %214 {offsets = [0, 2], sizes = [16, 1], strides = [1, 1]} : vector<16x8xf32> to vector<16x1xf32>
    %232 = vector.extract_strided_slice %74 {offsets = [2, 0, 0], sizes = [1, 16, 16], strides = [1, 1, 1]} : vector<8x16x16xf32> to vector<1x16x16xf32>
    %233 = vector.shape_cast %232 : vector<1x16x16xf32> to vector<16x16xf32>
    %234 = vector.broadcast %231 : vector<16x1xf32> to vector<16x16xf32>
    %235 = arith.mulf %234, %233 : vector<16x16xf32>
    %236 = arith.addf %230, %235 : vector<16x16xf32>
    %237 = vector.extract_strided_slice %214 {offsets = [0, 3], sizes = [16, 1], strides = [1, 1]} : vector<16x8xf32> to vector<16x1xf32>
    %238 = vector.extract_strided_slice %74 {offsets = [3, 0, 0], sizes = [1, 16, 16], strides = [1, 1, 1]} : vector<8x16x16xf32> to vector<1x16x16xf32>
    %239 = vector.shape_cast %238 : vector<1x16x16xf32> to vector<16x16xf32>
    %240 = vector.broadcast %237 : vector<16x1xf32> to vector<16x16xf32>
    %241 = arith.mulf %240, %239 : vector<16x16xf32>
    %242 = arith.addf %236, %241 : vector<16x16xf32>
    %243 = vector.extract_strided_slice %214 {offsets = [0, 4], sizes = [16, 1], strides = [1, 1]} : vector<16x8xf32> to vector<16x1xf32>
    %244 = vector.extract_strided_slice %74 {offsets = [4, 0, 0], sizes = [1, 16, 16], strides = [1, 1, 1]} : vector<8x16x16xf32> to vector<1x16x16xf32>
    %245 = vector.shape_cast %244 : vector<1x16x16xf32> to vector<16x16xf32>
    %246 = vector.broadcast %243 : vector<16x1xf32> to vector<16x16xf32>
    %247 = arith.mulf %246, %245 : vector<16x16xf32>
    %248 = arith.addf %242, %247 : vector<16x16xf32>
    %249 = vector.extract_strided_slice %214 {offsets = [0, 5], sizes = [16, 1], strides = [1, 1]} : vector<16x8xf32> to vector<16x1xf32>
    %250 = vector.extract_strided_slice %74 {offsets = [5, 0, 0], sizes = [1, 16, 16], strides = [1, 1, 1]} : vector<8x16x16xf32> to vector<1x16x16xf32>
    %251 = vector.shape_cast %250 : vector<1x16x16xf32> to vector<16x16xf32>
    %252 = vector.broadcast %249 : vector<16x1xf32> to vector<16x16xf32>
    %253 = arith.mulf %252, %251 : vector<16x16xf32>
    %254 = arith.addf %248, %253 : vector<16x16xf32>
    %255 = vector.extract_strided_slice %214 {offsets = [0, 6], sizes = [16, 1], strides = [1, 1]} : vector<16x8xf32> to vector<16x1xf32>
    %256 = vector.extract_strided_slice %74 {offsets = [6, 0, 0], sizes = [1, 16, 16], strides = [1, 1, 1]} : vector<8x16x16xf32> to vector<1x16x16xf32>
    %257 = vector.shape_cast %256 : vector<1x16x16xf32> to vector<16x16xf32>
    %258 = vector.broadcast %255 : vector<16x1xf32> to vector<16x16xf32>
    %259 = arith.mulf %258, %257 : vector<16x16xf32>
    %260 = arith.addf %254, %259 : vector<16x16xf32>
    %261 = vector.extract_strided_slice %214 {offsets = [0, 7], sizes = [16, 1], strides = [1, 1]} : vector<16x8xf32> to vector<16x1xf32>
    %262 = vector.extract_strided_slice %74 {offsets = [7, 0, 0], sizes = [1, 16, 16], strides = [1, 1, 1]} : vector<8x16x16xf32> to vector<1x16x16xf32>
    %263 = vector.shape_cast %262 : vector<1x16x16xf32> to vector<16x16xf32>
    %264 = vector.broadcast %261 : vector<16x1xf32> to vector<16x16xf32>
    %265 = arith.mulf %264, %263 : vector<16x16xf32>
    %266 = arith.addf %260, %265 : vector<16x16xf32>
    %267 = arith.addf %217, %266 : vector<16x16xf32>
    %cst_53 = arith.constant 0.353553385 : f32
    %268 = vector.broadcast %cst_53 : f32 to vector<16x16xf32>
    %269 = arith.mulf %267, %268 : vector<16x16xf32>
    %cst_54 = arith.constant -1.000000e+30 : f32
    %270 = vector.broadcast %cst_54 : f32 to vector<16x16xf32>
    %271 = arith.select %77, %269, %270 : vector<16x16xi1>, vector<16x16xf32>
    %cst_55 = arith.constant dense<0xFF800000> : vector<16xf32>
    %272 = vector.multi_reduction <maximumf>, %271, %cst_55 [1] : vector<16x16xf32> to vector<16xf32>
    %273 = vector.shape_cast %272 : vector<16xf32> to vector<16x1xf32>
    %274 = vector.broadcast %273 : vector<16x1xf32> to vector<16x16xf32>
    %275 = arith.subf %271, %274 : vector<16x16xf32>
    %276 = math.exp %275 : vector<16x16xf32>
    %cst_56 = arith.constant dense<0.000000e+00> : vector<16xf32>
    %277 = vector.multi_reduction <add>, %276, %cst_56 [1] : vector<16x16xf32> to vector<16xf32>
    %278 = vector.shape_cast %277 : vector<16xf32> to vector<16x1xf32>
    %279 = vector.broadcast %278 : vector<16x1xf32> to vector<16x16xf32>
    %280 = arith.divf %276, %279 : vector<16x16xf32>
    %cst_57 = arith.constant dense<0.000000e+00> : vector<16x8xf32>
    %281 = tpu.matmul %280, %216, %cst_57 {dimension_numbers = #tpu.dot_dimension_numbers<[1], [0], [0], [1], [0, 0, 1, 1], [], []>} : vector<16x16xf32>, vector<16x8xf32>, vector<16x8xf32> -> vector<16x8xf32>
    %282 = vector.extract_strided_slice %73 {offsets = [0, 24], sizes = [16, 8], strides = [1, 1]} : vector<16x96xf32> to vector<16x8xf32>
    %283 = vector.extract_strided_slice %73 {offsets = [0, 56], sizes = [16, 8], strides = [1, 1]} : vector<16x96xf32> to vector<16x8xf32>
    %284 = vector.extract_strided_slice %73 {offsets = [0, 88], sizes = [16, 8], strides = [1, 1]} : vector<16x96xf32> to vector<16x8xf32>
    %cst_58 = arith.constant dense<0.000000e+00> : vector<16x16xf32>
    %285 = tpu.matmul %282, %283, %cst_58 {dimension_numbers = #tpu.dot_dimension_numbers<[1], [1], [0], [0], [0, 0, 1, 0], [], []>} : vector<16x8xf32>, vector<16x8xf32>, vector<16x16xf32> -> vector<16x16xf32>
    %cst_59 = arith.constant 0.000000e+00 : f32
    %286 = vector.broadcast %cst_59 : f32 to vector<16x16xf32>
    %287 = vector.extract_strided_slice %282 {offsets = [0, 0], sizes = [16, 1], strides = [1, 1]} : vector<16x8xf32> to vector<16x1xf32>
    %288 = vector.extract_strided_slice %74 {offsets = [0, 0, 0], sizes = [1, 16, 16], strides = [1, 1, 1]} : vector<8x16x16xf32> to vector<1x16x16xf32>
    %289 = vector.shape_cast %288 : vector<1x16x16xf32> to vector<16x16xf32>
    %290 = vector.broadcast %287 : vector<16x1xf32> to vector<16x16xf32>
    %291 = arith.mulf %290, %289 : vector<16x16xf32>
    %292 = arith.addf %286, %291 : vector<16x16xf32>
    %293 = vector.extract_strided_slice %282 {offsets = [0, 1], sizes = [16, 1], strides = [1, 1]} : vector<16x8xf32> to vector<16x1xf32>
    %294 = vector.extract_strided_slice %74 {offsets = [1, 0, 0], sizes = [1, 16, 16], strides = [1, 1, 1]} : vector<8x16x16xf32> to vector<1x16x16xf32>
    %295 = vector.shape_cast %294 : vector<1x16x16xf32> to vector<16x16xf32>
    %296 = vector.broadcast %293 : vector<16x1xf32> to vector<16x16xf32>
    %297 = arith.mulf %296, %295 : vector<16x16xf32>
    %298 = arith.addf %292, %297 : vector<16x16xf32>
    %299 = vector.extract_strided_slice %282 {offsets = [0, 2], sizes = [16, 1], strides = [1, 1]} : vector<16x8xf32> to vector<16x1xf32>
    %300 = vector.extract_strided_slice %74 {offsets = [2, 0, 0], sizes = [1, 16, 16], strides = [1, 1, 1]} : vector<8x16x16xf32> to vector<1x16x16xf32>
    %301 = vector.shape_cast %300 : vector<1x16x16xf32> to vector<16x16xf32>
    %302 = vector.broadcast %299 : vector<16x1xf32> to vector<16x16xf32>
    %303 = arith.mulf %302, %301 : vector<16x16xf32>
    %304 = arith.addf %298, %303 : vector<16x16xf32>
    %305 = vector.extract_strided_slice %282 {offsets = [0, 3], sizes = [16, 1], strides = [1, 1]} : vector<16x8xf32> to vector<16x1xf32>
    %306 = vector.extract_strided_slice %74 {offsets = [3, 0, 0], sizes = [1, 16, 16], strides = [1, 1, 1]} : vector<8x16x16xf32> to vector<1x16x16xf32>
    %307 = vector.shape_cast %306 : vector<1x16x16xf32> to vector<16x16xf32>
    %308 = vector.broadcast %305 : vector<16x1xf32> to vector<16x16xf32>
    %309 = arith.mulf %308, %307 : vector<16x16xf32>
    %310 = arith.addf %304, %309 : vector<16x16xf32>
    %311 = vector.extract_strided_slice %282 {offsets = [0, 4], sizes = [16, 1], strides = [1, 1]} : vector<16x8xf32> to vector<16x1xf32>
    %312 = vector.extract_strided_slice %74 {offsets = [4, 0, 0], sizes = [1, 16, 16], strides = [1, 1, 1]} : vector<8x16x16xf32> to vector<1x16x16xf32>
    %313 = vector.shape_cast %312 : vector<1x16x16xf32> to vector<16x16xf32>
    %314 = vector.broadcast %311 : vector<16x1xf32> to vector<16x16xf32>
    %315 = arith.mulf %314, %313 : vector<16x16xf32>
    %316 = arith.addf %310, %315 : vector<16x16xf32>
    %317 = vector.extract_strided_slice %282 {offsets = [0, 5], sizes = [16, 1], strides = [1, 1]} : vector<16x8xf32> to vector<16x1xf32>
    %318 = vector.extract_strided_slice %74 {offsets = [5, 0, 0], sizes = [1, 16, 16], strides = [1, 1, 1]} : vector<8x16x16xf32> to vector<1x16x16xf32>
    %319 = vector.shape_cast %318 : vector<1x16x16xf32> to vector<16x16xf32>
    %320 = vector.broadcast %317 : vector<16x1xf32> to vector<16x16xf32>
    %321 = arith.mulf %320, %319 : vector<16x16xf32>
    %322 = arith.addf %316, %321 : vector<16x16xf32>
    %323 = vector.extract_strided_slice %282 {offsets = [0, 6], sizes = [16, 1], strides = [1, 1]} : vector<16x8xf32> to vector<16x1xf32>
    %324 = vector.extract_strided_slice %74 {offsets = [6, 0, 0], sizes = [1, 16, 16], strides = [1, 1, 1]} : vector<8x16x16xf32> to vector<1x16x16xf32>
    %325 = vector.shape_cast %324 : vector<1x16x16xf32> to vector<16x16xf32>
    %326 = vector.broadcast %323 : vector<16x1xf32> to vector<16x16xf32>
    %327 = arith.mulf %326, %325 : vector<16x16xf32>
    %328 = arith.addf %322, %327 : vector<16x16xf32>
    %329 = vector.extract_strided_slice %282 {offsets = [0, 7], sizes = [16, 1], strides = [1, 1]} : vector<16x8xf32> to vector<16x1xf32>
    %330 = vector.extract_strided_slice %74 {offsets = [7, 0, 0], sizes = [1, 16, 16], strides = [1, 1, 1]} : vector<8x16x16xf32> to vector<1x16x16xf32>
    %331 = vector.shape_cast %330 : vector<1x16x16xf32> to vector<16x16xf32>
    %332 = vector.broadcast %329 : vector<16x1xf32> to vector<16x16xf32>
    %333 = arith.mulf %332, %331 : vector<16x16xf32>
    %334 = arith.addf %328, %333 : vector<16x16xf32>
    %335 = arith.addf %285, %334 : vector<16x16xf32>
    %cst_60 = arith.constant 0.353553385 : f32
    %336 = vector.broadcast %cst_60 : f32 to vector<16x16xf32>
    %337 = arith.mulf %335, %336 : vector<16x16xf32>
    %cst_61 = arith.constant -1.000000e+30 : f32
    %338 = vector.broadcast %cst_61 : f32 to vector<16x16xf32>
    %339 = arith.select %77, %337, %338 : vector<16x16xi1>, vector<16x16xf32>
    %cst_62 = arith.constant dense<0xFF800000> : vector<16xf32>
    %340 = vector.multi_reduction <maximumf>, %339, %cst_62 [1] : vector<16x16xf32> to vector<16xf32>
    %341 = vector.shape_cast %340 : vector<16xf32> to vector<16x1xf32>
    %342 = vector.broadcast %341 : vector<16x1xf32> to vector<16x16xf32>
    %343 = arith.subf %339, %342 : vector<16x16xf32>
    %344 = math.exp %343 : vector<16x16xf32>
    %cst_63 = arith.constant dense<0.000000e+00> : vector<16xf32>
    %345 = vector.multi_reduction <add>, %344, %cst_63 [1] : vector<16x16xf32> to vector<16xf32>
    %346 = vector.shape_cast %345 : vector<16xf32> to vector<16x1xf32>
    %347 = vector.broadcast %346 : vector<16x1xf32> to vector<16x16xf32>
    %348 = arith.divf %344, %347 : vector<16x16xf32>
    %cst_64 = arith.constant dense<0.000000e+00> : vector<16x8xf32>
    %349 = tpu.matmul %348, %284, %cst_64 {dimension_numbers = #tpu.dot_dimension_numbers<[1], [0], [0], [1], [0, 0, 1, 1], [], []>} : vector<16x16xf32>, vector<16x8xf32>, vector<16x8xf32> -> vector<16x8xf32>
    %350 = tpu.concatenate %145, %213, %281, %349 in 1 : vector<16x8xf32>, vector<16x8xf32>, vector<16x8xf32>, vector<16x8xf32> -> vector<16x32xf32>
    %351 = arith.truncf %350 : vector<16x32xf32> to vector<16x32xbf16>
    %c0_65 = arith.constant 0 : index
    %c0_66 = arith.constant 0 : index
    %352 = vector.load %arg12[%c0_65, %c0_66] : memref<32x32xbf16, #tpu.memory_space<vmem>>, vector<32x32xbf16>
    %cst_67 = arith.constant dense<0.000000e+00> : vector<16x32xf32>
    %353 = tpu.matmul %351, %352, %cst_67 {dimension_numbers = #tpu.dot_dimension_numbers<[1], [0], [0], [1], [0, 0, 1, 1], [], []>} : vector<16x32xbf16>, vector<32x32xbf16>, vector<16x32xf32> -> vector<16x32xf32>
    %c0_68 = arith.constant 0 : index
    %c0_69 = arith.constant 0 : index
    %354 = vector.load %arg13[%c0_68, %c0_69] : memref<1x32xf32, #tpu.memory_space<vmem>>, vector<1x32xf32>
    %355 = vector.broadcast %354 : vector<1x32xf32> to vector<16x32xf32>
    %356 = arith.addf %353, %355 : vector<16x32xf32>
    %357 = arith.addf %46, %356 : vector<16x32xf32>
    %cst_70 = arith.constant dense<0.000000e+00> : vector<16xf32>
    %358 = vector.multi_reduction <add>, %357, %cst_70 [1] : vector<16x32xf32> to vector<16xf32>
    %359 = vector.shape_cast %358 : vector<16xf32> to vector<16x1xf32>
    %cst_71 = arith.constant 3.200000e+01 : f32
    %360 = vector.broadcast %cst_71 : f32 to vector<16x1xf32>
    %361 = arith.divf %359, %360 : vector<16x1xf32>
    %362 = vector.broadcast %361 : vector<16x1xf32> to vector<16x32xf32>
    %363 = arith.subf %357, %362 : vector<16x32xf32>
    %364 = arith.mulf %363, %363 : vector<16x32xf32>
    %cst_72 = arith.constant dense<0.000000e+00> : vector<16xf32>
    %365 = vector.multi_reduction <add>, %364, %cst_72 [1] : vector<16x32xf32> to vector<16xf32>
    %366 = vector.shape_cast %365 : vector<16xf32> to vector<16x1xf32>
    %cst_73 = arith.constant 3.200000e+01 : f32
    %367 = vector.broadcast %cst_73 : f32 to vector<16x1xf32>
    %368 = arith.divf %366, %367 : vector<16x1xf32>
    %369 = vector.broadcast %361 : vector<16x1xf32> to vector<16x32xf32>
    %370 = arith.subf %357, %369 : vector<16x32xf32>
    %cst_74 = arith.constant 9.99999974E-6 : f32
    %371 = vector.broadcast %cst_74 : f32 to vector<16x1xf32>
    %372 = arith.addf %368, %371 : vector<16x1xf32>
    %373 = math.rsqrt %372 : vector<16x1xf32>
    %374 = vector.broadcast %373 : vector<16x1xf32> to vector<16x32xf32>
    %375 = arith.mulf %370, %374 : vector<16x32xf32>
    %c0_75 = arith.constant 0 : index
    %c0_76 = arith.constant 0 : index
    %376 = vector.load %arg14[%c0_75, %c0_76] : memref<1x32xf32, #tpu.memory_space<vmem>>, vector<1x32xf32>
    %377 = vector.broadcast %376 : vector<1x32xf32> to vector<16x32xf32>
    %378 = arith.mulf %375, %377 : vector<16x32xf32>
    %c0_77 = arith.constant 0 : index
    %c0_78 = arith.constant 0 : index
    %379 = vector.load %arg15[%c0_77, %c0_78] : memref<1x32xf32, #tpu.memory_space<vmem>>, vector<1x32xf32>
    %380 = vector.broadcast %379 : vector<1x32xf32> to vector<16x32xf32>
    %381 = arith.addf %378, %380 : vector<16x32xf32>
    %382 = arith.truncf %381 : vector<16x32xf32> to vector<16x32xbf16>
    %c0_79 = arith.constant 0 : index
    %c0_80 = arith.constant 0 : index
    %383 = vector.load %arg16[%c0_79, %c0_80] : memref<32x128xbf16, #tpu.memory_space<vmem>>, vector<32x128xbf16>
    %cst_81 = arith.constant dense<0.000000e+00> : vector<16x128xf32>
    %384 = tpu.matmul %382, %383, %cst_81 {dimension_numbers = #tpu.dot_dimension_numbers<[1], [0], [0], [1], [0, 0, 1, 1], [], []>} : vector<16x32xbf16>, vector<32x128xbf16>, vector<16x128xf32> -> vector<16x128xf32>
    %c0_82 = arith.constant 0 : index
    %c0_83 = arith.constant 0 : index
    %385 = vector.load %arg17[%c0_82, %c0_83] : memref<1x128xf32, #tpu.memory_space<vmem>>, vector<1x128xf32>
    %386 = vector.broadcast %385 : vector<1x128xf32> to vector<16x128xf32>
    %387 = arith.addf %384, %386 : vector<16x128xf32>
    %388 = vector.extract_strided_slice %387 {offsets = [0, 0], sizes = [16, 64], strides = [1, 1]} : vector<16x128xf32> to vector<16x64xf32>
    %389 = vector.extract_strided_slice %387 {offsets = [0, 64], sizes = [16, 64], strides = [1, 1]} : vector<16x128xf32> to vector<16x64xf32>
    %390 = arith.negf %389 : vector<16x64xf32>
    %391 = math.exp %390 : vector<16x64xf32>
    %cst_84 = arith.constant 1.000000e+00 : f32
    %392 = vector.broadcast %cst_84 : f32 to vector<16x64xf32>
    %393 = arith.addf %392, %391 : vector<16x64xf32>
    %394 = arith.divf %392, %393 : vector<16x64xf32>
    %395 = arith.mulf %388, %394 : vector<16x64xf32>
    %396 = tpu.iota {dimensions = array<i32: 0>} : vector<16x1xi32>
    %c9_i32_85 = arith.constant 9 : i32
    %397 = vector.broadcast %c9_i32_85 : i32 to vector<16x1xi32>
    %398 = arith.cmpi slt, %396, %397 : vector<16x1xi32>
    %cst_86 = arith.constant 0.000000e+00 : f32
    %399 = vector.shape_cast %398 : vector<16x1xi1> to vector<16x1xi1>
    %400 = vector.broadcast %399 : vector<16x1xi1> to vector<16x64xi1>
    %401 = vector.broadcast %cst_86 : f32 to vector<16x64xf32>
    %402 = arith.select %400, %395, %401 : vector<16x64xi1>, vector<16x64xf32>
    %cst_87 = arith.constant 0.000000e+00 : f32
    %403 = vector.broadcast %cst_87 : f32 to vector<32x64xf32>
    %c0_88 = arith.constant 0 : index
    %c0_89 = arith.constant 0 : index
    %404 = vector.load %arg33[%c0_88, %c0_89] : memref<32x64xf32, #tpu.memory_space<vmem>>, vector<32x64xf32>
    tpu.vector_store %arg33[%c0_88, %c0_89], %403 {strides = array<i32>} : memref<32x64xf32, #tpu.memory_space<vmem>>, vector<32x64xf32>,
    %c8 = arith.constant 8 : index
    %c0_90 = arith.constant 0 : index
    %405 = vector.load %arg33[%c8, %c0_90] : memref<32x64xf32, #tpu.memory_space<vmem>>, vector<16x64xf32>
    tpu.vector_store %arg33[%c8, %c0_90], %402 {strides = array<i32>} : memref<32x64xf32, #tpu.memory_space<vmem>>, vector<16x64xf32>,
    %c0_91 = arith.constant 0 : index
    %c0_92 = arith.constant 0 : index
    %406 = vector.load %arg33[%c0_91, %c0_92] : memref<32x64xf32, #tpu.memory_space<vmem>>, vector<32x64xf32>
    %c0_93 = arith.constant 0 : index
    %c0_94 = arith.constant 0 : index
    %407 = vector.load %arg18[%c0_93, %c0_94] : memref<7x64xf32, #tpu.memory_space<vmem>>, vector<7x64xf32>
    %cst_95 = arith.constant 0.000000e+00 : f32
    %408 = vector.broadcast %cst_95 : f32 to vector<16x64xf32>
    %409 = vector.extract_strided_slice %406 {offsets = [5, 0], sizes = [16, 64], strides = [1, 1]} : vector<32x64xf32> to vector<16x64xf32>
    %410 = vector.extract_strided_slice %407 {offsets = [0, 0], sizes = [1, 64], strides = [1, 1]} : vector<7x64xf32> to vector<1x64xf32>
    %411 = vector.broadcast %410 : vector<1x64xf32> to vector<16x64xf32>
    %412 = arith.mulf %409, %411 : vector<16x64xf32>
    %413 = arith.addf %408, %412 : vector<16x64xf32>
    %414 = vector.extract_strided_slice %406 {offsets = [6, 0], sizes = [16, 64], strides = [1, 1]} : vector<32x64xf32> to vector<16x64xf32>
    %415 = vector.extract_strided_slice %407 {offsets = [1, 0], sizes = [1, 64], strides = [1, 1]} : vector<7x64xf32> to vector<1x64xf32>
    %416 = vector.broadcast %415 : vector<1x64xf32> to vector<16x64xf32>
    %417 = arith.mulf %414, %416 : vector<16x64xf32>
    %418 = arith.addf %413, %417 : vector<16x64xf32>
    %419 = vector.extract_strided_slice %406 {offsets = [7, 0], sizes = [16, 64], strides = [1, 1]} : vector<32x64xf32> to vector<16x64xf32>
    %420 = vector.extract_strided_slice %407 {offsets = [2, 0], sizes = [1, 64], strides = [1, 1]} : vector<7x64xf32> to vector<1x64xf32>
    %421 = vector.broadcast %420 : vector<1x64xf32> to vector<16x64xf32>
    %422 = arith.mulf %419, %421 : vector<16x64xf32>
    %423 = arith.addf %418, %422 : vector<16x64xf32>
    %424 = vector.extract_strided_slice %406 {offsets = [8, 0], sizes = [16, 64], strides = [1, 1]} : vector<32x64xf32> to vector<16x64xf32>
    %425 = vector.extract_strided_slice %407 {offsets = [3, 0], sizes = [1, 64], strides = [1, 1]} : vector<7x64xf32> to vector<1x64xf32>
    %426 = vector.broadcast %425 : vector<1x64xf32> to vector<16x64xf32>
    %427 = arith.mulf %424, %426 : vector<16x64xf32>
    %428 = arith.addf %423, %427 : vector<16x64xf32>
    %429 = vector.extract_strided_slice %406 {offsets = [9, 0], sizes = [16, 64], strides = [1, 1]} : vector<32x64xf32> to vector<16x64xf32>
    %430 = vector.extract_strided_slice %407 {offsets = [4, 0], sizes = [1, 64], strides = [1, 1]} : vector<7x64xf32> to vector<1x64xf32>
    %431 = vector.broadcast %430 : vector<1x64xf32> to vector<16x64xf32>
    %432 = arith.mulf %429, %431 : vector<16x64xf32>
    %433 = arith.addf %428, %432 : vector<16x64xf32>
    %434 = vector.extract_strided_slice %406 {offsets = [10, 0], sizes = [16, 64], strides = [1, 1]} : vector<32x64xf32> to vector<16x64xf32>
    %435 = vector.extract_strided_slice %407 {offsets = [5, 0], sizes = [1, 64], strides = [1, 1]} : vector<7x64xf32> to vector<1x64xf32>
    %436 = vector.broadcast %435 : vector<1x64xf32> to vector<16x64xf32>
    %437 = arith.mulf %434, %436 : vector<16x64xf32>
    %438 = arith.addf %433, %437 : vector<16x64xf32>
    %439 = vector.extract_strided_slice %406 {offsets = [11, 0], sizes = [16, 64], strides = [1, 1]} : vector<32x64xf32> to vector<16x64xf32>
    %440 = vector.extract_strided_slice %407 {offsets = [6, 0], sizes = [1, 64], strides = [1, 1]} : vector<7x64xf32> to vector<1x64xf32>
    %441 = vector.broadcast %440 : vector<1x64xf32> to vector<16x64xf32>
    %442 = arith.mulf %439, %441 : vector<16x64xf32>
    %443 = arith.addf %438, %442 : vector<16x64xf32>
    %c0_96 = arith.constant 0 : index
    %c0_97 = arith.constant 0 : index
    %444 = vector.load %arg19[%c0_96, %c0_97] : memref<1x64xf32, #tpu.memory_space<vmem>>, vector<1x64xf32>
    %445 = vector.broadcast %444 : vector<1x64xf32> to vector<16x64xf32>
    %446 = arith.addf %443, %445 : vector<16x64xf32>
    %c0_98 = arith.constant 0 : index
    %c0_99 = arith.constant 0 : index
    %447 = vector.load %arg20[%c0_98, %c0_99] : memref<1x64xf32, #tpu.memory_space<vmem>>, vector<1x64xf32>
    %448 = vector.broadcast %447 : vector<1x64xf32> to vector<16x64xf32>
    %449 = arith.mulf %446, %448 : vector<16x64xf32>
    %c0_100 = arith.constant 0 : index
    %c0_101 = arith.constant 0 : index
    %450 = vector.load %arg21[%c0_100, %c0_101] : memref<1x64xf32, #tpu.memory_space<vmem>>, vector<1x64xf32>
    %451 = vector.broadcast %450 : vector<1x64xf32> to vector<16x64xf32>
    %452 = arith.addf %449, %451 : vector<16x64xf32>
    %453 = arith.negf %452 : vector<16x64xf32>
    %454 = math.exp %453 : vector<16x64xf32>
    %cst_102 = arith.constant 1.000000e+00 : f32
    %455 = vector.broadcast %cst_102 : f32 to vector<16x64xf32>
    %456 = arith.addf %455, %454 : vector<16x64xf32>
    %457 = arith.divf %455, %456 : vector<16x64xf32>
    %458 = arith.mulf %452, %457 : vector<16x64xf32>
    %459 = arith.truncf %458 : vector<16x64xf32> to vector<16x64xbf16>
    %c0_103 = arith.constant 0 : index
    %c0_104 = arith.constant 0 : index
    %460 = vector.load %arg22[%c0_103, %c0_104] : memref<64x32xbf16, #tpu.memory_space<vmem>>, vector<64x32xbf16>
    %cst_105 = arith.constant dense<0.000000e+00> : vector<16x32xf32>
    %461 = tpu.matmul %459, %460, %cst_105 {dimension_numbers = #tpu.dot_dimension_numbers<[1], [0], [0], [1], [0, 0, 1, 1], [], []>} : vector<16x64xbf16>, vector<64x32xbf16>, vector<16x32xf32> -> vector<16x32xf32>
    %c0_106 = arith.constant 0 : index
    %c0_107 = arith.constant 0 : index
    %462 = vector.load %arg23[%c0_106, %c0_107] : memref<1x32xf32, #tpu.memory_space<vmem>>, vector<1x32xf32>
    %463 = vector.broadcast %462 : vector<1x32xf32> to vector<16x32xf32>
    %464 = arith.addf %461, %463 : vector<16x32xf32>
    %465 = arith.addf %357, %464 : vector<16x32xf32>
    %cst_108 = arith.constant dense<0.000000e+00> : vector<16xf32>
    %466 = vector.multi_reduction <add>, %465, %cst_108 [1] : vector<16x32xf32> to vector<16xf32>
    %467 = vector.shape_cast %466 : vector<16xf32> to vector<16x1xf32>
    %cst_109 = arith.constant 3.200000e+01 : f32
    %468 = vector.broadcast %cst_109 : f32 to vector<16x1xf32>
    %469 = arith.divf %467, %468 : vector<16x1xf32>
    %470 = vector.broadcast %469 : vector<16x1xf32> to vector<16x32xf32>
    %471 = arith.subf %465, %470 : vector<16x32xf32>
    %472 = arith.mulf %471, %471 : vector<16x32xf32>
    %cst_110 = arith.constant dense<0.000000e+00> : vector<16xf32>
    %473 = vector.multi_reduction <add>, %472, %cst_110 [1] : vector<16x32xf32> to vector<16xf32>
    %474 = vector.shape_cast %473 : vector<16xf32> to vector<16x1xf32>
    %cst_111 = arith.constant 3.200000e+01 : f32
    %475 = vector.broadcast %cst_111 : f32 to vector<16x1xf32>
    %476 = arith.divf %474, %475 : vector<16x1xf32>
    %477 = vector.broadcast %469 : vector<16x1xf32> to vector<16x32xf32>
    %478 = arith.subf %465, %477 : vector<16x32xf32>
    %cst_112 = arith.constant 9.99999974E-6 : f32
    %479 = vector.broadcast %cst_112 : f32 to vector<16x1xf32>
    %480 = arith.addf %476, %479 : vector<16x1xf32>
    %481 = math.rsqrt %480 : vector<16x1xf32>
    %482 = vector.broadcast %481 : vector<16x1xf32> to vector<16x32xf32>
    %483 = arith.mulf %478, %482 : vector<16x32xf32>
    %c0_113 = arith.constant 0 : index
    %c0_114 = arith.constant 0 : index
    %484 = vector.load %arg24[%c0_113, %c0_114] : memref<1x32xf32, #tpu.memory_space<vmem>>, vector<1x32xf32>
    %485 = vector.broadcast %484 : vector<1x32xf32> to vector<16x32xf32>
    %486 = arith.mulf %483, %485 : vector<16x32xf32>
    %c0_115 = arith.constant 0 : index
    %c0_116 = arith.constant 0 : index
    %487 = vector.load %arg25[%c0_115, %c0_116] : memref<1x32xf32, #tpu.memory_space<vmem>>, vector<1x32xf32>
    %488 = vector.broadcast %487 : vector<1x32xf32> to vector<16x32xf32>
    %489 = arith.addf %486, %488 : vector<16x32xf32>
    %490 = arith.truncf %489 : vector<16x32xf32> to vector<16x32xbf16>
    %c0_117 = arith.constant 0 : index
    %c0_118 = arith.constant 0 : index
    %491 = vector.load %arg26[%c0_117, %c0_118] : memref<32x128xbf16, #tpu.memory_space<vmem>>, vector<32x128xbf16>
    %cst_119 = arith.constant dense<0.000000e+00> : vector<16x128xf32>
    %492 = tpu.matmul %490, %491, %cst_119 {dimension_numbers = #tpu.dot_dimension_numbers<[1], [0], [0], [1], [0, 0, 1, 1], [], []>} : vector<16x32xbf16>, vector<32x128xbf16>, vector<16x128xf32> -> vector<16x128xf32>
    %c0_120 = arith.constant 0 : index
    %c0_121 = arith.constant 0 : index
    %493 = vector.load %arg27[%c0_120, %c0_121] : memref<1x128xf32, #tpu.memory_space<vmem>>, vector<1x128xf32>
    %494 = vector.broadcast %493 : vector<1x128xf32> to vector<16x128xf32>
    %495 = arith.addf %492, %494 : vector<16x128xf32>
    %496 = arith.negf %495 : vector<16x128xf32>
    %497 = math.exp %496 : vector<16x128xf32>
    %cst_122 = arith.constant 1.000000e+00 : f32
    %498 = vector.broadcast %cst_122 : f32 to vector<16x128xf32>
    %499 = arith.addf %498, %497 : vector<16x128xf32>
    %500 = arith.divf %498, %499 : vector<16x128xf32>
    %501 = arith.mulf %495, %500 : vector<16x128xf32>
    %502 = arith.truncf %501 : vector<16x128xf32> to vector<16x128xbf16>
    %c0_123 = arith.constant 0 : index
    %c0_124 = arith.constant 0 : index
    %503 = vector.load %arg28[%c0_123, %c0_124] : memref<128x32xbf16, #tpu.memory_space<vmem>>, vector<128x32xbf16>
    %cst_125 = arith.constant dense<0.000000e+00> : vector<16x32xf32>
    %504 = tpu.matmul %502, %503, %cst_125 {dimension_numbers = #tpu.dot_dimension_numbers<[1], [0], [0], [1], [0, 0, 1, 1], [], []>} : vector<16x128xbf16>, vector<128x32xbf16>, vector<16x32xf32> -> vector<16x32xf32>
    %c0_126 = arith.constant 0 : index
    %c0_127 = arith.constant 0 : index
    %505 = vector.load %arg29[%c0_126, %c0_127] : memref<1x32xf32, #tpu.memory_space<vmem>>, vector<1x32xf32>
    %506 = vector.broadcast %505 : vector<1x32xf32> to vector<16x32xf32>
    %507 = arith.addf %504, %506 : vector<16x32xf32>
    %cst_128 = arith.constant 5.000000e-01 : f32
    %508 = vector.broadcast %cst_128 : f32 to vector<16x32xf32>
    %509 = arith.mulf %508, %507 : vector<16x32xf32>
    %510 = arith.addf %465, %509 : vector<16x32xf32>
    %cst_129 = arith.constant dense<0.000000e+00> : vector<16xf32>
    %511 = vector.multi_reduction <add>, %510, %cst_129 [1] : vector<16x32xf32> to vector<16xf32>
    %512 = vector.shape_cast %511 : vector<16xf32> to vector<16x1xf32>
    %cst_130 = arith.constant 3.200000e+01 : f32
    %513 = vector.broadcast %cst_130 : f32 to vector<16x1xf32>
    %514 = arith.divf %512, %513 : vector<16x1xf32>
    %515 = vector.broadcast %514 : vector<16x1xf32> to vector<16x32xf32>
    %516 = arith.subf %510, %515 : vector<16x32xf32>
    %517 = arith.mulf %516, %516 : vector<16x32xf32>
    %cst_131 = arith.constant dense<0.000000e+00> : vector<16xf32>
    %518 = vector.multi_reduction <add>, %517, %cst_131 [1] : vector<16x32xf32> to vector<16xf32>
    %519 = vector.shape_cast %518 : vector<16xf32> to vector<16x1xf32>
    %cst_132 = arith.constant 3.200000e+01 : f32
    %520 = vector.broadcast %cst_132 : f32 to vector<16x1xf32>
    %521 = arith.divf %519, %520 : vector<16x1xf32>
    %522 = vector.broadcast %514 : vector<16x1xf32> to vector<16x32xf32>
    %523 = arith.subf %510, %522 : vector<16x32xf32>
    %cst_133 = arith.constant 9.99999974E-6 : f32
    %524 = vector.broadcast %cst_133 : f32 to vector<16x1xf32>
    %525 = arith.addf %521, %524 : vector<16x1xf32>
    %526 = math.rsqrt %525 : vector<16x1xf32>
    %527 = vector.broadcast %526 : vector<16x1xf32> to vector<16x32xf32>
    %528 = arith.mulf %523, %527 : vector<16x32xf32>
    %c0_134 = arith.constant 0 : index
    %c0_135 = arith.constant 0 : index
    %529 = vector.load %arg30[%c0_134, %c0_135] : memref<1x32xf32, #tpu.memory_space<vmem>>, vector<1x32xf32>
    %530 = vector.broadcast %529 : vector<1x32xf32> to vector<16x32xf32>
    %531 = arith.mulf %528, %530 : vector<16x32xf32>
    %c0_136 = arith.constant 0 : index
    %c0_137 = arith.constant 0 : index
    %532 = vector.load %arg31[%c0_136, %c0_137] : memref<1x32xf32, #tpu.memory_space<vmem>>, vector<1x32xf32>
    %533 = vector.broadcast %532 : vector<1x32xf32> to vector<16x32xf32>
    %534 = arith.addf %531, %533 : vector<16x32xf32>
    %c0_138 = arith.constant 0 : index
    %c0_139 = arith.constant 0 : index
    %c0_140 = arith.constant 0 : index
    %535 = vector.load %arg32[%c0_138, %c0_139, %c0_140] : memref<1x16x32xf32, #tpu.memory_space<vmem>>, vector<1x16x32xf32>
    %536 = vector.shape_cast %535 : vector<1x16x32xf32> to vector<16x32xf32>
    %537 = vector.shape_cast %534 : vector<16x32xf32> to vector<1x16x32xf32>
    tpu.vector_store %arg32[%c0_138, %c0_139, %c0_140], %537 {strides = array<i32>} : memref<1x16x32xf32, #tpu.memory_space<vmem>>, vector<1x16x32xf32>,
    return
  }
  func.func @transform_0(%arg0: i32) -> (i32, i32, i32) {
    %c0_i32 = arith.constant 0 : i32
    %c0_i32_0 = arith.constant 0 : i32
    %c0_i32_1 = arith.constant 0 : i32
    return %arg0, %c0_i32, %c0_i32_0 : i32, i32, i32
  }
  func.func @transform_1(%arg0: i32) -> (i32, i32) {
    %c0_i32 = arith.constant 0 : i32
    %c0_i32_0 = arith.constant 0 : i32
    %c0_i32_1 = arith.constant 0 : i32
    return %c0_i32, %c0_i32_0 : i32, i32
  }
  func.func @transform_2(%arg0: i32) -> (i32, i32) {
    %c0_i32 = arith.constant 0 : i32
    %c0_i32_0 = arith.constant 0 : i32
    %c0_i32_1 = arith.constant 0 : i32
    return %c0_i32, %c0_i32_0 : i32, i32
  }
  func.func @transform_3(%arg0: i32) -> (i32, i32) {
    %c0_i32 = arith.constant 0 : i32
    %c0_i32_0 = arith.constant 0 : i32
    %c0_i32_1 = arith.constant 0 : i32
    return %c0_i32, %c0_i32_0 : i32, i32
  }
  func.func @transform_4(%arg0: i32) -> (i32, i32) {
    %c0_i32 = arith.constant 0 : i32
    %c0_i32_0 = arith.constant 0 : i32
    %c0_i32_1 = arith.constant 0 : i32
    return %c0_i32, %c0_i32_0 : i32, i32
  }
  func.func @transform_5(%arg0: i32) -> (i32, i32) {
    %c0_i32 = arith.constant 0 : i32
    %c0_i32_0 = arith.constant 0 : i32
    %c0_i32_1 = arith.constant 0 : i32
    return %c0_i32, %c0_i32_0 : i32, i32
  }
  func.func @transform_6(%arg0: i32) -> (i32, i32) {
    %c0_i32 = arith.constant 0 : i32
    %c0_i32_0 = arith.constant 0 : i32
    %c0_i32_1 = arith.constant 0 : i32
    return %c0_i32, %c0_i32_0 : i32, i32
  }
  func.func @transform_7(%arg0: i32) -> (i32, i32) {
    %c0_i32 = arith.constant 0 : i32
    %c0_i32_0 = arith.constant 0 : i32
    %c0_i32_1 = arith.constant 0 : i32
    return %c0_i32, %c0_i32_0 : i32, i32
  }
  func.func @transform_8(%arg0: i32) -> (i32, i32) {
    %c0_i32 = arith.constant 0 : i32
    %c0_i32_0 = arith.constant 0 : i32
    %c0_i32_1 = arith.constant 0 : i32
    return %c0_i32, %c0_i32_0 : i32, i32
  }
  func.func @transform_9(%arg0: i32) -> (i32, i32) {
    %c0_i32 = arith.constant 0 : i32
    %c0_i32_0 = arith.constant 0 : i32
    %c0_i32_1 = arith.constant 0 : i32
    return %c0_i32, %c0_i32_0 : i32, i32
  }
  func.func @transform_10(%arg0: i32) -> (i32, i32, i32) {
    %c0_i32 = arith.constant 0 : i32
    %c0_i32_0 = arith.constant 0 : i32
    %c0_i32_1 = arith.constant 0 : i32
    %c0_i32_2 = arith.constant 0 : i32
    return %c0_i32, %c0_i32_0, %c0_i32_1 : i32, i32, i32
  }
  func.func @transform_11(%arg0: i32) -> (i32, i32) {
    %c0_i32 = arith.constant 0 : i32
    %c0_i32_0 = arith.constant 0 : i32
    %c0_i32_1 = arith.constant 0 : i32
    return %c0_i32, %c0_i32_0 : i32, i32
  }
  func.func @transform_12(%arg0: i32) -> (i32, i32) {
    %c0_i32 = arith.constant 0 : i32
    %c0_i32_0 = arith.constant 0 : i32
    %c0_i32_1 = arith.constant 0 : i32
    return %c0_i32, %c0_i32_0 : i32, i32
  }
  func.func @transform_13(%arg0: i32) -> (i32, i32) {
    %c0_i32 = arith.constant 0 : i32
    %c0_i32_0 = arith.constant 0 : i32
    %c0_i32_1 = arith.constant 0 : i32
    return %c0_i32, %c0_i32_0 : i32, i32
  }
  func.func @transform_14(%arg0: i32) -> (i32, i32) {
    %c0_i32 = arith.constant 0 : i32
    %c0_i32_0 = arith.constant 0 : i32
    %c0_i32_1 = arith.constant 0 : i32
    return %c0_i32, %c0_i32_0 : i32, i32
  }
  func.func @transform_15(%arg0: i32) -> (i32, i32) {
    %c0_i32 = arith.constant 0 : i32
    %c0_i32_0 = arith.constant 0 : i32
    %c0_i32_1 = arith.constant 0 : i32
    return %c0_i32, %c0_i32_0 : i32, i32
  }
  func.func @transform_16(%arg0: i32) -> (i32, i32) {
    %c0_i32 = arith.constant 0 : i32
    %c0_i32_0 = arith.constant 0 : i32
    %c0_i32_1 = arith.constant 0 : i32
    return %c0_i32, %c0_i32_0 : i32, i32
  }
  func.func @transform_17(%arg0: i32) -> (i32, i32) {
    %c0_i32 = arith.constant 0 : i32
    %c0_i32_0 = arith.constant 0 : i32
    %c0_i32_1 = arith.constant 0 : i32
    return %c0_i32, %c0_i32_0 : i32, i32
  }
  func.func @transform_18(%arg0: i32) -> (i32, i32) {
    %c0_i32 = arith.constant 0 : i32
    %c0_i32_0 = arith.constant 0 : i32
    %c0_i32_1 = arith.constant 0 : i32
    return %c0_i32, %c0_i32_0 : i32, i32
  }
  func.func @transform_19(%arg0: i32) -> (i32, i32) {
    %c0_i32 = arith.constant 0 : i32
    %c0_i32_0 = arith.constant 0 : i32
    %c0_i32_1 = arith.constant 0 : i32
    return %c0_i32, %c0_i32_0 : i32, i32
  }
  func.func @transform_20(%arg0: i32) -> (i32, i32) {
    %c0_i32 = arith.constant 0 : i32
    %c0_i32_0 = arith.constant 0 : i32
    %c0_i32_1 = arith.constant 0 : i32
    return %c0_i32, %c0_i32_0 : i32, i32
  }
  func.func @transform_21(%arg0: i32) -> (i32, i32) {
    %c0_i32 = arith.constant 0 : i32
    %c0_i32_0 = arith.constant 0 : i32
    %c0_i32_1 = arith.constant 0 : i32
    return %c0_i32, %c0_i32_0 : i32, i32
  }
  func.func @transform_22(%arg0: i32) -> (i32, i32) {
    %c0_i32 = arith.constant 0 : i32
    %c0_i32_0 = arith.constant 0 : i32
    %c0_i32_1 = arith.constant 0 : i32
    return %c0_i32, %c0_i32_0 : i32, i32
  }
  func.func @transform_23(%arg0: i32) -> (i32, i32) {
    %c0_i32 = arith.constant 0 : i32
    %c0_i32_0 = arith.constant 0 : i32
    %c0_i32_1 = arith.constant 0 : i32
    return %c0_i32, %c0_i32_0 : i32, i32
  }
  func.func @transform_24(%arg0: i32) -> (i32, i32) {
    %c0_i32 = arith.constant 0 : i32
    %c0_i32_0 = arith.constant 0 : i32
    %c0_i32_1 = arith.constant 0 : i32
    return %c0_i32, %c0_i32_0 : i32, i32
  }
  func.func @transform_25(%arg0: i32) -> (i32, i32) {
    %c0_i32 = arith.constant 0 : i32
    %c0_i32_0 = arith.constant 0 : i32
    %c0_i32_1 = arith.constant 0 : i32
    return %c0_i32, %c0_i32_0 : i32, i32
  }
  func.func @transform_26(%arg0: i32) -> (i32, i32) {
    %c0_i32 = arith.constant 0 : i32
    %c0_i32_0 = arith.constant 0 : i32
    %c0_i32_1 = arith.constant 0 : i32
    return %c0_i32, %c0_i32_0 : i32, i32
  }
  func.func @transform_27(%arg0: i32) -> (i32, i32) {
    %c0_i32 = arith.constant 0 : i32
    %c0_i32_0 = arith.constant 0 : i32
    %c0_i32_1 = arith.constant 0 : i32
    return %c0_i32, %c0_i32_0 : i32, i32
  }
  func.func @transform_28(%arg0: i32) -> (i32, i32) {
    %c0_i32 = arith.constant 0 : i32
    %c0_i32_0 = arith.constant 0 : i32
    %c0_i32_1 = arith.constant 0 : i32
    return %c0_i32, %c0_i32_0 : i32, i32
  }
  func.func @transform_29(%arg0: i32) -> (i32, i32) {
    %c0_i32 = arith.constant 0 : i32
    %c0_i32_0 = arith.constant 0 : i32
    %c0_i32_1 = arith.constant 0 : i32
    return %c0_i32, %c0_i32_0 : i32, i32
  }
  func.func @transform_30(%arg0: i32) -> (i32, i32) {
    %c0_i32 = arith.constant 0 : i32
    %c0_i32_0 = arith.constant 0 : i32
    %c0_i32_1 = arith.constant 0 : i32
    return %c0_i32, %c0_i32_0 : i32, i32
  }
  func.func @transform_31(%arg0: i32) -> (i32, i32, i32) {
    %c0_i32 = arith.constant 0 : i32
    %c0_i32_0 = arith.constant 0 : i32
    %c0_i32_1 = arith.constant 0 : i32
    return %arg0, %c0_i32, %c0_i32_0 : i32, i32, i32
  }
}

</mosaic_0001>

<llo_original>
// kernel: _lambda_.3
$region0: #{_lambda_.3}
  #allocation0 [shape = 'u32[]', space=smem, size = 0x4, offset = 0x4, fixed_abs, tag = 'smem constant byte address 0x4 - core index']
  #allocation1 [shape = 'u32[144,128]{1,0:T(1,128)}', space=vmem, size = 0x12000, scoped, tag = 'internal scratch']
  %s0 = inlined_call_operand.hbm [shape: f32[16,1024], index: 0, kind: input, shape index: {}]
  %s1 = inlined_call_operand.hbm [shape: bf16[1024,32], index: 1, kind: input, shape index: {}]
  %s2 = inlined_call_operand.vmem [shape: f32[1,32], index: 2, kind: input, shape index: {}]
  %s3 = inlined_call_operand.vmem [shape: f32[16,32], index: 3, kind: output, shape index: {}]
  %s4 = sld [smem:[#allocation0]]
  $region53: #{_lambda_.3} parent=0
    _
  %s6 = ssub.s32 1, %s4
  %s7 = scalar_select 0, %s6, %s4
  $region1: #{_lambda_.3} parent=0
    #allocation2 [shape = 'u8[65536]{0}', space=vmem, size = 0x10000, scoped, tag = 'input window, operand 0']
    #allocation3 [shape = 's32[2]{0}', space=sflag, size = 0x8, scoped, tag = 'scoped memory for _lambda_.3']
    #allocation4 [shape = 'u8[262144]{0}', space=vmem, size = 0x40000, scoped, tag = 'input window, operand 1, single buffered']
    #allocation5 [shape = 's32[1]{0}', space=sflag, size = 0x4, scoped, tag = 'scoped memory for _lambda_.3']
    %8 = vsyncpa [#allocation3], 0
    %s9 = scalar_lea.sflag [#allocation3], 1
    %10 = vsyncpa %s9, 0
    %11 = vsyncpa [#allocation5], 0
    loop: start=0, step=1, limit=4
    $region2: #{_lambda_.3} parent=1 // loop_pre_header
      _
    $region3: #{_lambda_.3} parent=1 // loop_header
      %s13 = sphi 0, %s17
      %p14 = scmp.ge.s32.totalorder %s13, 4
      %s23 = sphi 0, %s25
      %s26 = sphi 0, %s23
      %s27 = sphi 0, %s26
      %s43 = sphi 0, %s27
      %s47 = sphi 0, %s47
      %s49 = sphi 0, %s47
      %s50 = sphi 0, %s49
      %s64 = sphi 0, %s50
      %s68 = sphi 0, %s68
      %s70 = sphi 0, %s68
      %s71 = sphi 0, %s70
      %s85 = sphi 0, %s71
      %s91 = sphi 0, %s93
      %s94 = sphi 0, %s91
      %s95 = sphi 0, %s94
      %s111 = sphi 0, %s95
    $region4: #{_lambda_.3} parent=1 // loop_header_branch
      %16 = sbr.rel (%p14) target = $region8
    $region5: #{_lambda_.3} parent=1 // loop_body
      %s18 = ssub.s32 %s13, 1
      %s19 = ssub.s32 %s13, 2
      %s20 = sadd.s32 %s13, 1
      %s21 = ssub.s32 %s13, %s20
      %p22 = scmp.eq.s32.totalorder %s21, 0
      %s24 = sadd.s32 %s23, 1
      %s25 = scalar_select %p22, %s23, %s24
      %p28 = pneg %p22
      %p29 = scmp.eq.s32.totalorder %s13, 1
      %p30 = por %p28, %p29
      %p31 = scmp.ne.s32.totalorder %s23, %s26
      %p32 = scmp.eq.s32.totalorder %s13, 0
      %p33 = por %p31, %p32
      %p34 = scmp.ne.s32.totalorder %s23, %s26
      %p35 = scmp.eq.s32.totalorder %s18, 1
      %p36 = por %p34, %p35
      %p37 = scmp.ne.s32.totalorder %s26, %s27
      %p38 = scmp.eq.s32.totalorder %s18, 0
      %p39 = por %p37, %p38
      %p40 = scmp.ne.s32.totalorder %s26, %s27
      %p41 = scmp.eq.s32.totalorder %s19, 1
      %p42 = por %p40, %p41
      %p44 = scmp.ne.s32.totalorder %s27, %s43
      %p45 = scmp.eq.s32.totalorder %s19, 0
      %p46 = por %p44, %p45
      %s48 = sadd.s32 %s47, 1
      %p51 = scmp.eq.s32.totalorder %s13, 1
      %p52 = scmp.ne.s32.totalorder %s47, %s49
      %p53 = scmp.eq.s32.totalorder %s13, 0
      %p54 = por %p52, %p53
      %p55 = scmp.ne.s32.totalorder %s47, %s49
      %p56 = scmp.eq.s32.totalorder %s18, 1
      %p57 = por %p55, %p56
      %p58 = scmp.ne.s32.totalorder %s49, %s50
      %p59 = scmp.eq.s32.totalorder %s18, 0
      %p60 = por %p58, %p59
      %p61 = scmp.ne.s32.totalorder %s49, %s50
      %p62 = scmp.eq.s32.totalorder %s19, 1
      %p63 = por %p61, %p62
      %p65 = scmp.ne.s32.totalorder %s50, %s64
      %p66 = scmp.eq.s32.totalorder %s19, 0
      %p67 = por %p65, %p66
      %s69 = sadd.s32 %s68, 1
      %p72 = scmp.eq.s32.totalorder %s13, 1
      %p73 = scmp.ne.s32.totalorder %s68, %s70
      %p74 = scmp.eq.s32.totalorder %s13, 0
      %p75 = por %p73, %p74
      %p76 = scmp.ne.s32.totalorder %s68, %s70
      %p77 = scmp.eq.s32.totalorder %s18, 1
      %p78 = por %p76, %p77
      %p79 = scmp.ne.s32.totalorder %s70, %s71
      %p80 = scmp.eq.s32.totalorder %s18, 0
      %p81 = por %p79, %p80
      %p82 = scmp.ne.s32.totalorder %s70, %s71
      %p83 = scmp.eq.s32.totalorder %s19, 1
      %p84 = por %p82, %p83
      %p86 = scmp.ne.s32.totalorder %s71, %s85
      %p87 = scmp.eq.s32.totalorder %s19, 0
      %p88 = por %p86, %p87
      %s89 = ssub.s32 %s13, %s20
      %p90 = scmp.eq.s32.totalorder %s89, 0
      %s92 = sadd.s32 %s91, 1
      %s93 = scalar_select %p90, %s91, %s92
      %p96 = pneg %p90
      %p97 = scmp.eq.s32.totalorder %s13, 1
      %p98 = por %p96, %p97
      %p99 = scmp.ne.s32.totalorder %s91, %s94
      %p100 = scmp.eq.s32.totalorder %s13, 0
      %p101 = por %p99, %p100
      %p102 = scmp.ne.s32.totalorder %s91, %s94
      %p103 = scmp.eq.s32.totalorder %s18, 1
      %p104 = por %p102, %p103
      %p105 = scmp.ne.s32.totalorder %s94, %s95
      %p106 = scmp.eq.s32.totalorder %s18, 0
      %p107 = por %p105, %p106
      %p108 = scmp.ne.s32.totalorder %s94, %s95
      %p109 = scmp.eq.s32.totalorder %s19, 1
      %p110 = por %p108, %p109
      %p112 = scmp.ne.s32.totalorder %s95, %s111
      %p113 = scmp.eq.s32.totalorder %s19, 0
      %p114 = por %p112, %p113
      %p115 = scmp.le.s32.totalorder 1, %s13
      %p116 = scmp.lt.s32.totalorder %s13, 3
      %p117 = pnand %p115, %p116
      %p118 = pneg %p117
      // Predicated region
      $region9: #{_lambda_.3} parent=5 // pred_check
        _
      $region10: #{_lambda_.3} parent=5 // pred_check_branch
        %120 = sbr.rel (%p117) target = $region12
      $region11: #{_lambda_.3} parent=5 // pred_region
        %s121 = ssub.s32 %s13, 1
        // Predicated region
        $region13: #{_lambda_.3} parent=11 // pred_check
          %p122 = pneg %p60
        $region14: #{_lambda_.3} parent=11 // pred_check_branch
          %124 = sbr.rel (%p122) target = $region16
        $region15: #{_lambda_.3} parent=11 // pred_region
          %s126 = ssub.s32 8192, 8192
          %127 = vsyncadd [#allocation5], %s126
          %s128 = sshll.u32 [#allocation4], 4
          %s129 = int_to_ptr.vmem [resolvable:$true] %s128
          %134 = dma.hbm_to_vmem [thread:$0]  %s1, 8192, %s129, [#allocation5], 64, 64, 4
        $region16: #{_lambda_.3} parent=11 // pred_fallthru
          _
        // Predicated region
        $region17: #{_lambda_.3} parent=11 // pred_check
          %p135 = pneg %p81
        $region18: #{_lambda_.3} parent=11 // pred_check_branch
          %137 = sbr.rel (%p135) target = $region20
        $region19: #{_lambda_.3} parent=11 // pred_region
          _
        $region20: #{_lambda_.3} parent=11 // pred_fallthru
          _
      $region12: #{_lambda_.3} parent=5 // pred_fallthru
        _
      %p138 = scmp.lt.s32.totalorder %s13, 2
      // Predicated region
      $region21: #{_lambda_.3} parent=5 // pred_check
        %p139 = pneg %p138
      $region22: #{_lambda_.3} parent=5 // pred_check_branch
        %141 = sbr.rel (%p139) target = $region24
      $region23: #{_lambda_.3} parent=5 // pred_region
        // Predicated region
        $region25: #{_lambda_.3} parent=23 // pred_check
          %p142 = pneg %p33
        $region26: #{_lambda_.3} parent=23 // pred_check_branch
          %144 = sbr.rel (%p142) target = $region28
        $region27: #{_lambda_.3} parent=23 // pred_region
          %s145 = sand.u32 %s23, 1
          %s146 = scalar_lea.sflag [#allocation3], %s145
          %s147 = sand.u32 %s23, 1
          %s148 = smul.addr %s147, 64
          %s149 = scalar_lea.vmem [#allocation2], %s148
          %s151 = ssub.s32 1024, 1024
          %152 = vsyncadd %s146, %s151
          %s153 = smul.addr %s13, 8
          %s154 = smul.addr %s153, 128
          %s155 = scalar_lea.hbm %s0, %s154
          %s157 = sshll.u32 %s149, 4
          %s158 = int_to_ptr.vmem [resolvable:$true] %s157
          %160 = dma.hbm_to_vmem [thread:$0]  %s155, 1024, %s158, %s146
        $region28: #{_lambda_.3} parent=23 // pred_fallthru
          _
      $region24: #{_lambda_.3} parent=5 // pred_fallthru
        _
      %p161 = scmp.le.s32.totalorder 1, %s13
      %p162 = scmp.lt.s32.totalorder %s13, 3
      %p163 = pnand %p161, %p162
      %p164 = pneg %p163
      // Predicated region
      $region29: #{_lambda_.3} parent=5 // pred_check
        _
      $region30: #{_lambda_.3} parent=5 // pred_check_branch
        %166 = sbr.rel (%p163) target = $region32
      $region31: #{_lambda_.3} parent=5 // pred_region
        %s167 = ssub.s32 %s13, 1
        %s168 = sand.u32 %s26, 1
        %s169 = scalar_lea.sflag [#allocation3], %s168
        %s170 = sand.u32 %s26, 1
        %s171 = smul.addr %s170, 64
        %s172 = scalar_lea.vmem [#allocation2], %s171
        // Predicated region
        $region33: #{_lambda_.3} parent=31 // pred_check
          %p173 = pneg %p39
        $region34: #{_lambda_.3} parent=31 // pred_check_branch
          %175 = sbr.rel (%p173) target = $region36
        $region35: #{_lambda_.3} parent=31 // pred_region
          %176 = dma.done %s169, 1024
        $region36: #{_lambda_.3} parent=31 // pred_fallthru
          _
        // Predicated region
        $region37: #{_lambda_.3} parent=31 // pred_check
          %p177 = pneg %p60
        $region38: #{_lambda_.3} parent=31 // pred_check_branch
          %179 = sbr.rel (%p177) target = $region40
        $region39: #{_lambda_.3} parent=31 // pred_region
          %180 = dma.done [#allocation5], 8192
        $region40: #{_lambda_.3} parent=31 // pred_fallthru
          _
        %s181 = sand.u32 %s26, 1
        %s182 = scalar_lea.sflag [#allocation3], %s181
        %s183 = sand.u32 %s26, 1
        %s184 = smul.addr %s183, 64
        %s185 = scalar_lea.vmem [#allocation2], %s184
        %p186 = pneg %p39
        %p187 = pneg %p36
        %p188 = pneg %p60
        %p189 = pneg %p57
        %p190 = pneg %p81
        %p191 = pneg %p78
        %p192 = pneg %p107
        %p193 = pneg %p104
        %p194 = scmp.lt.s32.totalorder %s18, 1
        %s195 = scalar_select %p194, %s18, 1
        %s196 = smul.addr %s195, 8
        %s197 = scalar_lea.vmem %s3, %s196
        %p198 = scmp.lt.s32.totalorder %s18, 1
        %s199 = scalar_select %p198, %s18, 1
        %s200 = smul.addr %s199, 8
        %s201 = scalar_lea.vmem %s3, %s200
        %v203 = vld [vmem:[%s172] sm:$0xff]
        %v204 = vld [vmem:[%s172 + $0x8] sm:$0xff]
        %v205 = vld [vmem:[%s172 + $0x10] sm:$0xff]
        %v206 = vld [vmem:[%s172 + $0x18] sm:$0xff]
        %v207 = vld [vmem:[%s172 + $0x20] sm:$0xff]
        %v208 = vld [vmem:[%s172 + $0x28] sm:$0xff]
        %v209 = vld [vmem:[%s172 + $0x30] sm:$0xff]
        %v210 = vld [vmem:[%s172 + $0x38] sm:$0xff]
        %v211 = vpack.c.bf16 %v203, %v203
        %v212 = vpack.c.bf16 %v204, %v204
        %v213 = vpack.c.bf16 %v205, %v205
        %v214 = vpack.c.bf16 %v206, %v206
        %v215 = vpack.c.bf16 %v207, %v207
        %v216 = vpack.c.bf16 %v208, %v208
        %v217 = vpack.c.bf16 %v209, %v209
        %v218 = vpack.c.bf16 %v210, %v210
        %v219 = vld [vmem:[#allocation4] sm:$0xf]
        %v220 = vld [vmem:[#allocation4 + $0x4] sm:$0xf]
        %v221 = vld [vmem:[#allocation4 + $0x8] sm:$0xf]
        %v222 = vld [vmem:[#allocation4 + $0xc] sm:$0xf]
        %v223 = vld [vmem:[#allocation4 + $0x10] sm:$0xf]
        %v224 = vld [vmem:[#allocation4 + $0x14] sm:$0xf]
        %v225 = vld [vmem:[#allocation4 + $0x18] sm:$0xf]
        %v226 = vld [vmem:[#allocation4 + $0x1c] sm:$0xf]
        %v227 = vld [vmem:[#allocation4 + $0x20] sm:$0xf]
        %v228 = vld [vmem:[#allocation4 + $0x24] sm:$0xf]
        %v229 = vld [vmem:[#allocation4 + $0x28] sm:$0xf]
        %v230 = vld [vmem:[#allocation4 + $0x2c] sm:$0xf]
        %v231 = vld [vmem:[#allocation4 + $0x30] sm:$0xf]
        %v232 = vld [vmem:[#allocation4 + $0x34] sm:$0xf]
        %v233 = vld [vmem:[#allocation4 + $0x38] sm:$0xf]
        %v234 = vld [vmem:[#allocation4 + $0x3c] sm:$0xf]
        %v235 = vld [vmem:[#allocation4 + $0x40] sm:$0xf]
        %v236 = vld [vmem:[#allocation4 + $0x44] sm:$0xf]
        %v237 = vld [vmem:[#allocation4 + $0x48] sm:$0xf]
        %v238 = vld [vmem:[#allocation4 + $0x4c] sm:$0xf]
        %v239 = vld [vmem:[#allocation4 + $0x50] sm:$0xf]
        %v240 = vld [vmem:[#allocation4 + $0x54] sm:$0xf]
        %v241 = vld [vmem:[#allocation4 + $0x58] sm:$0xf]
        %v242 = vld [vmem:[#allocation4 + $0x5c] sm:$0xf]
        %v243 = vld [vmem:[#allocation4 + $0x60] sm:$0xf]
        %v244 = vld [vmem:[#allocation4 + $0x64] sm:$0xf]
        %v245 = vld [vmem:[#allocation4 + $0x68] sm:$0xf]
        %v246 = vld [vmem:[#allocation4 + $0x6c] sm:$0xf]
        %v247 = vld [vmem:[#allocation4 + $0x70] sm:$0xf]
        %v248 = vld [vmem:[#allocation4 + $0x74] sm:$0xf]
        %v249 = vld [vmem:[#allocation4 + $0x78] sm:$0xf]
        %v250 = vld [vmem:[#allocation4 + $0x7c] sm:$0xf]
        %v251 = vld [vmem:[#allocation4 + $0x80] sm:$0xf]
        %v252 = vld [vmem:[#allocation4 + $0x84] sm:$0xf]
        %v253 = vld [vmem:[#allocation4 + $0x88] sm:$0xf]
        %v254 = vld [vmem:[#allocation4 + $0x8c] sm:$0xf]
        %v255 = vld [vmem:[#allocation4 + $0x90] sm:$0xf]
        %v256 = vld [vmem:[#allocation4 + $0x94] sm:$0xf]
        %v257 = vld [vmem:[#allocation4 + $0x98] sm:$0xf]
        %v258 = vld [vmem:[#allocation4 + $0x9c] sm:$0xf]
        %v259 = vld [vmem:[#allocation4 + $0xa0] sm:$0xf]
        %v260 = vld [vmem:[#allocation4 + $0xa4] sm:$0xf]
        %v261 = vld [vmem:[#allocation4 + $0xa8] sm:$0xf]
        %v262 = vld [vmem:[#allocation4 + $0xac] sm:$0xf]
        %v263 = vld [vmem:[#allocation4 + $0xb0] sm:$0xf]
        %v264 = vld [vmem:[#allocation4 + $0xb4] sm:$0xf]
        %v265 = vld [vmem:[#allocation4 + $0xb8] sm:$0xf]
        %v266 = vld [vmem:[#allocation4 + $0xbc] sm:$0xf]
        %v267 = vld [vmem:[#allocation4 + $0xc0] sm:$0xf]
        %v268 = vld [vmem:[#allocation4 + $0xc4] sm:$0xf]
        %v269 = vld [vmem:[#allocation4 + $0xc8] sm:$0xf]
        %v270 = vld [vmem:[#allocation4 + $0xcc] sm:$0xf]
        %v271 = vld [vmem:[#allocation4 + $0xd0] sm:$0xf]
        %v272 = vld [vmem:[#allocation4 + $0xd4] sm:$0xf]
        %v273 = vld [vmem:[#allocation4 + $0xd8] sm:$0xf]
        %v274 = vld [vmem:[#allocation4 + $0xdc] sm:$0xf]
        %v275 = vld [vmem:[#allocation4 + $0xe0] sm:$0xf]
        %v276 = vld [vmem:[#allocation4 + $0xe4] sm:$0xf]
        %v277 = vld [vmem:[#allocation4 + $0xe8] sm:$0xf]
        %v278 = vld [vmem:[#allocation4 + $0xec] sm:$0xf]
        %v279 = vld [vmem:[#allocation4 + $0xf0] sm:$0xf]
        %v280 = vld [vmem:[#allocation4 + $0xf4] sm:$0xf]
        %v281 = vld [vmem:[#allocation4 + $0xf8] sm:$0xf]
        %v282 = vld [vmem:[#allocation4 + $0xfc] sm:$0xf]
        %v283 = vld [vmem:[#allocation4 + $0x100] sm:$0xf]
        %v284 = vld [vmem:[#allocation4 + $0x104] sm:$0xf]
        %v285 = vld [vmem:[#allocation4 + $0x108] sm:$0xf]
        %v286 = vld [vmem:[#allocation4 + $0x10c] sm:$0xf]
        %v287 = vld [vmem:[#allocation4 + $0x110] sm:$0xf]
        %v288 = vld [vmem:[#allocation4 + $0x114] sm:$0xf]
        %v289 = vld [vmem:[#allocation4 + $0x118] sm:$0xf]
        %v290 = vld [vmem:[#allocation4 + $0x11c] sm:$0xf]
        %v291 = vld [vmem:[#allocation4 + $0x120] sm:$0xf]
        %v292 = vld [vmem:[#allocation4 + $0x124] sm:$0xf]
        %v293 = vld [vmem:[#allocation4 + $0x128] sm:$0xf]
        %v294 = vld [vmem:[#allocation4 + $0x12c] sm:$0xf]
        %v295 = vld [vmem:[#allocation4 + $0x130] sm:$0xf]
        %v296 = vld [vmem:[#allocation4 + $0x134] sm:$0xf]
        %v297 = vld [vmem:[#allocation4 + $0x138] sm:$0xf]
        %v298 = vld [vmem:[#allocation4 + $0x13c] sm:$0xf]
        %v299 = vld [vmem:[#allocation4 + $0x140] sm:$0xf]
        %v300 = vld [vmem:[#allocation4 + $0x144] sm:$0xf]
        %v301 = vld [vmem:[#allocation4 + $0x148] sm:$0xf]
        %v302 = vld [vmem:[#allocation4 + $0x14c] sm:$0xf]
        %v303 = vld [vmem:[#allocation4 + $0x150] sm:$0xf]
        %v304 = vld [vmem:[#allocation4 + $0x154] sm:$0xf]
        %v305 = vld [vmem:[#allocation4 + $0x158] sm:$0xf]
        %v306 = vld [vmem:[#allocation4 + $0x15c] sm:$0xf]
        %v307 = vld [vmem:[#allocation4 + $0x160] sm:$0xf]
        %v308 = vld [vmem:[#allocation4 + $0x164] sm:$0xf]
        %v309 = vld [vmem:[#allocation4 + $0x168] sm:$0xf]
        %v310 = vld [vmem:[#allocation4 + $0x16c] sm:$0xf]
        %v311 = vld [vmem:[#allocation4 + $0x170] sm:$0xf]
        %v312 = vld [vmem:[#allocation4 + $0x174] sm:$0xf]
        %v313 = vld [vmem:[#allocation4 + $0x178] sm:$0xf]
        %v314 = vld [vmem:[#allocation4 + $0x17c] sm:$0xf]
        %v315 = vld [vmem:[#allocation4 + $0x180] sm:$0xf]
        %v316 = vld [vmem:[#allocation4 + $0x184] sm:$0xf]
        %v317 = vld [vmem:[#allocation4 + $0x188] sm:$0xf]
        %v318 = vld [vmem:[#allocation4 + $0x18c] sm:$0xf]
        %v319 = vld [vmem:[#allocation4 + $0x190] sm:$0xf]
        %v320 = vld [vmem:[#allocation4 + $0x194] sm:$0xf]
        %v321 = vld [vmem:[#allocation4 + $0x198] sm:$0xf]
        %v322 = vld [vmem:[#allocation4 + $0x19c] sm:$0xf]
        %v323 = vld [vmem:[#allocation4 + $0x1a0] sm:$0xf]
        %v324 = vld [vmem:[#allocation4 + $0x1a4] sm:$0xf]
        %v325 = vld [vmem:[#allocation4 + $0x1a8] sm:$0xf]
        %v326 = vld [vmem:[#allocation4 + $0x1ac] sm:$0xf]
        %v327 = vld [vmem:[#allocation4 + $0x1b0] sm:$0xf]
        %v328 = vld [vmem:[#allocation4 + $0x1b4] sm:$0xf]
        %v329 = vld [vmem:[#allocation4 + $0x1b8] sm:$0xf]
        %v330 = vld [vmem:[#allocation4 + $0x1bc] sm:$0xf]
        %v331 = vld [vmem:[#allocation4 + $0x1c0] sm:$0xf]
        %v332 = vld [vmem:[#allocation4 + $0x1c4] sm:$0xf]
        %v333 = vld [vmem:[#allocation4 + $0x1c8] sm:$0xf]
        %v334 = vld [vmem:[#allocation4 + $0x1cc] sm:$0xf]
        %v335 = vld [vmem:[#allocation4 + $0x1d0] sm:$0xf]
        %v336 = vld [vmem:[#allocation4 + $0x1d4] sm:$0xf]
        %v337 = vld [vmem:[#allocation4 + $0x1d8] sm:$0xf]
        %v338 = vld [vmem:[#allocation4 + $0x1dc] sm:$0xf]
        %v339 = vld [vmem:[#allocation4 + $0x1e0] sm:$0xf]
        %v340 = vld [vmem:[#allocation4 + $0x1e4] sm:$0xf]
        %v341 = vld [vmem:[#allocation4 + $0x1e8] sm:$0xf]
        %v342 = vld [vmem:[#allocation4 + $0x1ec] sm:$0xf]
        %v343 = vld [vmem:[#allocation4 + $0x1f0] sm:$0xf]
        %v344 = vld [vmem:[#allocation4 + $0x1f4] sm:$0xf]
        %v345 = vld [vmem:[#allocation4 + $0x1f8] sm:$0xf]
        %v346 = vld [vmem:[#allocation4 + $0x1fc] sm:$0xf]
        %v347 = vld [vmem:[%s2] sm:$0x1]
        %v349 = vlaneseq
        %v350 = vshrl.u32 %v349, 7
        %v351 = vsub.s32 0, %v350
        %v352 = vrot.slane %v347, %v351
        %v482 = vunpack.c.l.b16 %v219
        %v483 = vunpack.c.l.b16 %v220
        %v484 = vunpack.c.l.b16 %v221
        %v485 = vunpack.c.l.b16 %v222
        %v486 = vunpack.c.l.b16 %v223
        %v487 = vunpack.c.l.b16 %v224
        %v488 = vunpack.c.l.b16 %v225
        %v489 = vunpack.c.l.b16 %v226
        %v490 = vunpack.c.l.b16 %v227
        %v491 = vunpack.c.l.b16 %v228
        %v492 = vunpack.c.l.b16 %v229
        %v493 = vunpack.c.l.b16 %v230
        %v494 = vunpack.c.l.b16 %v231
        %v495 = vunpack.c.l.b16 %v232
        %v496 = vunpack.c.l.b16 %v233
        %v497 = vunpack.c.l.b16 %v234
        %v498 = vunpack.c.l.b16 %v235
        %v499 = vunpack.c.l.b16 %v236
        %v500 = vunpack.c.l.b16 %v237
        %v501 = vunpack.c.l.b16 %v238
        %v502 = vunpack.c.l.b16 %v239
        %v503 = vunpack.c.l.b16 %v240
        %v504 = vunpack.c.l.b16 %v241
        %v505 = vunpack.c.l.b16 %v242
        %v506 = vunpack.c.l.b16 %v243
        %v507 = vunpack.c.l.b16 %v244
        %v508 = vunpack.c.l.b16 %v245
        %v509 = vunpack.c.l.b16 %v246
        %v510 = vunpack.c.l.b16 %v247
        %v511 = vunpack.c.l.b16 %v248
        %v512 = vunpack.c.l.b16 %v249
        %v513 = vunpack.c.l.b16 %v250
        %v514 = vunpack.c.l.b16 %v251
        %v515 = vunpack.c.l.b16 %v252
        %v516 = vunpack.c.l.b16 %v253
        %v517 = vunpack.c.l.b16 %v254
        %v518 = vunpack.c.l.b16 %v255
        %v519 = vunpack.c.l.b16 %v256
        %v520 = vunpack.c.l.b16 %v257
        %v521 = vunpack.c.l.b16 %v258
        %v522 = vunpack.c.l.b16 %v259
        %v523 = vunpack.c.l.b16 %v260
        %v524 = vunpack.c.l.b16 %v261
        %v525 = vunpack.c.l.b16 %v262
        %v526 = vunpack.c.l.b16 %v263
        %v527 = vunpack.c.l.b16 %v264
        %v528 = vunpack.c.l.b16 %v265
        %v529 = vunpack.c.l.b16 %v266
        %v530 = vunpack.c.l.b16 %v267
        %v531 = vunpack.c.l.b16 %v268
        %v532 = vunpack.c.l.b16 %v269
        %v533 = vunpack.c.l.b16 %v270
        %v534 = vunpack.c.l.b16 %v271
        %v535 = vunpack.c.l.b16 %v272
        %v536 = vunpack.c.l.b16 %v273
        %v537 = vunpack.c.l.b16 %v274
        %v538 = vunpack.c.l.b16 %v275
        %v539 = vunpack.c.l.b16 %v276
        %v540 = vunpack.c.l.b16 %v277
        %v541 = vunpack.c.l.b16 %v278
        %v542 = vunpack.c.l.b16 %v279
        %v543 = vunpack.c.l.b16 %v280
        %v544 = vunpack.c.l.b16 %v281
        %v545 = vunpack.c.l.b16 %v282
        %v546 = vunpack.c.l.b16 %v283
        %v547 = vunpack.c.l.b16 %v284
        %v548 = vunpack.c.l.b16 %v285
        %v549 = vunpack.c.l.b16 %v286
        %v550 = vunpack.c.l.b16 %v287
        %v551 = vunpack.c.l.b16 %v288
        %v552 = vunpack.c.l.b16 %v289
        %v553 = vunpack.c.l.b16 %v290
        %v554 = vunpack.c.l.b16 %v291
        %v555 = vunpack.c.l.b16 %v292
        %v556 = vunpack.c.l.b16 %v293
        %v557 = vunpack.c.l.b16 %v294
        %v558 = vunpack.c.l.b16 %v295
        %v559 = vunpack.c.l.b16 %v296
        %v560 = vunpack.c.l.b16 %v297
        %v561 = vunpack.c.l.b16 %v298
        %v562 = vunpack.c.l.b16 %v299
        %v563 = vunpack.c.l.b16 %v300
        %v564 = vunpack.c.l.b16 %v301
        %v565 = vunpack.c.l.b16 %v302
        %v566 = vunpack.c.l.b16 %v303
        %v567 = vunpack.c.l.b16 %v304
        %v568 = vunpack.c.l.b16 %v305
        %v569 = vunpack.c.l.b16 %v306
        %v570 = vunpack.c.l.b16 %v307
        %v571 = vunpack.c.l.b16 %v308
        %v572 = vunpack.c.l.b16 %v309
        %v573 = vunpack.c.l.b16 %v310
        %v574 = vunpack.c.l.b16 %v311
        %v575 = vunpack.c.l.b16 %v312
        %v576 = vunpack.c.l.b16 %v313
        %v577 = vunpack.c.l.b16 %v314
        %v578 = vunpack.c.l.b16 %v315
        %v579 = vunpack.c.l.b16 %v316
        %v580 = vunpack.c.l.b16 %v317
        %v581 = vunpack.c.l.b16 %v318
        %v582 = vunpack.c.l.b16 %v319
        %v583 = vunpack.c.l.b16 %v320
        %v584 = vunpack.c.l.b16 %v321
        %v585 = vunpack.c.l.b16 %v322
        %v586 = vunpack.c.l.b16 %v323
        %v587 = vunpack.c.l.b16 %v324
        %v588 = vunpack.c.l.b16 %v325
        %v589 = vunpack.c.l.b16 %v326
        %v590 = vunpack.c.l.b16 %v327
        %v591 = vunpack.c.l.b16 %v328
        %v592 = vunpack.c.l.b16 %v329
        %v593 = vunpack.c.l.b16 %v330
        %v594 = vunpack.c.l.b16 %v331
        %v595 = vunpack.c.l.b16 %v332
        %v596 = vunpack.c.l.b16 %v333
        %v597 = vunpack.c.l.b16 %v334
        %v598 = vunpack.c.l.b16 %v335
        %v599 = vunpack.c.l.b16 %v336
        %v600 = vunpack.c.l.b16 %v337
        %v601 = vunpack.c.l.b16 %v338
        %v602 = vunpack.c.l.b16 %v339
        %v603 = vunpack.c.l.b16 %v340
        %v604 = vunpack.c.l.b16 %v341
        %v605 = vunpack.c.l.b16 %v342
        %v606 = vunpack.c.l.b16 %v343
        %v607 = vunpack.c.l.b16 %v344
        %v608 = vunpack.c.l.b16 %v345
        %v609 = vunpack.c.l.b16 %v346
        %v610 = vpack.c.b16 %v483, %v482
        %v611 = vpack.c.b16 %v485, %v484
        %v612 = vpack.c.b16 %v487, %v486
        %v613 = vpack.c.b16 %v489, %v488
        %v614 = vpack.c.b16 %v491, %v490
        %v615 = vpack.c.b16 %v493, %v492
        %v616 = vpack.c.b16 %v495, %v494
        %v617 = vpack.c.b16 %v497, %v496
        %v618 = vpack.c.b16 %v499, %v498
        %v619 = vpack.c.b16 %v501, %v500
        %v620 = vpack.c.b16 %v503, %v502
        %v621 = vpack.c.b16 %v505, %v504
        %v622 = vpack.c.b16 %v507, %v506
        %v623 = vpack.c.b16 %v509, %v508
        %v624 = vpack.c.b16 %v511, %v510
        %v625 = vpack.c.b16 %v513, %v512
        %v626 = vpack.c.b16 %v515, %v514
        %v627 = vpack.c.b16 %v517, %v516
        %v628 = vpack.c.b16 %v519, %v518
        %v629 = vpack.c.b16 %v521, %v520
        %v630 = vpack.c.b16 %v523, %v522
        %v631 = vpack.c.b16 %v525, %v524
        %v632 = vpack.c.b16 %v527, %v526
        %v633 = vpack.c.b16 %v529, %v528
        %v634 = vpack.c.b16 %v531, %v530
        %v635 = vpack.c.b16 %v533, %v532
        %v636 = vpack.c.b16 %v535, %v534
        %v637 = vpack.c.b16 %v537, %v536
        %v638 = vpack.c.b16 %v539, %v538
        %v639 = vpack.c.b16 %v541, %v540
        %v640 = vpack.c.b16 %v543, %v542
        %v641 = vpack.c.b16 %v545, %v544
        %v642 = vpack.c.b16 %v547, %v546
        %v643 = vpack.c.b16 %v549, %v548
        %v644 = vpack.c.b16 %v551, %v550
        %v645 = vpack.c.b16 %v553, %v552
        %v646 = vpack.c.b16 %v555, %v554
        %v647 = vpack.c.b16 %v557, %v556
        %v648 = vpack.c.b16 %v559, %v558
        %v649 = vpack.c.b16 %v561, %v560
        %v650 = vpack.c.b16 %v563, %v562
        %v651 = vpack.c.b16 %v565, %v564
        %v652 = vpack.c.b16 %v567, %v566
        %v653 = vpack.c.b16 %v569, %v568
        %v654 = vpack.c.b16 %v571, %v570
        %v655 = vpack.c.b16 %v573, %v572
        %v656 = vpack.c.b16 %v575, %v574
        %v657 = vpack.c.b16 %v577, %v576
        %v658 = vpack.c.b16 %v579, %v578
        %v659 = vpack.c.b16 %v581, %v580
        %v660 = vpack.c.b16 %v583, %v582
        %v661 = vpack.c.b16 %v585, %v584
        %v662 = vpack.c.b16 %v587, %v586
        %v663 = vpack.c.b16 %v589, %v588
        %v664 = vpack.c.b16 %v591, %v590
        %v665 = vpack.c.b16 %v593, %v592
        %v666 = vpack.c.b16 %v595, %v594
        %v667 = vpack.c.b16 %v597, %v596
        %v668 = vpack.c.b16 %v599, %v598
        %v669 = vpack.c.b16 %v601, %v600
        %v670 = vpack.c.b16 %v603, %v602
        %v671 = vpack.c.b16 %v605, %v604
        %v672 = vpack.c.b16 %v607, %v606
        %v673 = vpack.c.b16 %v609, %v608
        %738 = vmatprep.subr.bf16.mxu0 0
        %739 = vmatpush1.bf16.msra.mxu0 %v617
        %740 = vmatprep.subr.bf16.mxu0 0
        %741 = vmatpush1.bf16.msra.mxu0 %v616
        %742 = vmatprep.subr.bf16.mxu0 0
        %743 = vmatpush1.bf16.msra.mxu0 %v615
        %744 = vmatprep.subr.bf16.mxu0 0
        %745 = vmatpush1.bf16.msra.mxu0 %v614
        %746 = vmatprep.subr.bf16.mxu0 0
        %747 = vmatpush1.bf16.msra.mxu0 %v613
        %748 = vmatprep.subr.bf16.mxu0 0
        %749 = vmatpush1.bf16.msra.mxu0 %v612
        %750 = vmatprep.subr.bf16.mxu0 0
        %751 = vmatpush1.bf16.msra.mxu0 %v611
        %752 = vmatprep.subr.bf16.mxu0 0
        %753 = vmatpush1.bf16.msra.mxu0 %v610
        %754 = vmatprep.subr.bf16.mxu0 0
        %755 = vmatpush2.bf16.msra.mxu0 %v625
        %756 = vmatprep.subr.bf16.mxu0 0
        %757 = vmatpush2.bf16.msra.mxu0 %v624
        %758 = vmatprep.subr.bf16.mxu0 0
        %759 = vmatpush2.bf16.msra.mxu0 %v623
        %760 = vmatprep.subr.bf16.mxu0 0
        %761 = vmatpush2.bf16.msra.mxu0 %v622
        %762 = vmatprep.subr.bf16.mxu0 0
        %763 = vmatpush2.bf16.msra.mxu0 %v621
        %764 = vmatprep.subr.bf16.mxu0 0
        %765 = vmatpush2.bf16.msra.mxu0 %v620
        %766 = vmatprep.subr.bf16.mxu0 0
        %767 = vmatpush2.bf16.msra.mxu0 %v619
        %768 = vmatprep.subr.bf16.mxu0 0
        %769 = vmatpush2.bf16.msra.mxu0 %v618
        %770 = vmatprep.mubr.bf16.mxu0 %v212
        %771 = vmatmul.mubr.bf16.gmra.mxu0 %v211
        %v772 = vpop.f32.mrf.mxu0
        %v773 = vadd.f32 %v352, %v772
        %v774 = vpop.f32.mrf.mxu0
        %v775 = vpop.f32.mrf.mxu0
        %v776 = vpop.f32.mrf.mxu0
        %777 = vdwg.mxu0
        %778 = vmatprep.subr.bf16.mxu0 0
        %779 = vmatpush1.bf16.msra.mxu0 %v633
        %780 = vmatprep.subr.bf16.mxu0 0
        %781 = vmatpush1.bf16.msra.mxu0 %v632
        %782 = vmatprep.subr.bf16.mxu0 0
        %783 = vmatpush1.bf16.msra.mxu0 %v631
        %784 = vmatprep.subr.bf16.mxu0 0
        %785 = vmatpush1.bf16.msra.mxu0 %v630
        %786 = vmatprep.subr.bf16.mxu0 0
        %787 = vmatpush1.bf16.msra.mxu0 %v629
        %788 = vmatprep.subr.bf16.mxu0 0
        %789 = vmatpush1.bf16.msra.mxu0 %v628
        %790 = vmatprep.subr.bf16.mxu0 0
        %791 = vmatpush1.bf16.msra.mxu0 %v627
        %792 = vmatprep.subr.bf16.mxu0 0
        %793 = vmatpush1.bf16.msra.mxu0 %v626
        %794 = vmatprep.subr.bf16.mxu0 0
        %795 = vmatpush2.bf16.msra.mxu0 %v641
        %796 = vmatprep.subr.bf16.mxu0 0
        %797 = vmatpush2.bf16.msra.mxu0 %v640
        %798 = vmatprep.subr.bf16.mxu0 0
        %799 = vmatpush2.bf16.msra.mxu0 %v639
        %800 = vmatprep.subr.bf16.mxu0 0
        %801 = vmatpush2.bf16.msra.mxu0 %v638
        %802 = vmatprep.subr.bf16.mxu0 0
        %803 = vmatpush2.bf16.msra.mxu0 %v637
        %804 = vmatprep.subr.bf16.mxu0 0
        %805 = vmatpush2.bf16.msra.mxu0 %v636
        %806 = vmatprep.subr.bf16.mxu0 0
        %807 = vmatpush2.bf16.msra.mxu0 %v635
        %808 = vmatprep.subr.bf16.mxu0 0
        %809 = vmatpush2.bf16.msra.mxu0 %v634
        %810 = vmatprep.mubr.bf16.mxu0 %v214
        %811 = vmatmul.mubr.bf16.gmra.mxu0 %v213
        %v812 = vpop.f32.mrf.mxu0
        %v813 = vadd.f32 %v773, %v812
        %v814 = vpop.f32.mrf.mxu0
        %v815 = vpop.f32.mrf.mxu0
        %v816 = vpop.f32.mrf.mxu0
        %817 = vdwg.mxu0
        %818 = vmatprep.subr.bf16.mxu0 0
        %819 = vmatpush1.bf16.msra.mxu0 %v649
        %820 = vmatprep.subr.bf16.mxu0 0
        %821 = vmatpush1.bf16.msra.mxu0 %v648
        %822 = vmatprep.subr.bf16.mxu0 0
        %823 = vmatpush1.bf16.msra.mxu0 %v647
        %824 = vmatprep.subr.bf16.mxu0 0
        %825 = vmatpush1.bf16.msra.mxu0 %v646
        %826 = vmatprep.subr.bf16.mxu0 0
        %827 = vmatpush1.bf16.msra.mxu0 %v645
        %828 = vmatprep.subr.bf16.mxu0 0
        %829 = vmatpush1.bf16.msra.mxu0 %v644
        %830 = vmatprep.subr.bf16.mxu0 0
        %831 = vmatpush1.bf16.msra.mxu0 %v643
        %832 = vmatprep.subr.bf16.mxu0 0
        %833 = vmatpush1.bf16.msra.mxu0 %v642
        %834 = vmatprep.subr.bf16.mxu0 0
        %835 = vmatpush2.bf16.msra.mxu0 %v657
        %836 = vmatprep.subr.bf16.mxu0 0
        %837 = vmatpush2.bf16.msra.mxu0 %v656
        %838 = vmatprep.subr.bf16.mxu0 0
        %839 = vmatpush2.bf16.msra.mxu0 %v655
        %840 = vmatprep.subr.bf16.mxu0 0
        %841 = vmatpush2.bf16.msra.mxu0 %v654
        %842 = vmatprep.subr.bf16.mxu0 0
        %843 = vmatpush2.bf16.msra.mxu0 %v653
        %844 = vmatprep.subr.bf16.mxu0 0
        %845 = vmatpush2.bf16.msra.mxu0 %v652
        %846 = vmatprep.subr.bf16.mxu0 0
        %847 = vmatpush2.bf16.msra.mxu0 %v651
        %848 = vmatprep.subr.bf16.mxu0 0
        %849 = vmatpush2.bf16.msra.mxu0 %v650
        %850 = vmatprep.mubr.bf16.mxu0 %v216
        %851 = vmatmul.mubr.bf16.gmra.mxu0 %v215
        %v852 = vpop.f32.mrf.mxu0
        %v853 = vadd.f32 %v813, %v852
        %v854 = vpop.f32.mrf.mxu0
        %v855 = vpop.f32.mrf.mxu0
        %v856 = vpop.f32.mrf.mxu0
        %857 = vdwg.mxu0
        %858 = vmatprep.subr.bf16.mxu0 0
        %859 = vmatpush1.bf16.msra.mxu0 %v665
        %860 = vmatprep.subr.bf16.mxu0 0
        %861 = vmatpush1.bf16.msra.mxu0 %v664
        %862 = vmatprep.subr.bf16.mxu0 0
        %863 = vmatpush1.bf16.msra.mxu0 %v663
        %864 = vmatprep.subr.bf16.mxu0 0
        %865 = vmatpush1.bf16.msra.mxu0 %v662
        %866 = vmatprep.subr.bf16.mxu0 0
        %867 = vmatpush1.bf16.msra.mxu0 %v661
        %868 = vmatprep.subr.bf16.mxu0 0
        %869 = vmatpush1.bf16.msra.mxu0 %v660
        %870 = vmatprep.subr.bf16.mxu0 0
        %871 = vmatpush1.bf16.msra.mxu0 %v659
        %872 = vmatprep.subr.bf16.mxu0 0
        %873 = vmatpush1.bf16.msra.mxu0 %v658
        %874 = vmatprep.subr.bf16.mxu0 0
        %875 = vmatpush2.bf16.msra.mxu0 %v673
        %876 = vmatprep.subr.bf16.mxu0 0
        %877 = vmatpush2.bf16.msra.mxu0 %v672
        %878 = vmatprep.subr.bf16.mxu0 0
        %879 = vmatpush2.bf16.msra.mxu0 %v671
        %880 = vmatprep.subr.bf16.mxu0 0
        %881 = vmatpush2.bf16.msra.mxu0 %v670
        %882 = vmatprep.subr.bf16.mxu0 0
        %883 = vmatpush2.bf16.msra.mxu0 %v669
        %884 = vmatprep.subr.bf16.mxu0 0
        %885 = vmatpush2.bf16.msra.mxu0 %v668
        %886 = vmatprep.subr.bf16.mxu0 0
        %887 = vmatpush2.bf16.msra.mxu0 %v667
        %888 = vmatprep.subr.bf16.mxu0 0
        %889 = vmatpush2.bf16.msra.mxu0 %v666
        %890 = vmatprep.mubr.bf16.mxu0 %v218
        %891 = vmatmul.mubr.bf16.gmra.mxu0 %v217
        %v892 = vpop.f32.mrf.mxu0
        %v893 = vadd.f32 %v853, %v892
        %v894 = vpop.f32.mrf.mxu0
        %v895 = vpop.f32.mrf.mxu0
        %v896 = vpop.f32.mrf.mxu0
        %897 = vdwg.mxu0
        %v898 = vmul.f32 %v893, 0.999995
        %v899 = vadd.f32 %v898, 0.0
        %vm900 = vcmp.gt.f32.partialorder %v899, 0.0
        %v901 = vmin.f32 %v899, 0.0
        %v902 = vmul.f32 %v901, 1.442695
        %v903 = vpow.pop %v902
        %v904 = vsub.f32 %v903, 1.0
        %v905 = vmul.f32 %v904, 1.6732632
        %v906 = vsel %vm900, %v899, %v905
        %v907 = vmul.f32 %v906, 1.050701
        %vm908 = vcmask 261120
        %909 = vst.msk [vmem:[%s201] sm:$0xff] %vm908, %v907
        %p910 = scmp.lt.s32.totalorder %s18, 1
        %s911 = scalar_select %p910, %s18, 1
        %s912 = smul.addr %s911, 8
        %s913 = scalar_lea.vmem %s3, %s912
        // Predicated region
        $region41: #{_lambda_.3} parent=31 // pred_check
          %p914 = pneg %p104
        $region42: #{_lambda_.3} parent=31 // pred_check_branch
          %916 = sbr.rel (%p914) target = $region44
        $region43: #{_lambda_.3} parent=31 // pred_region
          _
        $region44: #{_lambda_.3} parent=31 // pred_fallthru
          _
      $region32: #{_lambda_.3} parent=5 // pred_fallthru
        _
      %p917 = scmp.le.s32.totalorder 2, %s13
      // Predicated region
      $region45: #{_lambda_.3} parent=5 // pred_check
        %p918 = pneg %p917
      $region46: #{_lambda_.3} parent=5 // pred_check_branch
        %920 = sbr.rel (%p918) target = $region48
      $region47: #{_lambda_.3} parent=5 // pred_region
        %s921 = ssub.s32 %s13, 2
        // Predicated region
        $region49: #{_lambda_.3} parent=47 // pred_check
          %p922 = pneg %p110
        $region50: #{_lambda_.3} parent=47 // pred_check_branch
          %924 = sbr.rel (%p922) target = $region52
        $region51: #{_lambda_.3} parent=47 // pred_region
          %p925 = scmp.lt.s32.totalorder %s19, 1
          %s926 = scalar_select %p925, %s19, 1
          %s927 = smul.addr %s926, 8
          %s928 = scalar_lea.vmem %s3, %s927
        $region52: #{_lambda_.3} parent=47 // pred_fallthru
          _
      $region48: #{_lambda_.3} parent=5 // pred_fallthru
        _
    $region6: #{_lambda_.3} parent=1 // loop_footer
      %s17 = sadd.s32 1, %s13
    $region7: #{_lambda_.3} parent=1 // loop_footer_branch
      %12 = sbr.rel target = $region3
    $region8: #{_lambda_.3} parent=1 // loop_exit
      _
    %929 = vsyncpa [#allocation3], 1
    %s930 = scalar_lea.sflag [#allocation3], 1
    %931 = vsyncpa %s930, 1
    %932 = vsyncpa [#allocation5], 1

// kernel: _lambda_.4
$region0: #{_lambda_.4}
  #allocation0 [shape = 'u32[]', space=smem, size = 0x4, offset = 0x4, fixed_abs, tag = 'smem constant byte address 0x4 - core index']
  #allocation1 [shape = 'u32[144,128]{1,0:T(1,128)}', space=vmem, size = 0x12000, scoped, tag = 'internal scratch']
  #allocation2 [shape = 'f32[32,64]{1,0:T(8,128)}', space=vmem, size = 0x4000, scoped, tag = 'scratch operand']
  %s0 = inlined_call_operand.smem [shape: u32[32], index: -1, kind: input, shape index: {}]
  %s1 = sld [smem:[%s0]]
  %s2 = scalar_lea.smem %s0, 1
  %s3 = sld [smem:[%s2]]
  %s4 = scalar_lea.smem %s0, 2
  %s5 = sld [smem:[%s4]]
  %s6 = scalar_lea.smem %s0, 3
  %s7 = sld [smem:[%s6]]
  %s8 = scalar_lea.smem %s0, 4
  %s9 = sld [smem:[%s8]]
  %s10 = scalar_lea.smem %s0, 5
  %s11 = sld [smem:[%s10]]
  %s12 = scalar_lea.smem %s0, 6
  %s13 = sld [smem:[%s12]]
  %s14 = scalar_lea.smem %s0, 7
  %s15 = sld [smem:[%s14]]
  %s16 = scalar_lea.smem %s0, 8
  %s17 = sld [smem:[%s16]]
  %s18 = scalar_lea.smem %s0, 9
  %s19 = sld [smem:[%s18]]
  %s20 = scalar_lea.smem %s0, 10
  %s21 = sld [smem:[%s20]]
  %s22 = scalar_lea.smem %s0, 11
  %s23 = sld [smem:[%s22]]
  %s24 = scalar_lea.smem %s0, 12
  %s25 = sld [smem:[%s24]]
  %s26 = scalar_lea.smem %s0, 13
  %s27 = sld [smem:[%s26]]
  %s28 = scalar_lea.smem %s0, 14
  %s29 = sld [smem:[%s28]]
  %s30 = scalar_lea.smem %s0, 15
  %s31 = sld [smem:[%s30]]
  %s32 = scalar_lea.smem %s0, 16
  %s33 = sld [smem:[%s32]]
  %s34 = scalar_lea.smem %s0, 17
  %s35 = sld [smem:[%s34]]
  %s36 = scalar_lea.smem %s0, 18
  %s37 = sld [smem:[%s36]]
  %s38 = scalar_lea.smem %s0, 19
  %s39 = sld [smem:[%s38]]
  %s40 = scalar_lea.smem %s0, 20
  %s41 = sld [smem:[%s40]]
  %s42 = scalar_lea.smem %s0, 21
  %s43 = sld [smem:[%s42]]
  %s44 = scalar_lea.smem %s0, 22
  %s45 = sld [smem:[%s44]]
  %s46 = scalar_lea.smem %s0, 23
  %s47 = sld [smem:[%s46]]
  %s48 = scalar_lea.smem %s0, 24
  %s49 = sld [smem:[%s48]]
  %s50 = scalar_lea.smem %s0, 25
  %s51 = sld [smem:[%s50]]
  %s52 = scalar_lea.smem %s0, 26
  %s53 = sld [smem:[%s52]]
  %s54 = scalar_lea.smem %s0, 27
  %s55 = sld [smem:[%s54]]
  %s56 = scalar_lea.smem %s0, 28
  %s57 = sld [smem:[%s56]]
  %s58 = scalar_lea.smem %s0, 29
  %s59 = sld [smem:[%s58]]
  %s60 = scalar_lea.smem %s0, 30
  %s61 = sld [smem:[%s60]]
  %s62 = scalar_lea.smem %s0, 31
  %s63 = sld [smem:[%s62]]
  %s64 = sld [smem:[#allocation0]]
  $region157: #{_lambda_.4} parent=0
    _
  %s66 = ssub.s32 1, %s64
  %s67 = scalar_select 0, %s66, %s64
  loop: start=0, step=1, limit=4
  $region2: #{_lambda_.4} parent=0 // loop_pre_header
    _
  $region3: #{_lambda_.4} parent=0 // loop_header
    %s69 = sphi 0, %s73
    %p70 = scmp.ge.s32.totalorder %s69, 4
    %s79 = sphi 0, %s81
    %s82 = sphi 0, %s79
    %s83 = sphi 0, %s82
    %s99 = sphi 0, %s83
    %s103 = sphi 0, %s103
    %s105 = sphi 0, %s103
    %s106 = sphi 0, %s105
    %s120 = sphi 0, %s106
    %s124 = sphi 0, %s124
    %s126 = sphi 0, %s124
    %s127 = sphi 0, %s126
    %s141 = sphi 0, %s127
    %s145 = sphi 0, %s145
    %s147 = sphi 0, %s145
    %s148 = sphi 0, %s147
    %s162 = sphi 0, %s148
    %s166 = sphi 0, %s166
    %s168 = sphi 0, %s166
    %s169 = sphi 0, %s168
    %s183 = sphi 0, %s169
    %s187 = sphi 0, %s187
    %s189 = sphi 0, %s187
    %s190 = sphi 0, %s189
    %s204 = sphi 0, %s190
    %s208 = sphi 0, %s208
    %s210 = sphi 0, %s208
    %s211 = sphi 0, %s210
    %s225 = sphi 0, %s211
    %s229 = sphi 0, %s229
    %s231 = sphi 0, %s229
    %s232 = sphi 0, %s231
    %s246 = sphi 0, %s232
    %s250 = sphi 0, %s250
    %s252 = sphi 0, %s250
    %s253 = sphi 0, %s252
    %s267 = sphi 0, %s253
    %s271 = sphi 0, %s271
    %s273 = sphi 0, %s271
    %s274 = sphi 0, %s273
    %s288 = sphi 0, %s274
    %s292 = sphi 0, %s292
    %s294 = sphi 0, %s292
    %s295 = sphi 0, %s294
    %s309 = sphi 0, %s295
    %s313 = sphi 0, %s313
    %s315 = sphi 0, %s313
    %s316 = sphi 0, %s315
    %s330 = sphi 0, %s316
    %s334 = sphi 0, %s334
    %s336 = sphi 0, %s334
    %s337 = sphi 0, %s336
    %s351 = sphi 0, %s337
    %s355 = sphi 0, %s355
    %s357 = sphi 0, %s355
    %s358 = sphi 0, %s357
    %s372 = sphi 0, %s358
    %s376 = sphi 0, %s376
    %s378 = sphi 0, %s376
    %s379 = sphi 0, %s378
    %s393 = sphi 0, %s379
    %s397 = sphi 0, %s397
    %s399 = sphi 0, %s397
    %s400 = sphi 0, %s399
    %s414 = sphi 0, %s400
    %s418 = sphi 0, %s418
    %s420 = sphi 0, %s418
    %s421 = sphi 0, %s420
    %s435 = sphi 0, %s421
    %s439 = sphi 0, %s439
    %s441 = sphi 0, %s439
    %s442 = sphi 0, %s441
    %s456 = sphi 0, %s442
    %s460 = sphi 0, %s460
    %s462 = sphi 0, %s460
    %s463 = sphi 0, %s462
    %s477 = sphi 0, %s463
    %s481 = sphi 0, %s481
    %s483 = sphi 0, %s481
    %s484 = sphi 0, %s483
    %s498 = sphi 0, %s484
    %s502 = sphi 0, %s502
    %s504 = sphi 0, %s502
    %s505 = sphi 0, %s504
    %s519 = sphi 0, %s505
    %s523 = sphi 0, %s523
    %s525 = sphi 0, %s523
    %s526 = sphi 0, %s525
    %s540 = sphi 0, %s526
    %s544 = sphi 0, %s544
    %s546 = sphi 0, %s544
    %s547 = sphi 0, %s546
    %s561 = sphi 0, %s547
    %s565 = sphi 0, %s565
    %s567 = sphi 0, %s565
    %s568 = sphi 0, %s567
    %s582 = sphi 0, %s568
    %s586 = sphi 0, %s586
    %s588 = sphi 0, %s586
    %s589 = sphi 0, %s588
    %s603 = sphi 0, %s589
    %s607 = sphi 0, %s607
    %s609 = sphi 0, %s607
    %s610 = sphi 0, %s609
    %s624 = sphi 0, %s610
    %s628 = sphi 0, %s628
    %s630 = sphi 0, %s628
    %s631 = sphi 0, %s630
    %s645 = sphi 0, %s631
    %s649 = sphi 0, %s649
    %s651 = sphi 0, %s649
    %s652 = sphi 0, %s651
    %s666 = sphi 0, %s652
    %s670 = sphi 0, %s670
    %s672 = sphi 0, %s670
    %s673 = sphi 0, %s672
    %s687 = sphi 0, %s673
    %s691 = sphi 0, %s691
    %s693 = sphi 0, %s691
    %s694 = sphi 0, %s693
    %s708 = sphi 0, %s694
    %s712 = sphi 0, %s712
    %s714 = sphi 0, %s712
    %s715 = sphi 0, %s714
    %s729 = sphi 0, %s715
    %s735 = sphi 0, %s737
    %s738 = sphi 0, %s735
    %s739 = sphi 0, %s738
    %s755 = sphi 0, %s739
  $region4: #{_lambda_.4} parent=0 // loop_header_branch
    %72 = sbr.rel (%p70) target = $region8
  $region5: #{_lambda_.4} parent=0 // loop_body
    %s74 = ssub.s32 %s69, 1
    %s75 = ssub.s32 %s69, 2
    %s76 = sadd.s32 %s69, 1
    %s77 = ssub.s32 %s69, %s76
    %p78 = scmp.eq.s32.totalorder %s77, 0
    %s80 = sadd.s32 %s79, 1
    %s81 = scalar_select %p78, %s79, %s80
    %p84 = pneg %p78
    %p85 = scmp.eq.s32.totalorder %s69, 1
    %p86 = por %p84, %p85
    %p87 = scmp.ne.s32.totalorder %s79, %s82
    %p88 = scmp.eq.s32.totalorder %s69, 0
    %p89 = por %p87, %p88
    %p90 = scmp.ne.s32.totalorder %s79, %s82
    %p91 = scmp.eq.s32.totalorder %s74, 1
    %p92 = por %p90, %p91
    %p93 = scmp.ne.s32.totalorder %s82, %s83
    %p94 = scmp.eq.s32.totalorder %s74, 0
    %p95 = por %p93, %p94
    %p96 = scmp.ne.s32.totalorder %s82, %s83
    %p97 = scmp.eq.s32.totalorder %s75, 1
    %p98 = por %p96, %p97
    %p100 = scmp.ne.s32.totalorder %s83, %s99
    %p101 = scmp.eq.s32.totalorder %s75, 0
    %p102 = por %p100, %p101
    %s104 = sadd.s32 %s103, 1
    %p107 = scmp.eq.s32.totalorder %s69, 1
    %p108 = scmp.ne.s32.totalorder %s103, %s105
    %p109 = scmp.eq.s32.totalorder %s69, 0
    %p110 = por %p108, %p109
    %p111 = scmp.ne.s32.totalorder %s103, %s105
    %p112 = scmp.eq.s32.totalorder %s74, 1
    %p113 = por %p111, %p112
    %p114 = scmp.ne.s32.totalorder %s105, %s106
    %p115 = scmp.eq.s32.totalorder %s74, 0
    %p116 = por %p114, %p115
    %p117 = scmp.ne.s32.totalorder %s105, %s106
    %p118 = scmp.eq.s32.totalorder %s75, 1
    %p119 = por %p117, %p118
    %p121 = scmp.ne.s32.totalorder %s106, %s120
    %p122 = scmp.eq.s32.totalorder %s75, 0
    %p123 = por %p121, %p122
    %s125 = sadd.s32 %s124, 1
    %p128 = scmp.eq.s32.totalorder %s69, 1
    %p129 = scmp.ne.s32.totalorder %s124, %s126
    %p130 = scmp.eq.s32.totalorder %s69, 0
    %p131 = por %p129, %p130
    %p132 = scmp.ne.s32.totalorder %s124, %s126
    %p133 = scmp.eq.s32.totalorder %s74, 1
    %p134 = por %p132, %p133
    %p135 = scmp.ne.s32.totalorder %s126, %s127
    %p136 = scmp.eq.s32.totalorder %s74, 0
    %p137 = por %p135, %p136
    %p138 = scmp.ne.s32.totalorder %s126, %s127
    %p139 = scmp.eq.s32.totalorder %s75, 1
    %p140 = por %p138, %p139
    %p142 = scmp.ne.s32.totalorder %s127, %s141
    %p143 = scmp.eq.s32.totalorder %s75, 0
    %p144 = por %p142, %p143
    %s146 = sadd.s32 %s145, 1
    %p149 = scmp.eq.s32.totalorder %s69, 1
    %p150 = scmp.ne.s32.totalorder %s145, %s147
    %p151 = scmp.eq.s32.totalorder %s69, 0
    %p152 = por %p150, %p151
    %p153 = scmp.ne.s32.totalorder %s145, %s147
    %p154 = scmp.eq.s32.totalorder %s74, 1
    %p155 = por %p153, %p154
    %p156 = scmp.ne.s32.totalorder %s147, %s148
    %p157 = scmp.eq.s32.totalorder %s74, 0
    %p158 = por %p156, %p157
    %p159 = scmp.ne.s32.totalorder %s147, %s148
    %p160 = scmp.eq.s32.totalorder %s75, 1
    %p161 = por %p159, %p160
    %p163 = scmp.ne.s32.totalorder %s148, %s162
    %p164 = scmp.eq.s32.totalorder %s75, 0
    %p165 = por %p163, %p164
    %s167 = sadd.s32 %s166, 1
    %p170 = scmp.eq.s32.totalorder %s69, 1
    %p171 = scmp.ne.s32.totalorder %s166, %s168
    %p172 = scmp.eq.s32.totalorder %s69, 0
    %p173 = por %p171, %p172
    %p174 = scmp.ne.s32.totalorder %s166, %s168
    %p175 = scmp.eq.s32.totalorder %s74, 1
    %p176 = por %p174, %p175
    %p177 = scmp.ne.s32.totalorder %s168, %s169
    %p178 = scmp.eq.s32.totalorder %s74, 0
    %p179 = por %p177, %p178
    %p180 = scmp.ne.s32.totalorder %s168, %s169
    %p181 = scmp.eq.s32.totalorder %s75, 1
    %p182 = por %p180, %p181
    %p184 = scmp.ne.s32.totalorder %s169, %s183
    %p185 = scmp.eq.s32.totalorder %s75, 0
    %p186 = por %p184, %p185
    %s188 = sadd.s32 %s187, 1
    %p191 = scmp.eq.s32.totalorder %s69, 1
    %p192 = scmp.ne.s32.totalorder %s187, %s189
    %p193 = scmp.eq.s32.totalorder %s69, 0
    %p194 = por %p192, %p193
    %p195 = scmp.ne.s32.totalorder %s187, %s189
    %p196 = scmp.eq.s32.totalorder %s74, 1
    %p197 = por %p195, %p196
    %p198 = scmp.ne.s32.totalorder %s189, %s190
    %p199 = scmp.eq.s32.totalorder %s74, 0
    %p200 = por %p198, %p199
    %p201 = scmp.ne.s32.totalorder %s189, %s190
    %p202 = scmp.eq.s32.totalorder %s75, 1
    %p203 = por %p201, %p202
    %p205 = scmp.ne.s32.totalorder %s190, %s204
    %p206 = scmp.eq.s32.totalorder %s75, 0
    %p207 = por %p205, %p206
    %s209 = sadd.s32 %s208, 1
    %p212 = scmp.eq.s32.totalorder %s69, 1
    %p213 = scmp.ne.s32.totalorder %s208, %s210
    %p214 = scmp.eq.s32.totalorder %s69, 0
    %p215 = por %p213, %p214
    %p216 = scmp.ne.s32.totalorder %s208, %s210
    %p217 = scmp.eq.s32.totalorder %s74, 1
    %p218 = por %p216, %p217
    %p219 = scmp.ne.s32.totalorder %s210, %s211
    %p220 = scmp.eq.s32.totalorder %s74, 0
    %p221 = por %p219, %p220
    %p222 = scmp.ne.s32.totalorder %s210, %s211
    %p223 = scmp.eq.s32.totalorder %s75, 1
    %p224 = por %p222, %p223
    %p226 = scmp.ne.s32.totalorder %s211, %s225
    %p227 = scmp.eq.s32.totalorder %s75, 0
    %p228 = por %p226, %p227
    %s230 = sadd.s32 %s229, 1
    %p233 = scmp.eq.s32.totalorder %s69, 1
    %p234 = scmp.ne.s32.totalorder %s229, %s231
    %p235 = scmp.eq.s32.totalorder %s69, 0
    %p236 = por %p234, %p235
    %p237 = scmp.ne.s32.totalorder %s229, %s231
    %p238 = scmp.eq.s32.totalorder %s74, 1
    %p239 = por %p237, %p238
    %p240 = scmp.ne.s32.totalorder %s231, %s232
    %p241 = scmp.eq.s32.totalorder %s74, 0
    %p242 = por %p240, %p241
    %p243 = scmp.ne.s32.totalorder %s231, %s232
    %p244 = scmp.eq.s32.totalorder %s75, 1
    %p245 = por %p243, %p244
    %p247 = scmp.ne.s32.totalorder %s232, %s246
    %p248 = scmp.eq.s32.totalorder %s75, 0
    %p249 = por %p247, %p248
    %s251 = sadd.s32 %s250, 1
    %p254 = scmp.eq.s32.totalorder %s69, 1
    %p255 = scmp.ne.s32.totalorder %s250, %s252
    %p256 = scmp.eq.s32.totalorder %s69, 0
    %p257 = por %p255, %p256
    %p258 = scmp.ne.s32.totalorder %s250, %s252
    %p259 = scmp.eq.s32.totalorder %s74, 1
    %p260 = por %p258, %p259
    %p261 = scmp.ne.s32.totalorder %s252, %s253
    %p262 = scmp.eq.s32.totalorder %s74, 0
    %p263 = por %p261, %p262
    %p264 = scmp.ne.s32.totalorder %s252, %s253
    %p265 = scmp.eq.s32.totalorder %s75, 1
    %p266 = por %p264, %p265
    %p268 = scmp.ne.s32.totalorder %s253, %s267
    %p269 = scmp.eq.s32.totalorder %s75, 0
    %p270 = por %p268, %p269
    %s272 = sadd.s32 %s271, 1
    %p275 = scmp.eq.s32.totalorder %s69, 1
    %p276 = scmp.ne.s32.totalorder %s271, %s273
    %p277 = scmp.eq.s32.totalorder %s69, 0
    %p278 = por %p276, %p277
    %p279 = scmp.ne.s32.totalorder %s271, %s273
    %p280 = scmp.eq.s32.totalorder %s74, 1
    %p281 = por %p279, %p280
    %p282 = scmp.ne.s32.totalorder %s273, %s274
    %p283 = scmp.eq.s32.totalorder %s74, 0
    %p284 = por %p282, %p283
    %p285 = scmp.ne.s32.totalorder %s273, %s274
    %p286 = scmp.eq.s32.totalorder %s75, 1
    %p287 = por %p285, %p286
    %p289 = scmp.ne.s32.totalorder %s274, %s288
    %p290 = scmp.eq.s32.totalorder %s75, 0
    %p291 = por %p289, %p290
    %s293 = sadd.s32 %s292, 1
    %p296 = scmp.eq.s32.totalorder %s69, 1
    %p297 = scmp.ne.s32.totalorder %s292, %s294
    %p298 = scmp.eq.s32.totalorder %s69, 0
    %p299 = por %p297, %p298
    %p300 = scmp.ne.s32.totalorder %s292, %s294
    %p301 = scmp.eq.s32.totalorder %s74, 1
    %p302 = por %p300, %p301
    %p303 = scmp.ne.s32.totalorder %s294, %s295
    %p304 = scmp.eq.s32.totalorder %s74, 0
    %p305 = por %p303, %p304
    %p306 = scmp.ne.s32.totalorder %s294, %s295
    %p307 = scmp.eq.s32.totalorder %s75, 1
    %p308 = por %p306, %p307
    %p310 = scmp.ne.s32.totalorder %s295, %s309
    %p311 = scmp.eq.s32.totalorder %s75, 0
    %p312 = por %p310, %p311
    %s314 = sadd.s32 %s313, 1
    %p317 = scmp.eq.s32.totalorder %s69, 1
    %p318 = scmp.ne.s32.totalorder %s313, %s315
    %p319 = scmp.eq.s32.totalorder %s69, 0
    %p320 = por %p318, %p319
    %p321 = scmp.ne.s32.totalorder %s313, %s315
    %p322 = scmp.eq.s32.totalorder %s74, 1
    %p323 = por %p321, %p322
    %p324 = scmp.ne.s32.totalorder %s315, %s316
    %p325 = scmp.eq.s32.totalorder %s74, 0
    %p326 = por %p324, %p325
    %p327 = scmp.ne.s32.totalorder %s315, %s316
    %p328 = scmp.eq.s32.totalorder %s75, 1
    %p329 = por %p327, %p328
    %p331 = scmp.ne.s32.totalorder %s316, %s330
    %p332 = scmp.eq.s32.totalorder %s75, 0
    %p333 = por %p331, %p332
    %s335 = sadd.s32 %s334, 1
    %p338 = scmp.eq.s32.totalorder %s69, 1
    %p339 = scmp.ne.s32.totalorder %s334, %s336
    %p340 = scmp.eq.s32.totalorder %s69, 0
    %p341 = por %p339, %p340
    %p342 = scmp.ne.s32.totalorder %s334, %s336
    %p343 = scmp.eq.s32.totalorder %s74, 1
    %p344 = por %p342, %p343
    %p345 = scmp.ne.s32.totalorder %s336, %s337
    %p346 = scmp.eq.s32.totalorder %s74, 0
    %p347 = por %p345, %p346
    %p348 = scmp.ne.s32.totalorder %s336, %s337
    %p349 = scmp.eq.s32.totalorder %s75, 1
    %p350 = por %p348, %p349
    %p352 = scmp.ne.s32.totalorder %s337, %s351
    %p353 = scmp.eq.s32.totalorder %s75, 0
    %p354 = por %p352, %p353
    %s356 = sadd.s32 %s355, 1
    %p359 = scmp.eq.s32.totalorder %s69, 1
    %p360 = scmp.ne.s32.totalorder %s355, %s357
    %p361 = scmp.eq.s32.totalorder %s69, 0
    %p362 = por %p360, %p361
    %p363 = scmp.ne.s32.totalorder %s355, %s357
    %p364 = scmp.eq.s32.totalorder %s74, 1
    %p365 = por %p363, %p364
    %p366 = scmp.ne.s32.totalorder %s357, %s358
    %p367 = scmp.eq.s32.totalorder %s74, 0
    %p368 = por %p366, %p367
    %p369 = scmp.ne.s32.totalorder %s357, %s358
    %p370 = scmp.eq.s32.totalorder %s75, 1
    %p371 = por %p369, %p370
    %p373 = scmp.ne.s32.totalorder %s358, %s372
    %p374 = scmp.eq.s32.totalorder %s75, 0
    %p375 = por %p373, %p374
    %s377 = sadd.s32 %s376, 1
    %p380 = scmp.eq.s32.totalorder %s69, 1
    %p381 = scmp.ne.s32.totalorder %s376, %s378
    %p382 = scmp.eq.s32.totalorder %s69, 0
    %p383 = por %p381, %p382
    %p384 = scmp.ne.s32.totalorder %s376, %s378
    %p385 = scmp.eq.s32.totalorder %s74, 1
    %p386 = por %p384, %p385
    %p387 = scmp.ne.s32.totalorder %s378, %s379
    %p388 = scmp.eq.s32.totalorder %s74, 0
    %p389 = por %p387, %p388
    %p390 = scmp.ne.s32.totalorder %s378, %s379
    %p391 = scmp.eq.s32.totalorder %s75, 1
    %p392 = por %p390, %p391
    %p394 = scmp.ne.s32.totalorder %s379, %s393
    %p395 = scmp.eq.s32.totalorder %s75, 0
    %p396 = por %p394, %p395
    %s398 = sadd.s32 %s397, 1
    %p401 = scmp.eq.s32.totalorder %s69, 1
    %p402 = scmp.ne.s32.totalorder %s397, %s399
    %p403 = scmp.eq.s32.totalorder %s69, 0
    %p404 = por %p402, %p403
    %p405 = scmp.ne.s32.totalorder %s397, %s399
    %p406 = scmp.eq.s32.totalorder %s74, 1
    %p407 = por %p405, %p406
    %p408 = scmp.ne.s32.totalorder %s399, %s400
    %p409 = scmp.eq.s32.totalorder %s74, 0
    %p410 = por %p408, %p409
    %p411 = scmp.ne.s32.totalorder %s399, %s400
    %p412 = scmp.eq.s32.totalorder %s75, 1
    %p413 = por %p411, %p412
    %p415 = scmp.ne.s32.totalorder %s400, %s414
    %p416 = scmp.eq.s32.totalorder %s75, 0
    %p417 = por %p415, %p416
    %s419 = sadd.s32 %s418, 1
    %p422 = scmp.eq.s32.totalorder %s69, 1
    %p423 = scmp.ne.s32.totalorder %s418, %s420
    %p424 = scmp.eq.s32.totalorder %s69, 0
    %p425 = por %p423, %p424
    %p426 = scmp.ne.s32.totalorder %s418, %s420
    %p427 = scmp.eq.s32.totalorder %s74, 1
    %p428 = por %p426, %p427
    %p429 = scmp.ne.s32.totalorder %s420, %s421
    %p430 = scmp.eq.s32.totalorder %s74, 0
    %p431 = por %p429, %p430
    %p432 = scmp.ne.s32.totalorder %s420, %s421
    %p433 = scmp.eq.s32.totalorder %s75, 1
    %p434 = por %p432, %p433
    %p436 = scmp.ne.s32.totalorder %s421, %s435
    %p437 = scmp.eq.s32.totalorder %s75, 0
    %p438 = por %p436, %p437
    %s440 = sadd.s32 %s439, 1
    %p443 = scmp.eq.s32.totalorder %s69, 1
    %p444 = scmp.ne.s32.totalorder %s439, %s441
    %p445 = scmp.eq.s32.totalorder %s69, 0
    %p446 = por %p444, %p445
    %p447 = scmp.ne.s32.totalorder %s439, %s441
    %p448 = scmp.eq.s32.totalorder %s74, 1
    %p449 = por %p447, %p448
    %p450 = scmp.ne.s32.totalorder %s441, %s442
    %p451 = scmp.eq.s32.totalorder %s74, 0
    %p452 = por %p450, %p451
    %p453 = scmp.ne.s32.totalorder %s441, %s442
    %p454 = scmp.eq.s32.totalorder %s75, 1
    %p455 = por %p453, %p454
    %p457 = scmp.ne.s32.totalorder %s442, %s456
    %p458 = scmp.eq.s32.totalorder %s75, 0
    %p459 = por %p457, %p458
    %s461 = sadd.s32 %s460, 1
    %p464 = scmp.eq.s32.totalorder %s69, 1
    %p465 = scmp.ne.s32.totalorder %s460, %s462
    %p466 = scmp.eq.s32.totalorder %s69, 0
    %p467 = por %p465, %p466
    %p468 = scmp.ne.s32.totalorder %s460, %s462
    %p469 = scmp.eq.s32.totalorder %s74, 1
    %p470 = por %p468, %p469
    %p471 = scmp.ne.s32.totalorder %s462, %s463
    %p472 = scmp.eq.s32.totalorder %s74, 0
    %p473 = por %p471, %p472
    %p474 = scmp.ne.s32.totalorder %s462, %s463
    %p475 = scmp.eq.s32.totalorder %s75, 1
    %p476 = por %p474, %p475
    %p478 = scmp.ne.s32.totalorder %s463, %s477
    %p479 = scmp.eq.s32.totalorder %s75, 0
    %p480 = por %p478, %p479
    %s482 = sadd.s32 %s481, 1
    %p485 = scmp.eq.s32.totalorder %s69, 1
    %p486 = scmp.ne.s32.totalorder %s481, %s483
    %p487 = scmp.eq.s32.totalorder %s69, 0
    %p488 = por %p486, %p487
    %p489 = scmp.ne.s32.totalorder %s481, %s483
    %p490 = scmp.eq.s32.totalorder %s74, 1
    %p491 = por %p489, %p490
    %p492 = scmp.ne.s32.totalorder %s483, %s484
    %p493 = scmp.eq.s32.totalorder %s74, 0
    %p494 = por %p492, %p493
    %p495 = scmp.ne.s32.totalorder %s483, %s484
    %p496 = scmp.eq.s32.totalorder %s75, 1
    %p497 = por %p495, %p496
    %p499 = scmp.ne.s32.totalorder %s484, %s498
    %p500 = scmp.eq.s32.totalorder %s75, 0
    %p501 = por %p499, %p500
    %s503 = sadd.s32 %s502, 1
    %p506 = scmp.eq.s32.totalorder %s69, 1
    %p507 = scmp.ne.s32.totalorder %s502, %s504
    %p508 = scmp.eq.s32.totalorder %s69, 0
    %p509 = por %p507, %p508
    %p510 = scmp.ne.s32.totalorder %s502, %s504
    %p511 = scmp.eq.s32.totalorder %s74, 1
    %p512 = por %p510, %p511
    %p513 = scmp.ne.s32.totalorder %s504, %s505
    %p514 = scmp.eq.s32.totalorder %s74, 0
    %p515 = por %p513, %p514
    %p516 = scmp.ne.s32.totalorder %s504, %s505
    %p517 = scmp.eq.s32.totalorder %s75, 1
    %p518 = por %p516, %p517
    %p520 = scmp.ne.s32.totalorder %s505, %s519
    %p521 = scmp.eq.s32.totalorder %s75, 0
    %p522 = por %p520, %p521
    %s524 = sadd.s32 %s523, 1
    %p527 = scmp.eq.s32.totalorder %s69, 1
    %p528 = scmp.ne.s32.totalorder %s523, %s525
    %p529 = scmp.eq.s32.totalorder %s69, 0
    %p530 = por %p528, %p529
    %p531 = scmp.ne.s32.totalorder %s523, %s525
    %p532 = scmp.eq.s32.totalorder %s74, 1
    %p533 = por %p531, %p532
    %p534 = scmp.ne.s32.totalorder %s525, %s526
    %p535 = scmp.eq.s32.totalorder %s74, 0
    %p536 = por %p534, %p535
    %p537 = scmp.ne.s32.totalorder %s525, %s526
    %p538 = scmp.eq.s32.totalorder %s75, 1
    %p539 = por %p537, %p538
    %p541 = scmp.ne.s32.totalorder %s526, %s540
    %p542 = scmp.eq.s32.totalorder %s75, 0
    %p543 = por %p541, %p542
    %s545 = sadd.s32 %s544, 1
    %p548 = scmp.eq.s32.totalorder %s69, 1
    %p549 = scmp.ne.s32.totalorder %s544, %s546
    %p550 = scmp.eq.s32.totalorder %s69, 0
    %p551 = por %p549, %p550
    %p552 = scmp.ne.s32.totalorder %s544, %s546
    %p553 = scmp.eq.s32.totalorder %s74, 1
    %p554 = por %p552, %p553
    %p555 = scmp.ne.s32.totalorder %s546, %s547
    %p556 = scmp.eq.s32.totalorder %s74, 0
    %p557 = por %p555, %p556
    %p558 = scmp.ne.s32.totalorder %s546, %s547
    %p559 = scmp.eq.s32.totalorder %s75, 1
    %p560 = por %p558, %p559
    %p562 = scmp.ne.s32.totalorder %s547, %s561
    %p563 = scmp.eq.s32.totalorder %s75, 0
    %p564 = por %p562, %p563
    %s566 = sadd.s32 %s565, 1
    %p569 = scmp.eq.s32.totalorder %s69, 1
    %p570 = scmp.ne.s32.totalorder %s565, %s567
    %p571 = scmp.eq.s32.totalorder %s69, 0
    %p572 = por %p570, %p571
    %p573 = scmp.ne.s32.totalorder %s565, %s567
    %p574 = scmp.eq.s32.totalorder %s74, 1
    %p575 = por %p573, %p574
    %p576 = scmp.ne.s32.totalorder %s567, %s568
    %p577 = scmp.eq.s32.totalorder %s74, 0
    %p578 = por %p576, %p577
    %p579 = scmp.ne.s32.totalorder %s567, %s568
    %p580 = scmp.eq.s32.totalorder %s75, 1
    %p581 = por %p579, %p580
    %p583 = scmp.ne.s32.totalorder %s568, %s582
    %p584 = scmp.eq.s32.totalorder %s75, 0
    %p585 = por %p583, %p584
    %s587 = sadd.s32 %s586, 1
    %p590 = scmp.eq.s32.totalorder %s69, 1
    %p591 = scmp.ne.s32.totalorder %s586, %s588
    %p592 = scmp.eq.s32.totalorder %s69, 0
    %p593 = por %p591, %p592
    %p594 = scmp.ne.s32.totalorder %s586, %s588
    %p595 = scmp.eq.s32.totalorder %s74, 1
    %p596 = por %p594, %p595
    %p597 = scmp.ne.s32.totalorder %s588, %s589
    %p598 = scmp.eq.s32.totalorder %s74, 0
    %p599 = por %p597, %p598
    %p600 = scmp.ne.s32.totalorder %s588, %s589
    %p601 = scmp.eq.s32.totalorder %s75, 1
    %p602 = por %p600, %p601
    %p604 = scmp.ne.s32.totalorder %s589, %s603
    %p605 = scmp.eq.s32.totalorder %s75, 0
    %p606 = por %p604, %p605
    %s608 = sadd.s32 %s607, 1
    %p611 = scmp.eq.s32.totalorder %s69, 1
    %p612 = scmp.ne.s32.totalorder %s607, %s609
    %p613 = scmp.eq.s32.totalorder %s69, 0
    %p614 = por %p612, %p613
    %p615 = scmp.ne.s32.totalorder %s607, %s609
    %p616 = scmp.eq.s32.totalorder %s74, 1
    %p617 = por %p615, %p616
    %p618 = scmp.ne.s32.totalorder %s609, %s610
    %p619 = scmp.eq.s32.totalorder %s74, 0
    %p620 = por %p618, %p619
    %p621 = scmp.ne.s32.totalorder %s609, %s610
    %p622 = scmp.eq.s32.totalorder %s75, 1
    %p623 = por %p621, %p622
    %p625 = scmp.ne.s32.totalorder %s610, %s624
    %p626 = scmp.eq.s32.totalorder %s75, 0
    %p627 = por %p625, %p626
    %s629 = sadd.s32 %s628, 1
    %p632 = scmp.eq.s32.totalorder %s69, 1
    %p633 = scmp.ne.s32.totalorder %s628, %s630
    %p634 = scmp.eq.s32.totalorder %s69, 0
    %p635 = por %p633, %p634
    %p636 = scmp.ne.s32.totalorder %s628, %s630
    %p637 = scmp.eq.s32.totalorder %s74, 1
    %p638 = por %p636, %p637
    %p639 = scmp.ne.s32.totalorder %s630, %s631
    %p640 = scmp.eq.s32.totalorder %s74, 0
    %p641 = por %p639, %p640
    %p642 = scmp.ne.s32.totalorder %s630, %s631
    %p643 = scmp.eq.s32.totalorder %s75, 1
    %p644 = por %p642, %p643
    %p646 = scmp.ne.s32.totalorder %s631, %s645
    %p647 = scmp.eq.s32.totalorder %s75, 0
    %p648 = por %p646, %p647
    %s650 = sadd.s32 %s649, 1
    %p653 = scmp.eq.s32.totalorder %s69, 1
    %p654 = scmp.ne.s32.totalorder %s649, %s651
    %p655 = scmp.eq.s32.totalorder %s69, 0
    %p656 = por %p654, %p655
    %p657 = scmp.ne.s32.totalorder %s649, %s651
    %p658 = scmp.eq.s32.totalorder %s74, 1
    %p659 = por %p657, %p658
    %p660 = scmp.ne.s32.totalorder %s651, %s652
    %p661 = scmp.eq.s32.totalorder %s74, 0
    %p662 = por %p660, %p661
    %p663 = scmp.ne.s32.totalorder %s651, %s652
    %p664 = scmp.eq.s32.totalorder %s75, 1
    %p665 = por %p663, %p664
    %p667 = scmp.ne.s32.totalorder %s652, %s666
    %p668 = scmp.eq.s32.totalorder %s75, 0
    %p669 = por %p667, %p668
    %s671 = sadd.s32 %s670, 1
    %p674 = scmp.eq.s32.totalorder %s69, 1
    %p675 = scmp.ne.s32.totalorder %s670, %s672
    %p676 = scmp.eq.s32.totalorder %s69, 0
    %p677 = por %p675, %p676
    %p678 = scmp.ne.s32.totalorder %s670, %s672
    %p679 = scmp.eq.s32.totalorder %s74, 1
    %p680 = por %p678, %p679
    %p681 = scmp.ne.s32.totalorder %s672, %s673
    %p682 = scmp.eq.s32.totalorder %s74, 0
    %p683 = por %p681, %p682
    %p684 = scmp.ne.s32.totalorder %s672, %s673
    %p685 = scmp.eq.s32.totalorder %s75, 1
    %p686 = por %p684, %p685
    %p688 = scmp.ne.s32.totalorder %s673, %s687
    %p689 = scmp.eq.s32.totalorder %s75, 0
    %p690 = por %p688, %p689
    %s692 = sadd.s32 %s691, 1
    %p695 = scmp.eq.s32.totalorder %s69, 1
    %p696 = scmp.ne.s32.totalorder %s691, %s693
    %p697 = scmp.eq.s32.totalorder %s69, 0
    %p698 = por %p696, %p697
    %p699 = scmp.ne.s32.totalorder %s691, %s693
    %p700 = scmp.eq.s32.totalorder %s74, 1
    %p701 = por %p699, %p700
    %p702 = scmp.ne.s32.totalorder %s693, %s694
    %p703 = scmp.eq.s32.totalorder %s74, 0
    %p704 = por %p702, %p703
    %p705 = scmp.ne.s32.totalorder %s693, %s694
    %p706 = scmp.eq.s32.totalorder %s75, 1
    %p707 = por %p705, %p706
    %p709 = scmp.ne.s32.totalorder %s694, %s708
    %p710 = scmp.eq.s32.totalorder %s75, 0
    %p711 = por %p709, %p710
    %s713 = sadd.s32 %s712, 1
    %p716 = scmp.eq.s32.totalorder %s69, 1
    %p717 = scmp.ne.s32.totalorder %s712, %s714
    %p718 = scmp.eq.s32.totalorder %s69, 0
    %p719 = por %p717, %p718
    %p720 = scmp.ne.s32.totalorder %s712, %s714
    %p721 = scmp.eq.s32.totalorder %s74, 1
    %p722 = por %p720, %p721
    %p723 = scmp.ne.s32.totalorder %s714, %s715
    %p724 = scmp.eq.s32.totalorder %s74, 0
    %p725 = por %p723, %p724
    %p726 = scmp.ne.s32.totalorder %s714, %s715
    %p727 = scmp.eq.s32.totalorder %s75, 1
    %p728 = por %p726, %p727
    %p730 = scmp.ne.s32.totalorder %s715, %s729
    %p731 = scmp.eq.s32.totalorder %s75, 0
    %p732 = por %p730, %p731
    %s733 = ssub.s32 %s69, %s76
    %p734 = scmp.eq.s32.totalorder %s733, 0
    %s736 = sadd.s32 %s735, 1
    %s737 = scalar_select %p734, %s735, %s736
    %p740 = pneg %p734
    %p741 = scmp.eq.s32.totalorder %s69, 1
    %p742 = por %p740, %p741
    %p743 = scmp.ne.s32.totalorder %s735, %s738
    %p744 = scmp.eq.s32.totalorder %s69, 0
    %p745 = por %p743, %p744
    %p746 = scmp.ne.s32.totalorder %s735, %s738
    %p747 = scmp.eq.s32.totalorder %s74, 1
    %p748 = por %p746, %p747
    %p749 = scmp.ne.s32.totalorder %s738, %s739
    %p750 = scmp.eq.s32.totalorder %s74, 0
    %p751 = por %p749, %p750
    %p752 = scmp.ne.s32.totalorder %s738, %s739
    %p753 = scmp.eq.s32.totalorder %s75, 1
    %p754 = por %p752, %p753
    %p756 = scmp.ne.s32.totalorder %s739, %s755
    %p757 = scmp.eq.s32.totalorder %s75, 0
    %p758 = por %p756, %p757
    %p759 = scmp.le.s32.totalorder 1, %s69
    %p760 = scmp.lt.s32.totalorder %s69, 3
    %p761 = pnand %p759, %p760
    %p762 = pneg %p761
    // Predicated region
    $region9: #{_lambda_.4} parent=5 // pred_check
      _
    $region10: #{_lambda_.4} parent=5 // pred_check_branch
      %764 = sbr.rel (%p761) target = $region12
    $region11: #{_lambda_.4} parent=5 // pred_region
      %s765 = ssub.s32 %s69, 1
      // Predicated region
      $region13: #{_lambda_.4} parent=11 // pred_check
        %p766 = pneg %p116
      $region14: #{_lambda_.4} parent=11 // pred_check_branch
        %768 = sbr.rel (%p766) target = $region16
      $region15: #{_lambda_.4} parent=11 // pred_region
        _
      $region16: #{_lambda_.4} parent=11 // pred_fallthru
        _
      // Predicated region
      $region17: #{_lambda_.4} parent=11 // pred_check
        %p769 = pneg %p137
      $region18: #{_lambda_.4} parent=11 // pred_check_branch
        %771 = sbr.rel (%p769) target = $region20
      $region19: #{_lambda_.4} parent=11 // pred_region
        _
      $region20: #{_lambda_.4} parent=11 // pred_fallthru
        _
      // Predicated region
      $region21: #{_lambda_.4} parent=11 // pred_check
        %p772 = pneg %p158
      $region22: #{_lambda_.4} parent=11 // pred_check_branch
        %774 = sbr.rel (%p772) target = $region24
      $region23: #{_lambda_.4} parent=11 // pred_region
        _
      $region24: #{_lambda_.4} parent=11 // pred_fallthru
        _
      // Predicated region
      $region25: #{_lambda_.4} parent=11 // pred_check
        %p775 = pneg %p179
      $region26: #{_lambda_.4} parent=11 // pred_check_branch
        %777 = sbr.rel (%p775) target = $region28
      $region27: #{_lambda_.4} parent=11 // pred_region
        _
      $region28: #{_lambda_.4} parent=11 // pred_fallthru
        _
      // Predicated region
      $region29: #{_lambda_.4} parent=11 // pred_check
        %p778 = pneg %p200
      $region30: #{_lambda_.4} parent=11 // pred_check_branch
        %780 = sbr.rel (%p778) target = $region32
      $region31: #{_lambda_.4} parent=11 // pred_region
        _
      $region32: #{_lambda_.4} parent=11 // pred_fallthru
        _
      // Predicated region
      $region33: #{_lambda_.4} parent=11 // pred_check
        %p781 = pneg %p221
      $region34: #{_lambda_.4} parent=11 // pred_check_branch
        %783 = sbr.rel (%p781) target = $region36
      $region35: #{_lambda_.4} parent=11 // pred_region
        _
      $region36: #{_lambda_.4} parent=11 // pred_fallthru
        _
      // Predicated region
      $region37: #{_lambda_.4} parent=11 // pred_check
        %p784 = pneg %p242
      $region38: #{_lambda_.4} parent=11 // pred_check_branch
        %786 = sbr.rel (%p784) target = $region40
      $region39: #{_lambda_.4} parent=11 // pred_region
        _
      $region40: #{_lambda_.4} parent=11 // pred_fallthru
        _
      // Predicated region
      $region41: #{_lambda_.4} parent=11 // pred_check
        %p787 = pneg %p263
      $region42: #{_lambda_.4} parent=11 // pred_check_branch
        %789 = sbr.rel (%p787) target = $region44
      $region43: #{_lambda_.4} parent=11 // pred_region
        _
      $region44: #{_lambda_.4} parent=11 // pred_fallthru
        _
      // Predicated region
      $region45: #{_lambda_.4} parent=11 // pred_check
        %p790 = pneg %p284
      $region46: #{_lambda_.4} parent=11 // pred_check_branch
        %792 = sbr.rel (%p790) target = $region48
      $region47: #{_lambda_.4} parent=11 // pred_region
        _
      $region48: #{_lambda_.4} parent=11 // pred_fallthru
        _
      // Predicated region
      $region49: #{_lambda_.4} parent=11 // pred_check
        %p793 = pneg %p305
      $region50: #{_lambda_.4} parent=11 // pred_check_branch
        %795 = sbr.rel (%p793) target = $region52
      $region51: #{_lambda_.4} parent=11 // pred_region
        _
      $region52: #{_lambda_.4} parent=11 // pred_fallthru
        _
      // Predicated region
      $region53: #{_lambda_.4} parent=11 // pred_check
        %p796 = pneg %p326
      $region54: #{_lambda_.4} parent=11 // pred_check_branch
        %798 = sbr.rel (%p796) target = $region56
      $region55: #{_lambda_.4} parent=11 // pred_region
        _
      $region56: #{_lambda_.4} parent=11 // pred_fallthru
        _
      // Predicated region
      $region57: #{_lambda_.4} parent=11 // pred_check
        %p799 = pneg %p347
      $region58: #{_lambda_.4} parent=11 // pred_check_branch
        %801 = sbr.rel (%p799) target = $region60
      $region59: #{_lambda_.4} parent=11 // pred_region
        _
      $region60: #{_lambda_.4} parent=11 // pred_fallthru
        _
      // Predicated region
      $region61: #{_lambda_.4} parent=11 // pred_check
        %p802 = pneg %p368
      $region62: #{_lambda_.4} parent=11 // pred_check_branch
        %804 = sbr.rel (%p802) target = $region64
      $region63: #{_lambda_.4} parent=11 // pred_region
        _
      $region64: #{_lambda_.4} parent=11 // pred_fallthru
        _
      // Predicated region
      $region65: #{_lambda_.4} parent=11 // pred_check
        %p805 = pneg %p389
      $region66: #{_lambda_.4} parent=11 // pred_check_branch
        %807 = sbr.rel (%p805) target = $region68
      $region67: #{_lambda_.4} parent=11 // pred_region
        _
      $region68: #{_lambda_.4} parent=11 // pred_fallthru
        _
      // Predicated region
      $region69: #{_lambda_.4} parent=11 // pred_check
        %p808 = pneg %p410
      $region70: #{_lambda_.4} parent=11 // pred_check_branch
        %810 = sbr.rel (%p808) target = $region72
      $region71: #{_lambda_.4} parent=11 // pred_region
        _
      $region72: #{_lambda_.4} parent=11 // pred_fallthru
        _
      // Predicated region
      $region73: #{_lambda_.4} parent=11 // pred_check
        %p811 = pneg %p431
      $region74: #{_lambda_.4} parent=11 // pred_check_branch
        %813 = sbr.rel (%p811) target = $region76
      $region75: #{_lambda_.4} parent=11 // pred_region
        _
      $region76: #{_lambda_.4} parent=11 // pred_fallthru
        _
      // Predicated region
      $region77: #{_lambda_.4} parent=11 // pred_check
        %p814 = pneg %p452
      $region78: #{_lambda_.4} parent=11 // pred_check_branch
        %816 = sbr.rel (%p814) target = $region80
      $region79: #{_lambda_.4} parent=11 // pred_region
        _
      $region80: #{_lambda_.4} parent=11 // pred_fallthru
        _
      // Predicated region
      $region81: #{_lambda_.4} parent=11 // pred_check
        %p817 = pneg %p473
      $region82: #{_lambda_.4} parent=11 // pred_check_branch
        %819 = sbr.rel (%p817) target = $region84
      $region83: #{_lambda_.4} parent=11 // pred_region
        _
      $region84: #{_lambda_.4} parent=11 // pred_fallthru
        _
      // Predicated region
      $region85: #{_lambda_.4} parent=11 // pred_check
        %p820 = pneg %p494
      $region86: #{_lambda_.4} parent=11 // pred_check_branch
        %822 = sbr.rel (%p820) target = $region88
      $region87: #{_lambda_.4} parent=11 // pred_region
        _
      $region88: #{_lambda_.4} parent=11 // pred_fallthru
        _
      // Predicated region
      $region89: #{_lambda_.4} parent=11 // pred_check
        %p823 = pneg %p515
      $region90: #{_lambda_.4} parent=11 // pred_check_branch
        %825 = sbr.rel (%p823) target = $region92
      $region91: #{_lambda_.4} parent=11 // pred_region
        _
      $region92: #{_lambda_.4} parent=11 // pred_fallthru
        _
      // Predicated region
      $region93: #{_lambda_.4} parent=11 // pred_check
        %p826 = pneg %p536
      $region94: #{_lambda_.4} parent=11 // pred_check_branch
        %828 = sbr.rel (%p826) target = $region96
      $region95: #{_lambda_.4} parent=11 // pred_region
        _
      $region96: #{_lambda_.4} parent=11 // pred_fallthru
        _
      // Predicated region
      $region97: #{_lambda_.4} parent=11 // pred_check
        %p829 = pneg %p557
      $region98: #{_lambda_.4} parent=11 // pred_check_branch
        %831 = sbr.rel (%p829) target = $region100
      $region99: #{_lambda_.4} parent=11 // pred_region
        _
      $region100: #{_lambda_.4} parent=11 // pred_fallthru
        _
      // Predicated region
      $region101: #{_lambda_.4} parent=11 // pred_check
        %p832 = pneg %p578
      $region102: #{_lambda_.4} parent=11 // pred_check_branch
        %834 = sbr.rel (%p832) target = $region104
      $region103: #{_lambda_.4} parent=11 // pred_region
        _
      $region104: #{_lambda_.4} parent=11 // pred_fallthru
        _
      // Predicated region
      $region105: #{_lambda_.4} parent=11 // pred_check
        %p835 = pneg %p599
      $region106: #{_lambda_.4} parent=11 // pred_check_branch
        %837 = sbr.rel (%p835) target = $region108
      $region107: #{_lambda_.4} parent=11 // pred_region
        _
      $region108: #{_lambda_.4} parent=11 // pred_fallthru
        _
      // Predicated region
      $region109: #{_lambda_.4} parent=11 // pred_check
        %p838 = pneg %p620
      $region110: #{_lambda_.4} parent=11 // pred_check_branch
        %840 = sbr.rel (%p838) target = $region112
      $region111: #{_lambda_.4} parent=11 // pred_region
        _
      $region112: #{_lambda_.4} parent=11 // pred_fallthru
        _
      // Predicated region
      $region113: #{_lambda_.4} parent=11 // pred_check
        %p841 = pneg %p641
      $region114: #{_lambda_.4} parent=11 // pred_check_branch
        %843 = sbr.rel (%p841) target = $region116
      $region115: #{_lambda_.4} parent=11 // pred_region
        _
      $region116: #{_lambda_.4} parent=11 // pred_fallthru
        _
      // Predicated region
      $region117: #{_lambda_.4} parent=11 // pred_check
        %p844 = pneg %p662
      $region118: #{_lambda_.4} parent=11 // pred_check_branch
        %846 = sbr.rel (%p844) target = $region120
      $region119: #{_lambda_.4} parent=11 // pred_region
        _
      $region120: #{_lambda_.4} parent=11 // pred_fallthru
        _
      // Predicated region
      $region121: #{_lambda_.4} parent=11 // pred_check
        %p847 = pneg %p683
      $region122: #{_lambda_.4} parent=11 // pred_check_branch
        %849 = sbr.rel (%p847) target = $region124
      $region123: #{_lambda_.4} parent=11 // pred_region
        _
      $region124: #{_lambda_.4} parent=11 // pred_fallthru
        _
      // Predicated region
      $region125: #{_lambda_.4} parent=11 // pred_check
        %p850 = pneg %p704
      $region126: #{_lambda_.4} parent=11 // pred_check_branch
        %852 = sbr.rel (%p850) target = $region128
      $region127: #{_lambda_.4} parent=11 // pred_region
        _
      $region128: #{_lambda_.4} parent=11 // pred_fallthru
        _
      // Predicated region
      $region129: #{_lambda_.4} parent=11 // pred_check
        %p853 = pneg %p725
      $region130: #{_lambda_.4} parent=11 // pred_check_branch
        %855 = sbr.rel (%p853) target = $region132
      $region131: #{_lambda_.4} parent=11 // pred_region
        _
      $region132: #{_lambda_.4} parent=11 // pred_fallthru
        _
    $region12: #{_lambda_.4} parent=5 // pred_fallthru
      _
    %p856 = scmp.lt.s32.totalorder %s69, 2
    // Predicated region
    $region133: #{_lambda_.4} parent=5 // pred_check
      %p857 = pneg %p856
    $region134: #{_lambda_.4} parent=5 // pred_check_branch
      %859 = sbr.rel (%p857) target = $region136
    $region135: #{_lambda_.4} parent=5 // pred_region
      // Predicated region
      $region137: #{_lambda_.4} parent=135 // pred_check
        %p860 = pneg %p89
      $region138: #{_lambda_.4} parent=135 // pred_check_branch
        %862 = sbr.rel (%p860) target = $region140
      $region139: #{_lambda_.4} parent=135 // pred_region
        %p863 = scmp.lt.s32.totalorder %s69, 1
        %s864 = scalar_select %p863, %s69, 1
        %s865 = smul.addr %s864, 2
        %s866 = smul.addr %s865, 8
        %s867 = scalar_lea.vmem %s1, %s866
      $region140: #{_lambda_.4} parent=135 // pred_fallthru
        _
    $region136: #{_lambda_.4} parent=5 // pred_fallthru
      _
    %p868 = scmp.le.s32.totalorder 1, %s69
    %p869 = scmp.lt.s32.totalorder %s69, 3
    %p870 = pnand %p868, %p869
    %p871 = pneg %p870
    // Predicated region
    $region141: #{_lambda_.4} parent=5 // pred_check
      _
    $region142: #{_lambda_.4} parent=5 // pred_check_branch
      %873 = sbr.rel (%p870) target = $region144
    $region143: #{_lambda_.4} parent=5 // pred_region
      %s874 = ssub.s32 %s69, 1
      %p875 = scmp.lt.s32.totalorder %s74, 1
      %s876 = scalar_select %p875, %s74, 1
      %s877 = smul.addr %s876, 2
      %s878 = smul.addr %s877, 8
      %s879 = scalar_lea.vmem %s1, %s878
      %p880 = pneg %p95
      %p881 = pneg %p92
      %p882 = pneg %p116
      %p883 = pneg %p113
      %p884 = pneg %p137
      %p885 = pneg %p134
      %p886 = pneg %p158
      %p887 = pneg %p155
      %p888 = pneg %p179
      %p889 = pneg %p176
      %p890 = pneg %p200
      %p891 = pneg %p197
      %p892 = pneg %p221
      %p893 = pneg %p218
      %p894 = pneg %p242
      %p895 = pneg %p239
      %p896 = pneg %p263
      %p897 = pneg %p260
      %p898 = pneg %p284
      %p899 = pneg %p281
      %p900 = pneg %p305
      %p901 = pneg %p302
      %p902 = pneg %p326
      %p903 = pneg %p323
      %p904 = pneg %p347
      %p905 = pneg %p344
      %p906 = pneg %p368
      %p907 = pneg %p365
      %p908 = pneg %p389
      %p909 = pneg %p386
      %p910 = pneg %p410
      %p911 = pneg %p407
      %p912 = pneg %p431
      %p913 = pneg %p428
      %p914 = pneg %p452
      %p915 = pneg %p449
      %p916 = pneg %p473
      %p917 = pneg %p470
      %p918 = pneg %p494
      %p919 = pneg %p491
      %p920 = pneg %p515
      %p921 = pneg %p512
      %p922 = pneg %p536
      %p923 = pneg %p533
      %p924 = pneg %p557
      %p925 = pneg %p554
      %p926 = pneg %p578
      %p927 = pneg %p575
      %p928 = pneg %p599
      %p929 = pneg %p596
      %p930 = pneg %p620
      %p931 = pneg %p617
      %p932 = pneg %p641
      %p933 = pneg %p638
      %p934 = pneg %p662
      %p935 = pneg %p659
      %p936 = pneg %p683
      %p937 = pneg %p680
      %p938 = pneg %p704
      %p939 = pneg %p701
      %p940 = pneg %p725
      %p941 = pneg %p722
      %p942 = pneg %p751
      %p943 = pneg %p748
      %p944 = scmp.lt.s32.totalorder %s74, 1
      %s945 = scalar_select %p944, %s74, 1
      %s946 = smul.addr %s945, 2
      %s947 = smul.addr %s946, 8
      %s948 = scalar_lea.vmem %s63, %s947
      %p949 = scmp.lt.s32.totalorder %s74, 1
      %s950 = scalar_select %p949, %s74, 1
      %s951 = smul.addr %s950, 2
      %s952 = smul.addr %s951, 8
      %s953 = scalar_lea.vmem %s1, %s952
      %p954 = scmp.lt.s32.totalorder %s74, 1
      %s955 = scalar_select %p954, %s74, 1
      %s956 = smul.addr %s955, 2
      %s957 = smul.addr %s956, 8
      %s958 = scalar_lea.vmem %s63, %s957
      %v960 = vld [vmem:[%s953] sm:$0xff]
      %v961 = vld [vmem:[%s953 + $0x8] sm:$0xff]
      %vm962 = vcmask 261120
      %v963 = vsel %vm962, %v960, 0.0
      %964 = vadd.xlane.f32.xlu0 %v963
      %v965 = vpop.xlane.xlu0 %964
      %v966 = vsel %vm962, %v961, 0.0
      %967 = vadd.xlane.f32.xlu0 %v966
      %v968 = vpop.xlane.xlu0 %967
      %v969 = vrcp.pop 32.0
      %v970 = vmul.f32 %v965, %v969
      %v971 = vmul.f32 %v968, %v969
      %v972 = vsub.f32 %v960, %v970
      %v973 = vsub.f32 %v961, %v971
      %v974 = vmul.f32 %v972, %v972
      %v975 = vmul.f32 %v973, %v973
      %v976 = vsel %vm962, %v974, 0.0
      %977 = vadd.xlane.f32.xlu0 %v976
      %v978 = vpop.xlane.xlu0 %977
      %v979 = vsel %vm962, %v975, 0.0
      %980 = vadd.xlane.f32.xlu0 %v979
      %v981 = vpop.xlane.xlu0 %980
      %v982 = vmul.f32 %v978, %v969
      %v983 = vmul.f32 %v981, %v969
      %v984 = vadd.f32 %v982, 1e-05
      %v985 = vadd.f32 %v983, 1e-05
      %v986 = vrsqrt.pop %v984
      %v987 = vrsqrt.pop %v985
      %v988 = vmul.f32 %v972, %v986
      %v989 = vmul.f32 %v973, %v987
      %v990 = vld [vmem:[%s3] sm:$0x1]
      %v992 = vlaneseq
      %v993 = vshrl.u32 %v992, 7
      %v994 = vsub.s32 0, %v993
      %v995 = vrot.slane %v990, %v994
      %v997 = vmul.f32 %v988, %v995
      %v998 = vmul.f32 %v989, %v995
      %v999 = vld [vmem:[%s5] sm:$0x1]
      %v1001 = vlaneseq
      %v1002 = vshrl.u32 %v1001, 7
      %v1003 = vsub.s32 0, %v1002
      %v1004 = vrot.slane %v999, %v1003
      %v1006 = vadd.f32 %v997, %v1004
      %v1007 = vadd.f32 %v998, %v1004
      %v1008 = vpack.c.bf16 %v1007, %v1006
      %v1009 = vld [vmem:[%s7] sm:$0xf]
      %v1010 = vld [vmem:[%s7 + $0x4] sm:$0xf]
      %v1011 = vld [vmem:[%s7 + $0x8] sm:$0xf]
      %v1012 = vld [vmem:[%s7 + $0xc] sm:$0xf]
      %v1013 = vld [vmem:[%s9] sm:$0x1]
      %v1015 = vlaneseq
      %v1016 = vshrl.u32 %v1015, 7
      %v1017 = vsub.s32 0, %v1016
      %v1018 = vrot.slane %v1013, %v1017
      %v1024 = vunpack.c.l.b16 %v1009
      %v1025 = vunpack.c.l.b16 %v1010
      %v1026 = vunpack.c.l.b16 %v1011
      %v1027 = vunpack.c.l.b16 %v1012
      %v1028 = vpack.c.b16 %v1025, %v1024
      %v1029 = vpack.c.b16 %v1027, %v1026
      %v1033 = vsel %vm962, %v1008, 0
      %1035 = vmatprep.subr.bf16.mxu0 0
      %1036 = vmatpush1.bf16.msra.mxu0 0
      %1037 = vmatprep.subr.bf16.mxu0 0
      %1038 = vmatpush1.bf16.msra.mxu0 0
      %1039 = vmatprep.subr.bf16.mxu0 0
      %1040 = vmatpush1.bf16.msra.mxu0 0
      %1041 = vmatprep.subr.bf16.mxu0 0
      %1042 = vmatpush1.bf16.msra.mxu0 0
      %1043 = vmatprep.subr.bf16.mxu0 0
      %1044 = vmatpush1.bf16.msra.mxu0 0
      %1045 = vmatprep.subr.bf16.mxu0 0
      %1046 = vmatpush1.bf16.msra.mxu0 0
      %1047 = vmatprep.subr.bf16.mxu0 0
      %1048 = vmatpush1.bf16.msra.mxu0 %v1029
      %1049 = vmatprep.subr.bf16.mxu0 0
      %1050 = vmatpush1.bf16.msra.mxu0 %v1028
      %1051 = vmatprep.subr.bf16.mxu0 0
      %1052 = vmatpush2.bf16.msra.mxu0 0
      %1053 = vmatprep.subr.bf16.mxu0 0
      %1054 = vmatpush2.bf16.msra.mxu0 0
      %1055 = vmatprep.subr.bf16.mxu0 0
      %1056 = vmatpush2.bf16.msra.mxu0 0
      %1057 = vmatprep.subr.bf16.mxu0 0
      %1058 = vmatpush2.bf16.msra.mxu0 0
      %1059 = vmatprep.subr.bf16.mxu0 0
      %1060 = vmatpush2.bf16.msra.mxu0 0
      %1061 = vmatprep.subr.bf16.mxu0 0
      %1062 = vmatpush2.bf16.msra.mxu0 0
      %1063 = vmatprep.subr.bf16.mxu0 0
      %1064 = vmatpush2.bf16.msra.mxu0 0
      %1065 = vmatprep.subr.bf16.mxu0 0
      %1066 = vmatpush2.bf16.msra.mxu0 0
      %1067 = vmatprep.mubr.bf16.mxu0 0
      %1068 = vmatmul.mubr.bf16.gmra.mxu0 %v1033
      %v1069 = vpop.f32.mrf.mxu0
      %v1070 = vadd.f32 %v1018, %v1069
      %v1071 = vpop.f32.mrf.mxu0
      %v1072 = vpop.f32.mrf.mxu0
      %v1073 = vadd.f32 %v1018, %v1072
      %v1074 = vpop.f32.mrf.mxu0
      %1075 = vdwg.mxu0
      %v1076 = vxor.u32 %v1070, 2147483648
      %v1077 = vxor.u32 %v1073, 2147483648
      %v1078 = vmul.f32 %v1076, 1.442695
      %v1079 = vpow.pop %v1078
      %v1080 = vmul.f32 %v1077, 1.442695
      %v1081 = vpow.pop %v1080
      %v1082 = vadd.f32 %v1079, 1.0
      %v1083 = vadd.f32 %v1081, 1.0
      %v1084 = vrcp.pop %v1082
      %v1085 = vmul.f32 1.0, %v1084
      %v1086 = vrcp.pop %v1083
      %v1087 = vmul.f32 1.0, %v1086
      %v1088 = vmul.f32 %v1070, %v1085
      %v1089 = vmul.f32 %v1073, %v1087
      %v1090 = vpack.c.bf16 %v1089, %v1088
      %v1091 = vld [vmem:[%s11] sm:$0xf]
      %v1092 = vld [vmem:[%s11 + $0x4] sm:$0xf]
      %v1093 = vld [vmem:[%s11 + $0x8] sm:$0xf]
      %v1094 = vld [vmem:[%s11 + $0xc] sm:$0xf]
      %v1095 = vld [vmem:[%s11 + $0x10] sm:$0xf]
      %v1096 = vld [vmem:[%s11 + $0x14] sm:$0xf]
      %v1097 = vld [vmem:[%s11 + $0x18] sm:$0xf]
      %v1098 = vld [vmem:[%s11 + $0x1c] sm:$0xf]
      %v1099 = vld [vmem:[%s11 + $0x20] sm:$0xf]
      %v1100 = vld [vmem:[%s11 + $0x24] sm:$0xf]
      %v1101 = vld [vmem:[%s11 + $0x28] sm:$0xf]
      %v1102 = vld [vmem:[%s11 + $0x2c] sm:$0xf]
      %v1103 = vld [vmem:[%s11 + $0x30] sm:$0xf]
      %v1104 = vld [vmem:[%s11 + $0x34] sm:$0xf]
      %v1105 = vld [vmem:[%s11 + $0x38] sm:$0xf]
      %v1106 = vld [vmem:[%s11 + $0x3c] sm:$0xf]
      %v1107 = vld [vmem:[%s13] sm:$0x1]
      %v1109 = vlaneseq
      %v1110 = vshrl.u32 %v1109, 7
      %v1111 = vsub.s32 0, %v1110
      %v1112 = vrot.slane %v1107, %v1111
      %v1130 = vunpack.c.l.b16 %v1091
      %v1131 = vunpack.c.l.b16 %v1092
      %v1132 = vunpack.c.l.b16 %v1093
      %v1133 = vunpack.c.l.b16 %v1094
      %v1134 = vunpack.c.l.b16 %v1095
      %v1135 = vunpack.c.l.b16 %v1096
      %v1136 = vunpack.c.l.b16 %v1097
      %v1137 = vunpack.c.l.b16 %v1098
      %v1138 = vunpack.c.l.b16 %v1099
      %v1139 = vunpack.c.l.b16 %v1100
      %v1140 = vunpack.c.l.b16 %v1101
      %v1141 = vunpack.c.l.b16 %v1102
      %v1142 = vunpack.c.l.b16 %v1103
      %v1143 = vunpack.c.l.b16 %v1104
      %v1144 = vunpack.c.l.b16 %v1105
      %v1145 = vunpack.c.l.b16 %v1106
      %v1146 = vpack.c.b16 %v1131, %v1130
      %v1147 = vpack.c.b16 %v1133, %v1132
      %v1148 = vpack.c.b16 %v1135, %v1134
      %v1149 = vpack.c.b16 %v1137, %v1136
      %v1150 = vpack.c.b16 %v1139, %v1138
      %v1151 = vpack.c.b16 %v1141, %v1140
      %v1152 = vpack.c.b16 %v1143, %v1142
      %v1153 = vpack.c.b16 %v1145, %v1144
      %1162 = vmatprep.subr.bf16.mxu0 0
      %1163 = vmatpush1.bf16.msra.mxu0 %v1153
      %1164 = vmatprep.subr.bf16.mxu0 0
      %1165 = vmatpush1.bf16.msra.mxu0 %v1152
      %1166 = vmatprep.subr.bf16.mxu0 0
      %1167 = vmatpush1.bf16.msra.mxu0 %v1151
      %1168 = vmatprep.subr.bf16.mxu0 0
      %1169 = vmatpush1.bf16.msra.mxu0 %v1150
      %1170 = vmatprep.subr.bf16.mxu0 0
      %1171 = vmatpush1.bf16.msra.mxu0 %v1149
      %1172 = vmatprep.subr.bf16.mxu0 0
      %1173 = vmatpush1.bf16.msra.mxu0 %v1148
      %1174 = vmatprep.subr.bf16.mxu0 0
      %1175 = vmatpush1.bf16.msra.mxu0 %v1147
      %1176 = vmatprep.subr.bf16.mxu0 0
      %1177 = vmatpush1.bf16.msra.mxu0 %v1146
      %1178 = vmatprep.subr.bf16.mxu0 0
      %1179 = vmatpush2.bf16.msra.mxu0 0
      %1180 = vmatprep.subr.bf16.mxu0 0
      %1181 = vmatpush2.bf16.msra.mxu0 0
      %1182 = vmatprep.subr.bf16.mxu0 0
      %1183 = vmatpush2.bf16.msra.mxu0 0
      %1184 = vmatprep.subr.bf16.mxu0 0
      %1185 = vmatpush2.bf16.msra.mxu0 0
      %1186 = vmatprep.subr.bf16.mxu0 0
      %1187 = vmatpush2.bf16.msra.mxu0 0
      %1188 = vmatprep.subr.bf16.mxu0 0
      %1189 = vmatpush2.bf16.msra.mxu0 0
      %1190 = vmatprep.subr.bf16.mxu0 0
      %1191 = vmatpush2.bf16.msra.mxu0 0
      %1192 = vmatprep.subr.bf16.mxu0 0
      %1193 = vmatpush2.bf16.msra.mxu0 0
      %1194 = vmatprep.mubr.bf16.mxu0 0
      %1195 = vmatmul.mubr.bf16.gmra.mxu0 %v1090
      %v1196 = vpop.f32.mrf.mxu0
      %v1197 = vadd.f32 %v1112, %v1196
      %v1198 = vpop.f32.mrf.mxu0
      %v1199 = vpop.f32.mrf.mxu0
      %v1200 = vadd.f32 %v1112, %v1199
      %v1201 = vpop.f32.mrf.mxu0
      %1202 = vdwg.mxu0
      %v1203 = vmul.f32 %v1197, 0.5
      %v1204 = vmul.f32 %v1200, 0.5
      %v1205 = vadd.f32 %v960, %v1203
      %v1206 = vadd.f32 %v961, %v1204
      %v1207 = vsel %vm962, %v1205, 0.0
      %1208 = vadd.xlane.f32.xlu0 %v1207
      %v1209 = vpop.xlane.xlu0 %1208
      %v1210 = vsel %vm962, %v1206, 0.0
      %1211 = vadd.xlane.f32.xlu0 %v1210
      %v1212 = vpop.xlane.xlu0 %1211
      %v1213 = vmul.f32 %v1209, %v969
      %v1214 = vmul.f32 %v1212, %v969
      %v1215 = vsub.f32 %v1205, %v1213
      %v1216 = vsub.f32 %v1206, %v1214
      %v1217 = vmul.f32 %v1215, %v1215
      %v1218 = vmul.f32 %v1216, %v1216
      %v1219 = vsel %vm962, %v1217, 0.0
      %1220 = vadd.xlane.f32.xlu0 %v1219
      %v1221 = vpop.xlane.xlu0 %1220
      %v1222 = vsel %vm962, %v1218, 0.0
      %1223 = vadd.xlane.f32.xlu0 %v1222
      %v1224 = vpop.xlane.xlu0 %1223
      %v1225 = vmul.f32 %v1221, %v969
      %v1226 = vmul.f32 %v1224, %v969
      %v1227 = vadd.f32 %v1225, 1e-05
      %v1228 = vadd.f32 %v1226, 1e-05
      %v1229 = vrsqrt.pop %v1227
      %v1230 = vrsqrt.pop %v1228
      %v1231 = vmul.f32 %v1215, %v1229
      %v1232 = vmul.f32 %v1216, %v1230
      %v1233 = vld [vmem:[%s15] sm:$0x1]
      %v1235 = vlaneseq
      %v1236 = vshrl.u32 %v1235, 7
      %v1237 = vsub.s32 0, %v1236
      %v1238 = vrot.slane %v1233, %v1237
      %v1240 = vmul.f32 %v1231, %v1238
      %v1241 = vmul.f32 %v1232, %v1238
      %v1242 = vld [vmem:[%s17] sm:$0x1]
      %v1244 = vlaneseq
      %v1245 = vshrl.u32 %v1244, 7
      %v1246 = vsub.s32 0, %v1245
      %v1247 = vrot.slane %v1242, %v1246
      %v1249 = vadd.f32 %v1240, %v1247
      %v1250 = vadd.f32 %v1241, %v1247
      %v1251 = vpack.c.bf16 %v1250, %v1249
      %v1252 = vld [vmem:[%s19] sm:$0xf]
      %v1253 = vld [vmem:[%s19 + $0x4] sm:$0xf]
      %v1254 = vld [vmem:[%s19 + $0x8] sm:$0xf]
      %v1255 = vld [vmem:[%s19 + $0xc] sm:$0xf]
      %v1260 = vunpack.c.l.b16 %v1252
      %v1261 = vunpack.c.l.b16 %v1253
      %v1262 = vunpack.c.l.b16 %v1254
      %v1263 = vunpack.c.l.b16 %v1255
      %v1264 = vpack.c.b16 %v1261, %v1260
      %v1265 = vpack.c.b16 %v1263, %v1262
      %v1269 = vsel %vm962, %v1251, 0
      %1271 = vmatprep.subr.bf16.mxu0 0
      %1272 = vmatpush1.bf16.msra.mxu0 0
      %1273 = vmatprep.subr.bf16.mxu0 0
      %1274 = vmatpush1.bf16.msra.mxu0 0
      %1275 = vmatprep.subr.bf16.mxu0 0
      %1276 = vmatpush1.bf16.msra.mxu0 0
      %1277 = vmatprep.subr.bf16.mxu0 0
      %1278 = vmatpush1.bf16.msra.mxu0 0
      %1279 = vmatprep.subr.bf16.mxu0 0
      %1280 = vmatpush1.bf16.msra.mxu0 0
      %1281 = vmatprep.subr.bf16.mxu0 0
      %1282 = vmatpush1.bf16.msra.mxu0 0
      %1283 = vmatprep.subr.bf16.mxu0 0
      %1284 = vmatpush1.bf16.msra.mxu0 %v1265
      %1285 = vmatprep.subr.bf16.mxu0 0
      %1286 = vmatpush1.bf16.msra.mxu0 %v1264
      %1287 = vmatprep.subr.bf16.mxu0 0
      %1288 = vmatpush2.bf16.msra.mxu0 0
      %1289 = vmatprep.subr.bf16.mxu0 0
      %1290 = vmatpush2.bf16.msra.mxu0 0
      %1291 = vmatprep.subr.bf16.mxu0 0
      %1292 = vmatpush2.bf16.msra.mxu0 0
      %1293 = vmatprep.subr.bf16.mxu0 0
      %1294 = vmatpush2.bf16.msra.mxu0 0
      %1295 = vmatprep.subr.bf16.mxu0 0
      %1296 = vmatpush2.bf16.msra.mxu0 0
      %1297 = vmatprep.subr.bf16.mxu0 0
      %1298 = vmatpush2.bf16.msra.mxu0 0
      %1299 = vmatprep.subr.bf16.mxu0 0
      %1300 = vmatpush2.bf16.msra.mxu0 0
      %1301 = vmatprep.subr.bf16.mxu0 0
      %1302 = vmatpush2.bf16.msra.mxu0 0
      %1303 = vmatprep.mubr.bf16.mxu0 0
      %1304 = vmatmul.mubr.bf16.gmra.mxu0 %v1269
      %v1305 = vpop.f32.mrf.mxu0
      %v1306 = vadd.f32 0.0, %v1305
      %v1307 = vpop.f32.mrf.mxu0
      %v1308 = vpop.f32.mrf.mxu0
      %v1309 = vadd.f32 0.0, %v1308
      %v1310 = vpop.f32.mrf.mxu0
      %1311 = vdwg.mxu0
      %v1312 = vld [vmem:[%s21] sm:$0xff]
      %v1313 = vld [vmem:[%s21 + $0x8] sm:$0xff]
      %v1314 = vld [vmem:[%s21 + $0x10] sm:$0xff]
      %v1315 = vld [vmem:[%s21 + $0x18] sm:$0xff]
      %v1316 = vld [vmem:[%s21 + $0x20] sm:$0xff]
      %v1317 = vld [vmem:[%s21 + $0x28] sm:$0xff]
      %v1318 = vld [vmem:[%s21 + $0x30] sm:$0xff]
      %v1319 = vld [vmem:[%s21 + $0x38] sm:$0xff]
      %v1320 = vld [vmem:[%s21 + $0x40] sm:$0xff]
      %v1321 = vld [vmem:[%s21 + $0x48] sm:$0xff]
      %v1322 = vld [vmem:[%s21 + $0x50] sm:$0xff]
      %v1323 = vld [vmem:[%s21 + $0x58] sm:$0xff]
      %v1324 = vld [vmem:[%s21 + $0x60] sm:$0xff]
      %v1325 = vld [vmem:[%s21 + $0x68] sm:$0xff]
      %v1326 = vld [vmem:[%s21 + $0x70] sm:$0xff]
      %v1327 = vld [vmem:[%s21 + $0x78] sm:$0xff]
      %v1328 = vlaneseq
      %v1329 = vand.u32 %v1328, 127
      %vm1330 = vcmp.lt.s32.totalorder %v1329, 9
      %1332 = vset.pattern.permute.xlu0 0
      %1333 = vperm.xlu0 %1332, %v1306
      %v1334 = vpop.permute.xlu0 %1333
      %1337 = vset.pattern.permute.xlu0 0
      %1338 = vperm.xlu0 %1337, %v1309
      %v1339 = vpop.permute.xlu0 %1338
      %v1341 = vmul.f32 %v1334, %v1312
      %v1342 = vmul.f32 %v1339, %v1313
      %v1343 = vadd.f32 %v1341, 0.0
      %v1344 = vadd.f32 %v1342, 0.0
      %1345 = vset.pattern.permute.xlu0 1
      %1346 = vperm.xlu0 %1345, %v1306
      %v1347 = vpop.permute.xlu0 %1346
      %1349 = vset.pattern.permute.xlu0 1
      %1350 = vperm.xlu0 %1349, %v1309
      %v1351 = vpop.permute.xlu0 %1350
      %v1353 = vmul.f32 %v1347, %v1314
      %v1354 = vmul.f32 %v1351, %v1315
      %v1355 = vadd.f32 %v1343, %v1353
      %v1356 = vadd.f32 %v1344, %v1354
      %1357 = vset.pattern.permute.xlu0 2
      %1358 = vperm.xlu0 %1357, %v1306
      %v1359 = vpop.permute.xlu0 %1358
      %1361 = vset.pattern.permute.xlu0 2
      %1362 = vperm.xlu0 %1361, %v1309
      %v1363 = vpop.permute.xlu0 %1362
      %v1365 = vmul.f32 %v1359, %v1316
      %v1366 = vmul.f32 %v1363, %v1317
      %v1367 = vadd.f32 %v1355, %v1365
      %v1368 = vadd.f32 %v1356, %v1366
      %1369 = vset.pattern.permute.xlu0 3
      %1370 = vperm.xlu0 %1369, %v1306
      %v1371 = vpop.permute.xlu0 %1370
      %1373 = vset.pattern.permute.xlu0 3
      %1374 = vperm.xlu0 %1373, %v1309
      %v1375 = vpop.permute.xlu0 %1374
      %v1377 = vmul.f32 %v1371, %v1318
      %v1378 = vmul.f32 %v1375, %v1319
      %v1379 = vadd.f32 %v1367, %v1377
      %v1380 = vadd.f32 %v1368, %v1378
      %1381 = vset.pattern.permute.xlu0 4
      %1382 = vperm.xlu0 %1381, %v1306
      %v1383 = vpop.permute.xlu0 %1382
      %1385 = vset.pattern.permute.xlu0 4
      %1386 = vperm.xlu0 %1385, %v1309
      %v1387 = vpop.permute.xlu0 %1386
      %v1389 = vmul.f32 %v1383, %v1320
      %v1390 = vmul.f32 %v1387, %v1321
      %v1391 = vadd.f32 %v1379, %v1389
      %v1392 = vadd.f32 %v1380, %v1390
      %1393 = vset.pattern.permute.xlu0 5
      %1394 = vperm.xlu0 %1393, %v1306
      %v1395 = vpop.permute.xlu0 %1394
      %1397 = vset.pattern.permute.xlu0 5
      %1398 = vperm.xlu0 %1397, %v1309
      %v1399 = vpop.permute.xlu0 %1398
      %v1401 = vmul.f32 %v1395, %v1322
      %v1402 = vmul.f32 %v1399, %v1323
      %v1403 = vadd.f32 %v1391, %v1401
      %v1404 = vadd.f32 %v1392, %v1402
      %1405 = vset.pattern.permute.xlu0 6
      %1406 = vperm.xlu0 %1405, %v1306
      %v1407 = vpop.permute.xlu0 %1406
      %1409 = vset.pattern.permute.xlu0 6
      %1410 = vperm.xlu0 %1409, %v1309
      %v1411 = vpop.permute.xlu0 %1410
      %v1413 = vmul.f32 %v1407, %v1324
      %v1414 = vmul.f32 %v1411, %v1325
      %v1415 = vadd.f32 %v1403, %v1413
      %v1416 = vadd.f32 %v1404, %v1414
      %1417 = vset.pattern.permute.xlu0 7
      %1418 = vperm.xlu0 %1417, %v1306
      %v1419 = vpop.permute.xlu0 %1418
      %1421 = vset.pattern.permute.xlu0 7
      %1422 = vperm.xlu0 %1421, %v1309
      %v1423 = vpop.permute.xlu0 %1422
      %v1425 = vmul.f32 %v1419, %v1326
      %v1426 = vmul.f32 %v1423, %v1327
      %v1427 = vadd.f32 %v1415, %v1425
      %v1428 = vadd.f32 %v1416, %v1426
      %1429 = vrot.lane.b32.xlu0 %v1306, 96
      %v1430 = vpop.permute.xlu0 %1429
      %1431 = vrot.lane.b32.xlu0 %v1309, 96
      %v1432 = vpop.permute.xlu0 %1431
      %vm1433 = vcmask 64512
      %v1434 = vsel %vm1433, %v1306, 0
      %v1436 = vsel %vm1433, %v1309, 0
      %v1438 = vsel %vm1433, %v1430, 0
      %v1440 = vsel %vm1433, %v1432, 0
      %1442 = vmatprep.subr.mxu0 0.0
      %1443 = vmatpush1.xpose.msra.mxu0 0.0
      %1444 = vmatprep.subr.mxu0 0.0
      %1445 = vmatpush1.xpose.msra.mxu0 0.0
      %1446 = vmatprep.subr.mxu0 0.0
      %1447 = vmatpush1.xpose.msra.mxu0 0.0
      %1448 = vmatprep.subr.mxu0 0.0
      %1449 = vmatpush1.xpose.msra.mxu0 0.0
      %1450 = vmatprep.subr.mxu0 0.0
      %1451 = vmatpush1.xpose.msra.mxu0 0.0
      %1452 = vmatprep.subr.mxu0 0.0
      %1453 = vmatpush1.xpose.msra.mxu0 0.0
      %1454 = vmatprep.subr.mxu0 0.0
      %1455 = vmatpush1.xpose.msra.mxu0 0.0
      %1456 = vmatprep.subr.mxu0 0.0
      %1457 = vmatpush1.xpose.msra.mxu0 0.0
      %1458 = vmatprep.subr.mxu0 0.0
      %1459 = vmatpush1.xpose.msra.mxu0 0.0
      %1460 = vmatprep.subr.mxu0 0.0
      %1461 = vmatpush1.xpose.msra.mxu0 0.0
      %1462 = vmatprep.subr.mxu0 0.0
      %1463 = vmatpush1.xpose.msra.mxu0 0.0
      %1464 = vmatprep.subr.mxu0 0.0
      %1465 = vmatpush1.xpose.msra.mxu0 0.0
      %1466 = vmatprep.subr.mxu0 0.0
      %1467 = vmatpush1.xpose.msra.mxu0 0.0
      %1468 = vmatprep.subr.mxu0 0.0
      %1469 = vmatpush1.xpose.msra.mxu0 0.0
      %1470 = vmatprep.subr.mxu0 0.0
      %1471 = vmatpush1.xpose.msra.mxu0 %v1440
      %1472 = vmatprep.subr.mxu0 0.0
      %1473 = vmatpush1.xpose.msra.mxu0 %v1438
      %1474 = vmatprep.subr.mxu0 0.0
      %1475 = vmatpush2.xpose.msra.mxu0 0.0
      %1476 = vmatprep.subr.mxu0 0.0
      %1477 = vmatpush2.xpose.msra.mxu0 0.0
      %1478 = vmatprep.subr.mxu0 0.0
      %1479 = vmatpush2.xpose.msra.mxu0 0.0
      %1480 = vmatprep.subr.mxu0 0.0
      %1481 = vmatpush2.xpose.msra.mxu0 0.0
      %1482 = vmatprep.subr.mxu0 0.0
      %1483 = vmatpush2.xpose.msra.mxu0 0.0
      %1484 = vmatprep.subr.mxu0 0.0
      %1485 = vmatpush2.xpose.msra.mxu0 0.0
      %1486 = vmatprep.subr.mxu0 0.0
      %1487 = vmatpush2.xpose.msra.mxu0 0.0
      %1488 = vmatprep.subr.mxu0 0.0
      %1489 = vmatpush2.xpose.msra.mxu0 0.0
      %1490 = vmatprep.subr.mxu0 0.0
      %1491 = vmatpush2.xpose.msra.mxu0 0.0
      %1492 = vmatprep.subr.mxu0 0.0
      %1493 = vmatpush2.xpose.msra.mxu0 0.0
      %1494 = vmatprep.subr.mxu0 0.0
      %1495 = vmatpush2.xpose.msra.mxu0 0.0
      %1496 = vmatprep.subr.mxu0 0.0
      %1497 = vmatpush2.xpose.msra.mxu0 0.0
      %1498 = vmatprep.subr.mxu0 0.0
      %1499 = vmatpush2.xpose.msra.mxu0 0.0
      %1500 = vmatprep.subr.mxu0 0.0
      %1501 = vmatpush2.xpose.msra.mxu0 0.0
      %1502 = vmatprep.subr.mxu0 0.0
      %1503 = vmatpush2.xpose.msra.mxu0 0.0
      %1504 = vmatprep.subr.mxu0 0.0
      %1505 = vmatpush2.xpose.msra.mxu0 0.0
      %1506 = vmatprep.mubr.f32.mxu0 0.0
      %1507 = vmatmul.mubr.f32.gmra.mxu0 %v1434
      %v1508 = vpop.f32.mrf.mxu0
      %v1509 = vadd.f32 %v1427, %v1508
      %v1510 = vpop.f32.mrf.mxu0
      %1511 = vmatprep.mubr.f32.mxu0 0.0
      %1512 = vmatmul.mubr.f32.gmra.mxu0 %v1436
      %v1513 = vpop.f32.mrf.mxu0
      %v1514 = vadd.f32 %v1428, %v1513
      %v1515 = vpop.f32.mrf.mxu0
      %1516 = vdwg.mxu0
      %v1517 = vmul.f32 %v1509, 0.35355338
      %v1518 = vmul.f32 %v1514, 0.35355338
      %v1519 = vsel %vm1330, %v1517, -1e+30
      %v1520 = vsel %vm1330, %v1518, -1e+30
      %vm1521 = vcmask 130048
      %v1522 = vsel %vm1521, %v1519, -inf
      %1523 = vmax.xlane.f32.xlu0 %v1522
      %v1524 = vpop.xlane.xlu0 %1523
      %v1525 = vsel %vm1521, %v1520, -inf
      %1526 = vmax.xlane.f32.xlu0 %v1525
      %v1527 = vpop.xlane.xlu0 %1526
      %v1528 = vsub.f32 %v1519, %v1524
      %v1529 = vsub.f32 %v1520, %v1527
      %v1530 = vmul.f32 %v1528, 1.442695
      %v1531 = vpow.pop %v1530
      %v1532 = vmul.f32 %v1529, 1.442695
      %v1533 = vpow.pop %v1532
      %v1534 = vsel %vm1521, %v1531, 0.0
      %1535 = vadd.xlane.f32.xlu0 %v1534
      %v1536 = vpop.xlane.xlu0 %1535
      %v1537 = vsel %vm1521, %v1533, 0.0
      %1538 = vadd.xlane.f32.xlu0 %v1537
      %v1539 = vpop.xlane.xlu0 %1538
      %v1540 = vrcp.pop %v1536
      %v1541 = vmul.f32 %v1531, %v1540
      %v1542 = vrcp.pop %v1539
      %v1543 = vmul.f32 %v1533, %v1542
      %1544 = vrot.lane.b32.xlu0 %v1306, 64
      %v1545 = vpop.permute.xlu0 %1544
      %1546 = vrot.lane.b32.xlu0 %v1309, 64
      %v1547 = vpop.permute.xlu0 %1546
      %v1551 = vsel %vm1521, %v1541, 0
      %v1554 = vsel %vm1521, %v1543, 0
      %1556 = vmatprep.subr.mxu0 0.0
      %1557 = vmatpush1.msra.mxu0 0.0
      %1558 = vmatprep.subr.mxu0 0.0
      %1559 = vmatpush1.msra.mxu0 0.0
      %1560 = vmatprep.subr.mxu0 0.0
      %1561 = vmatpush1.msra.mxu0 0.0
      %1562 = vmatprep.subr.mxu0 0.0
      %1563 = vmatpush1.msra.mxu0 0.0
      %1564 = vmatprep.subr.mxu0 0.0
      %1565 = vmatpush1.msra.mxu0 0.0
      %1566 = vmatprep.subr.mxu0 0.0
      %1567 = vmatpush1.msra.mxu0 0.0
      %1568 = vmatprep.subr.mxu0 0.0
      %1569 = vmatpush1.msra.mxu0 0.0
      %1570 = vmatprep.subr.mxu0 0.0
      %1571 = vmatpush1.msra.mxu0 0.0
      %1572 = vmatprep.subr.mxu0 0.0
      %1573 = vmatpush1.msra.mxu0 0.0
      %1574 = vmatprep.subr.mxu0 0.0
      %1575 = vmatpush1.msra.mxu0 0.0
      %1576 = vmatprep.subr.mxu0 0.0
      %1577 = vmatpush1.msra.mxu0 0.0
      %1578 = vmatprep.subr.mxu0 0.0
      %1579 = vmatpush1.msra.mxu0 0.0
      %1580 = vmatprep.subr.mxu0 0.0
      %1581 = vmatpush1.msra.mxu0 0.0
      %1582 = vmatprep.subr.mxu0 0.0
      %1583 = vmatpush1.msra.mxu0 0.0
      %1584 = vmatprep.subr.mxu0 0.0
      %1585 = vmatpush1.msra.mxu0 %v1547
      %1586 = vmatprep.subr.mxu0 0.0
      %1587 = vmatpush1.msra.mxu0 %v1545
      %1588 = vmatprep.subr.mxu0 0.0
      %1589 = vmatpush2.msra.mxu0 0.0
      %1590 = vmatprep.subr.mxu0 0.0
      %1591 = vmatpush2.msra.mxu0 0.0
      %1592 = vmatprep.subr.mxu0 0.0
      %1593 = vmatpush2.msra.mxu0 0.0
      %1594 = vmatprep.subr.mxu0 0.0
      %1595 = vmatpush2.msra.mxu0 0.0
      %1596 = vmatprep.subr.mxu0 0.0
      %1597 = vmatpush2.msra.mxu0 0.0
      %1598 = vmatprep.subr.mxu0 0.0
      %1599 = vmatpush2.msra.mxu0 0.0
      %1600 = vmatprep.subr.mxu0 0.0
      %1601 = vmatpush2.msra.mxu0 0.0
      %1602 = vmatprep.subr.mxu0 0.0
      %1603 = vmatpush2.msra.mxu0 0.0
      %1604 = vmatprep.subr.mxu0 0.0
      %1605 = vmatpush2.msra.mxu0 0.0
      %1606 = vmatprep.subr.mxu0 0.0
      %1607 = vmatpush2.msra.mxu0 0.0
      %1608 = vmatprep.subr.mxu0 0.0
      %1609 = vmatpush2.msra.mxu0 0.0
      %1610 = vmatprep.subr.mxu0 0.0
      %1611 = vmatpush2.msra.mxu0 0.0
      %1612 = vmatprep.subr.mxu0 0.0
      %1613 = vmatpush2.msra.mxu0 0.0
      %1614 = vmatprep.subr.mxu0 0.0
      %1615 = vmatpush2.msra.mxu0 0.0
      %1616 = vmatprep.subr.mxu0 0.0
      %1617 = vmatpush2.msra.mxu0 0.0
      %1618 = vmatprep.subr.mxu0 0.0
      %1619 = vmatpush2.msra.mxu0 0.0
      %1620 = vmatprep.mubr.f32.mxu0 0.0
      %1621 = vmatmul.mubr.f32.gmra.mxu0 %v1551
      %v1622 = vpop.f32.mrf.mxu0
      %v1623 = vadd.f32 0.0, %v1622
      %v1624 = vpop.f32.mrf.mxu0
      %1625 = vmatprep.mubr.f32.mxu0 0.0
      %1626 = vmatmul.mubr.f32.gmra.mxu0 %v1554
      %v1627 = vpop.f32.mrf.mxu0
      %v1628 = vadd.f32 0.0, %v1627
      %v1629 = vpop.f32.mrf.mxu0
      %1630 = vdwg.mxu0
      %1631 = vset.pattern.permute.xlu0 8
      %1632 = vperm.xlu0 %1631, %v1306
      %v1633 = vpop.permute.xlu0 %1632
      %1635 = vset.pattern.permute.xlu0 8
      %1636 = vperm.xlu0 %1635, %v1309
      %v1637 = vpop.permute.xlu0 %1636
      %v1639 = vmul.f32 %v1633, %v1312
      %v1640 = vmul.f32 %v1637, %v1313
      %v1641 = vadd.f32 %v1639, 0.0
      %v1642 = vadd.f32 %v1640, 0.0
      %1643 = vset.pattern.permute.xlu0 9
      %1644 = vperm.xlu0 %1643, %v1306
      %v1645 = vpop.permute.xlu0 %1644
      %1647 = vset.pattern.permute.xlu0 9
      %1648 = vperm.xlu0 %1647, %v1309
      %v1649 = vpop.permute.xlu0 %1648
      %v1651 = vmul.f32 %v1645, %v1314
      %v1652 = vmul.f32 %v1649, %v1315
      %v1653 = vadd.f32 %v1641, %v1651
      %v1654 = vadd.f32 %v1642, %v1652
      %1655 = vset.pattern.permute.xlu0 10
      %1656 = vperm.xlu0 %1655, %v1306
      %v1657 = vpop.permute.xlu0 %1656
      %1659 = vset.pattern.permute.xlu0 10
      %1660 = vperm.xlu0 %1659, %v1309
      %v1661 = vpop.permute.xlu0 %1660
      %v1663 = vmul.f32 %v1657, %v1316
      %v1664 = vmul.f32 %v1661, %v1317
      %v1665 = vadd.f32 %v1653, %v1663
      %v1666 = vadd.f32 %v1654, %v1664
      %1667 = vset.pattern.permute.xlu0 11
      %1668 = vperm.xlu0 %1667, %v1306
      %v1669 = vpop.permute.xlu0 %1668
      %1671 = vset.pattern.permute.xlu0 11
      %1672 = vperm.xlu0 %1671, %v1309
      %v1673 = vpop.permute.xlu0 %1672
      %v1675 = vmul.f32 %v1669, %v1318
      %v1676 = vmul.f32 %v1673, %v1319
      %v1677 = vadd.f32 %v1665, %v1675
      %v1678 = vadd.f32 %v1666, %v1676
      %1679 = vset.pattern.permute.xlu0 12
      %1680 = vperm.xlu0 %1679, %v1306
      %v1681 = vpop.permute.xlu0 %1680
      %1683 = vset.pattern.permute.xlu0 12
      %1684 = vperm.xlu0 %1683, %v1309
      %v1685 = vpop.permute.xlu0 %1684
      %v1687 = vmul.f32 %v1681, %v1320
      %v1688 = vmul.f32 %v1685, %v1321
      %v1689 = vadd.f32 %v1677, %v1687
      %v1690 = vadd.f32 %v1678, %v1688
      %1691 = vset.pattern.permute.xlu0 13
      %1692 = vperm.xlu0 %1691, %v1306
      %v1693 = vpop.permute.xlu0 %1692
      %1695 = vset.pattern.permute.xlu0 13
      %1696 = vperm.xlu0 %1695, %v1309
      %v1697 = vpop.permute.xlu0 %1696
      %v1699 = vmul.f32 %v1693, %v1322
      %v1700 = vmul.f32 %v1697, %v1323
      %v1701 = vadd.f32 %v1689, %v1699
      %v1702 = vadd.f32 %v1690, %v1700
      %1703 = vset.pattern.permute.xlu0 14
      %1704 = vperm.xlu0 %1703, %v1306
      %v1705 = vpop.permute.xlu0 %1704
      %1707 = vset.pattern.permute.xlu0 14
      %1708 = vperm.xlu0 %1707, %v1309
      %v1709 = vpop.permute.xlu0 %1708
      %v1711 = vmul.f32 %v1705, %v1324
      %v1712 = vmul.f32 %v1709, %v1325
      %v1713 = vadd.f32 %v1701, %v1711
      %v1714 = vadd.f32 %v1702, %v1712
      %1715 = vset.pattern.permute.xlu0 15
      %1716 = vperm.xlu0 %1715, %v1306
      %v1717 = vpop.permute.xlu0 %1716
      %1719 = vset.pattern.permute.xlu0 15
      %1720 = vperm.xlu0 %1719, %v1309
      %v1721 = vpop.permute.xlu0 %1720
      %v1723 = vmul.f32 %v1717, %v1326
      %v1724 = vmul.f32 %v1721, %v1327
      %v1725 = vadd.f32 %v1713, %v1723
      %v1726 = vadd.f32 %v1714, %v1724
      %1727 = vrot.lane.b32.xlu0 %v1306, 120
      %v1728 = vpop.permute.xlu0 %1727
      %1729 = vrot.lane.b32.xlu0 %v1309, 120
      %v1730 = vpop.permute.xlu0 %1729
      %1731 = vrot.lane.b32.xlu0 %v1306, 88
      %v1732 = vpop.permute.xlu0 %1731
      %1733 = vrot.lane.b32.xlu0 %v1309, 88
      %v1734 = vpop.permute.xlu0 %1733
      %v1735 = vsel %vm1433, %v1728, 0
      %v1737 = vsel %vm1433, %v1730, 0
      %v1739 = vsel %vm1433, %v1732, 0
      %v1741 = vsel %vm1433, %v1734, 0
      %1743 = vmatprep.subr.mxu0 0.0
      %1744 = vmatpush1.xpose.msra.mxu0 0.0
      %1745 = vmatprep.subr.mxu0 0.0
      %1746 = vmatpush1.xpose.msra.mxu0 0.0
      %1747 = vmatprep.subr.mxu0 0.0
      %1748 = vmatpush1.xpose.msra.mxu0 0.0
      %1749 = vmatprep.subr.mxu0 0.0
      %1750 = vmatpush1.xpose.msra.mxu0 0.0
      %1751 = vmatprep.subr.mxu0 0.0
      %1752 = vmatpush1.xpose.msra.mxu0 0.0
      %1753 = vmatprep.subr.mxu0 0.0
      %1754 = vmatpush1.xpose.msra.mxu0 0.0
      %1755 = vmatprep.subr.mxu0 0.0
      %1756 = vmatpush1.xpose.msra.mxu0 0.0
      %1757 = vmatprep.subr.mxu0 0.0
      %1758 = vmatpush1.xpose.msra.mxu0 0.0
      %1759 = vmatprep.subr.mxu0 0.0
      %1760 = vmatpush1.xpose.msra.mxu0 0.0
      %1761 = vmatprep.subr.mxu0 0.0
      %1762 = vmatpush1.xpose.msra.mxu0 0.0
      %1763 = vmatprep.subr.mxu0 0.0
      %1764 = vmatpush1.xpose.msra.mxu0 0.0
      %1765 = vmatprep.subr.mxu0 0.0
      %1766 = vmatpush1.xpose.msra.mxu0 0.0
      %1767 = vmatprep.subr.mxu0 0.0
      %1768 = vmatpush1.xpose.msra.mxu0 0.0
      %1769 = vmatprep.subr.mxu0 0.0
      %1770 = vmatpush1.xpose.msra.mxu0 0.0
      %1771 = vmatprep.subr.mxu0 0.0
      %1772 = vmatpush1.xpose.msra.mxu0 %v1741
      %1773 = vmatprep.subr.mxu0 0.0
      %1774 = vmatpush1.xpose.msra.mxu0 %v1739
      %1775 = vmatprep.subr.mxu0 0.0
      %1776 = vmatpush2.xpose.msra.mxu0 0.0
      %1777 = vmatprep.subr.mxu0 0.0
      %1778 = vmatpush2.xpose.msra.mxu0 0.0
      %1779 = vmatprep.subr.mxu0 0.0
      %1780 = vmatpush2.xpose.msra.mxu0 0.0
      %1781 = vmatprep.subr.mxu0 0.0
      %1782 = vmatpush2.xpose.msra.mxu0 0.0
      %1783 = vmatprep.subr.mxu0 0.0
      %1784 = vmatpush2.xpose.msra.mxu0 0.0
      %1785 = vmatprep.subr.mxu0 0.0
      %1786 = vmatpush2.xpose.msra.mxu0 0.0
      %1787 = vmatprep.subr.mxu0 0.0
      %1788 = vmatpush2.xpose.msra.mxu0 0.0
      %1789 = vmatprep.subr.mxu0 0.0
      %1790 = vmatpush2.xpose.msra.mxu0 0.0
      %1791 = vmatprep.subr.mxu0 0.0
      %1792 = vmatpush2.xpose.msra.mxu0 0.0
      %1793 = vmatprep.subr.mxu0 0.0
      %1794 = vmatpush2.xpose.msra.mxu0 0.0
      %1795 = vmatprep.subr.mxu0 0.0
      %1796 = vmatpush2.xpose.msra.mxu0 0.0
      %1797 = vmatprep.subr.mxu0 0.0
      %1798 = vmatpush2.xpose.msra.mxu0 0.0
      %1799 = vmatprep.subr.mxu0 0.0
      %1800 = vmatpush2.xpose.msra.mxu0 0.0
      %1801 = vmatprep.subr.mxu0 0.0
      %1802 = vmatpush2.xpose.msra.mxu0 0.0
      %1803 = vmatprep.subr.mxu0 0.0
      %1804 = vmatpush2.xpose.msra.mxu0 0.0
      %1805 = vmatprep.subr.mxu0 0.0
      %1806 = vmatpush2.xpose.msra.mxu0 0.0
      %1807 = vmatprep.mubr.f32.mxu0 0.0
      %1808 = vmatmul.mubr.f32.gmra.mxu0 %v1735
      %v1809 = vpop.f32.mrf.mxu0
      %v1810 = vadd.f32 %v1725, %v1809
      %v1811 = vpop.f32.mrf.mxu0
      %1812 = vmatprep.mubr.f32.mxu0 0.0
      %1813 = vmatmul.mubr.f32.gmra.mxu0 %v1737
      %v1814 = vpop.f32.mrf.mxu0
      %v1815 = vadd.f32 %v1726, %v1814
      %v1816 = vpop.f32.mrf.mxu0
      %1817 = vdwg.mxu0
      %v1818 = vmul.f32 %v1810, 0.35355338
      %v1819 = vmul.f32 %v1815, 0.35355338
      %v1820 = vsel %vm1330, %v1818, -1e+30
      %v1821 = vsel %vm1330, %v1819, -1e+30
      %v1822 = vsel %vm1521, %v1820, -inf
      %1823 = vmax.xlane.f32.xlu0 %v1822
      %v1824 = vpop.xlane.xlu0 %1823
      %v1825 = vsel %vm1521, %v1821, -inf
      %1826 = vmax.xlane.f32.xlu0 %v1825
      %v1827 = vpop.xlane.xlu0 %1826
      %v1828 = vsub.f32 %v1820, %v1824
      %v1829 = vsub.f32 %v1821, %v1827
      %v1830 = vmul.f32 %v1828, 1.442695
      %v1831 = vpow.pop %v1830
      %v1832 = vmul.f32 %v1829, 1.442695
      %v1833 = vpow.pop %v1832
      %v1834 = vsel %vm1521, %v1831, 0.0
      %1835 = vadd.xlane.f32.xlu0 %v1834
      %v1836 = vpop.xlane.xlu0 %1835
      %v1837 = vsel %vm1521, %v1833, 0.0
      %1838 = vadd.xlane.f32.xlu0 %v1837
      %v1839 = vpop.xlane.xlu0 %1838
      %v1840 = vrcp.pop %v1836
      %v1841 = vmul.f32 %v1831, %v1840
      %v1842 = vrcp.pop %v1839
      %v1843 = vmul.f32 %v1833, %v1842
      %1844 = vrot.lane.b32.xlu0 %v1306, 56
      %v1845 = vpop.permute.xlu0 %1844
      %1846 = vrot.lane.b32.xlu0 %v1309, 56
      %v1847 = vpop.permute.xlu0 %1846
      %v1851 = vsel %vm1521, %v1841, 0
      %v1854 = vsel %vm1521, %v1843, 0
      %1856 = vmatprep.subr.mxu0 0.0
      %1857 = vmatpush1.msra.mxu0 0.0
      %1858 = vmatprep.subr.mxu0 0.0
      %1859 = vmatpush1.msra.mxu0 0.0
      %1860 = vmatprep.subr.mxu0 0.0
      %1861 = vmatpush1.msra.mxu0 0.0
      %1862 = vmatprep.subr.mxu0 0.0
      %1863 = vmatpush1.msra.mxu0 0.0
      %1864 = vmatprep.subr.mxu0 0.0
      %1865 = vmatpush1.msra.mxu0 0.0
      %1866 = vmatprep.subr.mxu0 0.0
      %1867 = vmatpush1.msra.mxu0 0.0
      %1868 = vmatprep.subr.mxu0 0.0
      %1869 = vmatpush1.msra.mxu0 0.0
      %1870 = vmatprep.subr.mxu0 0.0
      %1871 = vmatpush1.msra.mxu0 0.0
      %1872 = vmatprep.subr.mxu0 0.0
      %1873 = vmatpush1.msra.mxu0 0.0
      %1874 = vmatprep.subr.mxu0 0.0
      %1875 = vmatpush1.msra.mxu0 0.0
      %1876 = vmatprep.subr.mxu0 0.0
      %1877 = vmatpush1.msra.mxu0 0.0
      %1878 = vmatprep.subr.mxu0 0.0
      %1879 = vmatpush1.msra.mxu0 0.0
      %1880 = vmatprep.subr.mxu0 0.0
      %1881 = vmatpush1.msra.mxu0 0.0
      %1882 = vmatprep.subr.mxu0 0.0
      %1883 = vmatpush1.msra.mxu0 0.0
      %1884 = vmatprep.subr.mxu0 0.0
      %1885 = vmatpush1.msra.mxu0 %v1847
      %1886 = vmatprep.subr.mxu0 0.0
      %1887 = vmatpush1.msra.mxu0 %v1845
      %1888 = vmatprep.subr.mxu0 0.0
      %1889 = vmatpush2.msra.mxu0 0.0
      %1890 = vmatprep.subr.mxu0 0.0
      %1891 = vmatpush2.msra.mxu0 0.0
      %1892 = vmatprep.subr.mxu0 0.0
      %1893 = vmatpush2.msra.mxu0 0.0
      %1894 = vmatprep.subr.mxu0 0.0
      %1895 = vmatpush2.msra.mxu0 0.0
      %1896 = vmatprep.subr.mxu0 0.0
      %1897 = vmatpush2.msra.mxu0 0.0
      %1898 = vmatprep.subr.mxu0 0.0
      %1899 = vmatpush2.msra.mxu0 0.0
      %1900 = vmatprep.subr.mxu0 0.0
      %1901 = vmatpush2.msra.mxu0 0.0
      %1902 = vmatprep.subr.mxu0 0.0
      %1903 = vmatpush2.msra.mxu0 0.0
      %1904 = vmatprep.subr.mxu0 0.0
      %1905 = vmatpush2.msra.mxu0 0.0
      %1906 = vmatprep.subr.mxu0 0.0
      %1907 = vmatpush2.msra.mxu0 0.0
      %1908 = vmatprep.subr.mxu0 0.0
      %1909 = vmatpush2.msra.mxu0 0.0
      %1910 = vmatprep.subr.mxu0 0.0
      %1911 = vmatpush2.msra.mxu0 0.0
      %1912 = vmatprep.subr.mxu0 0.0
      %1913 = vmatpush2.msra.mxu0 0.0
      %1914 = vmatprep.subr.mxu0 0.0
      %1915 = vmatpush2.msra.mxu0 0.0
      %1916 = vmatprep.subr.mxu0 0.0
      %1917 = vmatpush2.msra.mxu0 0.0
      %1918 = vmatprep.subr.mxu0 0.0
      %1919 = vmatpush2.msra.mxu0 0.0
      %1920 = vmatprep.mubr.f32.mxu0 0.0
      %1921 = vmatmul.mubr.f32.gmra.mxu0 %v1851
      %v1922 = vpop.f32.mrf.mxu0
      %v1923 = vadd.f32 0.0, %v1922
      %v1924 = vpop.f32.mrf.mxu0
      %1925 = vmatprep.mubr.f32.mxu0 0.0
      %1926 = vmatmul.mubr.f32.gmra.mxu0 %v1854
      %v1927 = vpop.f32.mrf.mxu0
      %v1928 = vadd.f32 0.0, %v1927
      %v1929 = vpop.f32.mrf.mxu0
      %1930 = vdwg.mxu0
      %1931 = vset.pattern.permute.xlu0 16
      %1932 = vperm.xlu0 %1931, %v1306
      %v1933 = vpop.permute.xlu0 %1932
      %1935 = vset.pattern.permute.xlu0 16
      %1936 = vperm.xlu0 %1935, %v1309
      %v1937 = vpop.permute.xlu0 %1936
      %v1939 = vmul.f32 %v1933, %v1312
      %v1940 = vmul.f32 %v1937, %v1313
      %v1941 = vadd.f32 %v1939, 0.0
      %v1942 = vadd.f32 %v1940, 0.0
      %1943 = vset.pattern.permute.xlu0 17
      %1944 = vperm.xlu0 %1943, %v1306
      %v1945 = vpop.permute.xlu0 %1944
      %1947 = vset.pattern.permute.xlu0 17
      %1948 = vperm.xlu0 %1947, %v1309
      %v1949 = vpop.permute.xlu0 %1948
      %v1951 = vmul.f32 %v1945, %v1314
      %v1952 = vmul.f32 %v1949, %v1315
      %v1953 = vadd.f32 %v1941, %v1951
      %v1954 = vadd.f32 %v1942, %v1952
      %1955 = vset.pattern.permute.xlu0 18
      %1956 = vperm.xlu0 %1955, %v1306
      %v1957 = vpop.permute.xlu0 %1956
      %1959 = vset.pattern.permute.xlu0 18
      %1960 = vperm.xlu0 %1959, %v1309
      %v1961 = vpop.permute.xlu0 %1960
      %v1963 = vmul.f32 %v1957, %v1316
      %v1964 = vmul.f32 %v1961, %v1317
      %v1965 = vadd.f32 %v1953, %v1963
      %v1966 = vadd.f32 %v1954, %v1964
      %1967 = vset.pattern.permute.xlu0 19
      %1968 = vperm.xlu0 %1967, %v1306
      %v1969 = vpop.permute.xlu0 %1968
      %1971 = vset.pattern.permute.xlu0 19
      %1972 = vperm.xlu0 %1971, %v1309
      %v1973 = vpop.permute.xlu0 %1972
      %v1975 = vmul.f32 %v1969, %v1318
      %v1976 = vmul.f32 %v1973, %v1319
      %v1977 = vadd.f32 %v1965, %v1975
      %v1978 = vadd.f32 %v1966, %v1976
      %1979 = vset.pattern.permute.xlu0 20
      %1980 = vperm.xlu0 %1979, %v1306
      %v1981 = vpop.permute.xlu0 %1980
      %1983 = vset.pattern.permute.xlu0 20
      %1984 = vperm.xlu0 %1983, %v1309
      %v1985 = vpop.permute.xlu0 %1984
      %v1987 = vmul.f32 %v1981, %v1320
      %v1988 = vmul.f32 %v1985, %v1321
      %v1989 = vadd.f32 %v1977, %v1987
      %v1990 = vadd.f32 %v1978, %v1988
      %1991 = vset.pattern.permute.xlu0 21
      %1992 = vperm.xlu0 %1991, %v1306
      %v1993 = vpop.permute.xlu0 %1992
      %1995 = vset.pattern.permute.xlu0 21
      %1996 = vperm.xlu0 %1995, %v1309
      %v1997 = vpop.permute.xlu0 %1996
      %v1999 = vmul.f32 %v1993, %v1322
      %v2000 = vmul.f32 %v1997, %v1323
      %v2001 = vadd.f32 %v1989, %v1999
      %v2002 = vadd.f32 %v1990, %v2000
      %2003 = vset.pattern.permute.xlu0 22
      %2004 = vperm.xlu0 %2003, %v1306
      %v2005 = vpop.permute.xlu0 %2004
      %2007 = vset.pattern.permute.xlu0 22
      %2008 = vperm.xlu0 %2007, %v1309
      %v2009 = vpop.permute.xlu0 %2008
      %v2011 = vmul.f32 %v2005, %v1324
      %v2012 = vmul.f32 %v2009, %v1325
      %v2013 = vadd.f32 %v2001, %v2011
      %v2014 = vadd.f32 %v2002, %v2012
      %2015 = vset.pattern.permute.xlu0 23
      %2016 = vperm.xlu0 %2015, %v1306
      %v2017 = vpop.permute.xlu0 %2016
      %2019 = vset.pattern.permute.xlu0 23
      %2020 = vperm.xlu0 %2019, %v1309
      %v2021 = vpop.permute.xlu0 %2020
      %v2023 = vmul.f32 %v2017, %v1326
      %v2024 = vmul.f32 %v2021, %v1327
      %v2025 = vadd.f32 %v2013, %v2023
      %v2026 = vadd.f32 %v2014, %v2024
      %2027 = vrot.lane.b32.xlu0 %v1306, 112
      %v2028 = vpop.permute.xlu0 %2027
      %2029 = vrot.lane.b32.xlu0 %v1309, 112
      %v2030 = vpop.permute.xlu0 %2029
      %2031 = vrot.lane.b32.xlu0 %v1306, 80
      %v2032 = vpop.permute.xlu0 %2031
      %2033 = vrot.lane.b32.xlu0 %v1309, 80
      %v2034 = vpop.permute.xlu0 %2033
      %v2035 = vsel %vm1433, %v2028, 0
      %v2037 = vsel %vm1433, %v2030, 0
      %v2039 = vsel %vm1433, %v2032, 0
      %v2041 = vsel %vm1433, %v2034, 0
      %2043 = vmatprep.subr.mxu0 0.0
      %2044 = vmatpush1.xpose.msra.mxu0 0.0
      %2045 = vmatprep.subr.mxu0 0.0
      %2046 = vmatpush1.xpose.msra.mxu0 0.0
      %2047 = vmatprep.subr.mxu0 0.0
      %2048 = vmatpush1.xpose.msra.mxu0 0.0
      %2049 = vmatprep.subr.mxu0 0.0
      %2050 = vmatpush1.xpose.msra.mxu0 0.0
      %2051 = vmatprep.subr.mxu0 0.0
      %2052 = vmatpush1.xpose.msra.mxu0 0.0
      %2053 = vmatprep.subr.mxu0 0.0
      %2054 = vmatpush1.xpose.msra.mxu0 0.0
      %2055 = vmatprep.subr.mxu0 0.0
      %2056 = vmatpush1.xpose.msra.mxu0 0.0
      %2057 = vmatprep.subr.mxu0 0.0
      %2058 = vmatpush1.xpose.msra.mxu0 0.0
      %2059 = vmatprep.subr.mxu0 0.0
      %2060 = vmatpush1.xpose.msra.mxu0 0.0
      %2061 = vmatprep.subr.mxu0 0.0
      %2062 = vmatpush1.xpose.msra.mxu0 0.0
      %2063 = vmatprep.subr.mxu0 0.0
      %2064 = vmatpush1.xpose.msra.mxu0 0.0
      %2065 = vmatprep.subr.mxu0 0.0
      %2066 = vmatpush1.xpose.msra.mxu0 0.0
      %2067 = vmatprep.subr.mxu0 0.0
      %2068 = vmatpush1.xpose.msra.mxu0 0.0
      %2069 = vmatprep.subr.mxu0 0.0
      %2070 = vmatpush1.xpose.msra.mxu0 0.0
      %2071 = vmatprep.subr.mxu0 0.0
      %2072 = vmatpush1.xpose.msra.mxu0 %v2041
      %2073 = vmatprep.subr.mxu0 0.0
      %2074 = vmatpush1.xpose.msra.mxu0 %v2039
      %2075 = vmatprep.subr.mxu0 0.0
      %2076 = vmatpush2.xpose.msra.mxu0 0.0
      %2077 = vmatprep.subr.mxu0 0.0
      %2078 = vmatpush2.xpose.msra.mxu0 0.0
      %2079 = vmatprep.subr.mxu0 0.0
      %2080 = vmatpush2.xpose.msra.mxu0 0.0
      %2081 = vmatprep.subr.mxu0 0.0
      %2082 = vmatpush2.xpose.msra.mxu0 0.0
      %2083 = vmatprep.subr.mxu0 0.0
      %2084 = vmatpush2.xpose.msra.mxu0 0.0
      %2085 = vmatprep.subr.mxu0 0.0
      %2086 = vmatpush2.xpose.msra.mxu0 0.0
      %2087 = vmatprep.subr.mxu0 0.0
      %2088 = vmatpush2.xpose.msra.mxu0 0.0
      %2089 = vmatprep.subr.mxu0 0.0
      %2090 = vmatpush2.xpose.msra.mxu0 0.0
      %2091 = vmatprep.subr.mxu0 0.0
      %2092 = vmatpush2.xpose.msra.mxu0 0.0
      %2093 = vmatprep.subr.mxu0 0.0
      %2094 = vmatpush2.xpose.msra.mxu0 0.0
      %2095 = vmatprep.subr.mxu0 0.0
      %2096 = vmatpush2.xpose.msra.mxu0 0.0
      %2097 = vmatprep.subr.mxu0 0.0
      %2098 = vmatpush2.xpose.msra.mxu0 0.0
      %2099 = vmatprep.subr.mxu0 0.0
      %2100 = vmatpush2.xpose.msra.mxu0 0.0
      %2101 = vmatprep.subr.mxu0 0.0
      %2102 = vmatpush2.xpose.msra.mxu0 0.0
      %2103 = vmatprep.subr.mxu0 0.0
      %2104 = vmatpush2.xpose.msra.mxu0 0.0
      %2105 = vmatprep.subr.mxu0 0.0
      %2106 = vmatpush2.xpose.msra.mxu0 0.0
      %2107 = vmatprep.mubr.f32.mxu0 0.0
      %2108 = vmatmul.mubr.f32.gmra.mxu0 %v2035
      %v2109 = vpop.f32.mrf.mxu0
      %v2110 = vadd.f32 %v2025, %v2109
      %v2111 = vpop.f32.mrf.mxu0
      %2112 = vmatprep.mubr.f32.mxu0 0.0
      %2113 = vmatmul.mubr.f32.gmra.mxu0 %v2037
      %v2114 = vpop.f32.mrf.mxu0
      %v2115 = vadd.f32 %v2026, %v2114
      %v2116 = vpop.f32.mrf.mxu0
      %2117 = vdwg.mxu0
      %v2118 = vmul.f32 %v2110, 0.35355338
      %v2119 = vmul.f32 %v2115, 0.35355338
      %v2120 = vsel %vm1330, %v2118, -1e+30
      %v2121 = vsel %vm1330, %v2119, -1e+30
      %v2122 = vsel %vm1521, %v2120, -inf
      %2123 = vmax.xlane.f32.xlu0 %v2122
      %v2124 = vpop.xlane.xlu0 %2123
      %v2125 = vsel %vm1521, %v2121, -inf
      %2126 = vmax.xlane.f32.xlu0 %v2125
      %v2127 = vpop.xlane.xlu0 %2126
      %v2128 = vsub.f32 %v2120, %v2124
      %v2129 = vsub.f32 %v2121, %v2127
      %v2130 = vmul.f32 %v2128, 1.442695
      %v2131 = vpow.pop %v2130
      %v2132 = vmul.f32 %v2129, 1.442695
      %v2133 = vpow.pop %v2132
      %v2134 = vsel %vm1521, %v2131, 0.0
      %2135 = vadd.xlane.f32.xlu0 %v2134
      %v2136 = vpop.xlane.xlu0 %2135
      %v2137 = vsel %vm1521, %v2133, 0.0
      %2138 = vadd.xlane.f32.xlu0 %v2137
      %v2139 = vpop.xlane.xlu0 %2138
      %v2140 = vrcp.pop %v2136
      %v2141 = vmul.f32 %v2131, %v2140
      %v2142 = vrcp.pop %v2139
      %v2143 = vmul.f32 %v2133, %v2142
      %2144 = vrot.lane.b32.xlu0 %v1306, 48
      %v2145 = vpop.permute.xlu0 %2144
      %2146 = vrot.lane.b32.xlu0 %v1309, 48
      %v2147 = vpop.permute.xlu0 %2146
      %v2151 = vsel %vm1521, %v2141, 0
      %v2154 = vsel %vm1521, %v2143, 0
      %2156 = vmatprep.subr.mxu0 0.0
      %2157 = vmatpush1.msra.mxu0 0.0
      %2158 = vmatprep.subr.mxu0 0.0
      %2159 = vmatpush1.msra.mxu0 0.0
      %2160 = vmatprep.subr.mxu0 0.0
      %2161 = vmatpush1.msra.mxu0 0.0
      %2162 = vmatprep.subr.mxu0 0.0
      %2163 = vmatpush1.msra.mxu0 0.0
      %2164 = vmatprep.subr.mxu0 0.0
      %2165 = vmatpush1.msra.mxu0 0.0
      %2166 = vmatprep.subr.mxu0 0.0
      %2167 = vmatpush1.msra.mxu0 0.0
      %2168 = vmatprep.subr.mxu0 0.0
      %2169 = vmatpush1.msra.mxu0 0.0
      %2170 = vmatprep.subr.mxu0 0.0
      %2171 = vmatpush1.msra.mxu0 0.0
      %2172 = vmatprep.subr.mxu0 0.0
      %2173 = vmatpush1.msra.mxu0 0.0
      %2174 = vmatprep.subr.mxu0 0.0
      %2175 = vmatpush1.msra.mxu0 0.0
      %2176 = vmatprep.subr.mxu0 0.0
      %2177 = vmatpush1.msra.mxu0 0.0
      %2178 = vmatprep.subr.mxu0 0.0
      %2179 = vmatpush1.msra.mxu0 0.0
      %2180 = vmatprep.subr.mxu0 0.0
      %2181 = vmatpush1.msra.mxu0 0.0
      %2182 = vmatprep.subr.mxu0 0.0
      %2183 = vmatpush1.msra.mxu0 0.0
      %2184 = vmatprep.subr.mxu0 0.0
      %2185 = vmatpush1.msra.mxu0 %v2147
      %2186 = vmatprep.subr.mxu0 0.0
      %2187 = vmatpush1.msra.mxu0 %v2145
      %2188 = vmatprep.subr.mxu0 0.0
      %2189 = vmatpush2.msra.mxu0 0.0
      %2190 = vmatprep.subr.mxu0 0.0
      %2191 = vmatpush2.msra.mxu0 0.0
      %2192 = vmatprep.subr.mxu0 0.0
      %2193 = vmatpush2.msra.mxu0 0.0
      %2194 = vmatprep.subr.mxu0 0.0
      %2195 = vmatpush2.msra.mxu0 0.0
      %2196 = vmatprep.subr.mxu0 0.0
      %2197 = vmatpush2.msra.mxu0 0.0
      %2198 = vmatprep.subr.mxu0 0.0
      %2199 = vmatpush2.msra.mxu0 0.0
      %2200 = vmatprep.subr.mxu0 0.0
      %2201 = vmatpush2.msra.mxu0 0.0
      %2202 = vmatprep.subr.mxu0 0.0
      %2203 = vmatpush2.msra.mxu0 0.0
      %2204 = vmatprep.subr.mxu0 0.0
      %2205 = vmatpush2.msra.mxu0 0.0
      %2206 = vmatprep.subr.mxu0 0.0
      %2207 = vmatpush2.msra.mxu0 0.0
      %2208 = vmatprep.subr.mxu0 0.0
      %2209 = vmatpush2.msra.mxu0 0.0
      %2210 = vmatprep.subr.mxu0 0.0
      %2211 = vmatpush2.msra.mxu0 0.0
      %2212 = vmatprep.subr.mxu0 0.0
      %2213 = vmatpush2.msra.mxu0 0.0
      %2214 = vmatprep.subr.mxu0 0.0
      %2215 = vmatpush2.msra.mxu0 0.0
      %2216 = vmatprep.subr.mxu0 0.0
      %2217 = vmatpush2.msra.mxu0 0.0
      %2218 = vmatprep.subr.mxu0 0.0
      %2219 = vmatpush2.msra.mxu0 0.0
      %2220 = vmatprep.mubr.f32.mxu0 0.0
      %2221 = vmatmul.mubr.f32.gmra.mxu0 %v2151
      %v2222 = vpop.f32.mrf.mxu0
      %v2223 = vadd.f32 0.0, %v2222
      %v2224 = vpop.f32.mrf.mxu0
      %2225 = vmatprep.mubr.f32.mxu0 0.0
      %2226 = vmatmul.mubr.f32.gmra.mxu0 %v2154
      %v2227 = vpop.f32.mrf.mxu0
      %v2228 = vadd.f32 0.0, %v2227
      %v2229 = vpop.f32.mrf.mxu0
      %2230 = vdwg.mxu0
      %2231 = vset.pattern.permute.xlu0 24
      %2232 = vperm.xlu0 %2231, %v1306
      %v2233 = vpop.permute.xlu0 %2232
      %2235 = vset.pattern.permute.xlu0 24
      %2236 = vperm.xlu0 %2235, %v1309
      %v2237 = vpop.permute.xlu0 %2236
      %v2239 = vmul.f32 %v2233, %v1312
      %v2240 = vmul.f32 %v2237, %v1313
      %v2241 = vadd.f32 %v2239, 0.0
      %v2242 = vadd.f32 %v2240, 0.0
      %2243 = vset.pattern.permute.xlu0 25
      %2244 = vperm.xlu0 %2243, %v1306
      %v2245 = vpop.permute.xlu0 %2244
      %2247 = vset.pattern.permute.xlu0 25
      %2248 = vperm.xlu0 %2247, %v1309
      %v2249 = vpop.permute.xlu0 %2248
      %v2251 = vmul.f32 %v2245, %v1314
      %v2252 = vmul.f32 %v2249, %v1315
      %v2253 = vadd.f32 %v2241, %v2251
      %v2254 = vadd.f32 %v2242, %v2252
      %2255 = vset.pattern.permute.xlu0 26
      %2256 = vperm.xlu0 %2255, %v1306
      %v2257 = vpop.permute.xlu0 %2256
      %2259 = vset.pattern.permute.xlu0 26
      %2260 = vperm.xlu0 %2259, %v1309
      %v2261 = vpop.permute.xlu0 %2260
      %v2263 = vmul.f32 %v2257, %v1316
      %v2264 = vmul.f32 %v2261, %v1317
      %v2265 = vadd.f32 %v2253, %v2263
      %v2266 = vadd.f32 %v2254, %v2264
      %2267 = vset.pattern.permute.xlu0 27
      %2268 = vperm.xlu0 %2267, %v1306
      %v2269 = vpop.permute.xlu0 %2268
      %2271 = vset.pattern.permute.xlu0 27
      %2272 = vperm.xlu0 %2271, %v1309
      %v2273 = vpop.permute.xlu0 %2272
      %v2275 = vmul.f32 %v2269, %v1318
      %v2276 = vmul.f32 %v2273, %v1319
      %v2277 = vadd.f32 %v2265, %v2275
      %v2278 = vadd.f32 %v2266, %v2276
      %2279 = vset.pattern.permute.xlu0 28
      %2280 = vperm.xlu0 %2279, %v1306
      %v2281 = vpop.permute.xlu0 %2280
      %2283 = vset.pattern.permute.xlu0 28
      %2284 = vperm.xlu0 %2283, %v1309
      %v2285 = vpop.permute.xlu0 %2284
      %v2287 = vmul.f32 %v2281, %v1320
      %v2288 = vmul.f32 %v2285, %v1321
      %v2289 = vadd.f32 %v2277, %v2287
      %v2290 = vadd.f32 %v2278, %v2288
      %2291 = vset.pattern.permute.xlu0 29
      %2292 = vperm.xlu0 %2291, %v1306
      %v2293 = vpop.permute.xlu0 %2292
      %2295 = vset.pattern.permute.xlu0 29
      %2296 = vperm.xlu0 %2295, %v1309
      %v2297 = vpop.permute.xlu0 %2296
      %v2299 = vmul.f32 %v2293, %v1322
      %v2300 = vmul.f32 %v2297, %v1323
      %v2301 = vadd.f32 %v2289, %v2299
      %v2302 = vadd.f32 %v2290, %v2300
      %2303 = vset.pattern.permute.xlu0 30
      %2304 = vperm.xlu0 %2303, %v1306
      %v2305 = vpop.permute.xlu0 %2304
      %2307 = vset.pattern.permute.xlu0 30
      %2308 = vperm.xlu0 %2307, %v1309
      %v2309 = vpop.permute.xlu0 %2308
      %v2311 = vmul.f32 %v2305, %v1324
      %v2312 = vmul.f32 %v2309, %v1325
      %v2313 = vadd.f32 %v2301, %v2311
      %v2314 = vadd.f32 %v2302, %v2312
      %2315 = vset.pattern.permute.xlu0 31
      %2316 = vperm.xlu0 %2315, %v1306
      %v2317 = vpop.permute.xlu0 %2316
      %2319 = vset.pattern.permute.xlu0 31
      %2320 = vperm.xlu0 %2319, %v1309
      %v2321 = vpop.permute.xlu0 %2320
      %v2323 = vmul.f32 %v2317, %v1326
      %v2324 = vmul.f32 %v2321, %v1327
      %v2325 = vadd.f32 %v2313, %v2323
      %v2326 = vadd.f32 %v2314, %v2324
      %2327 = vrot.lane.b32.xlu0 %v1306, 104
      %v2328 = vpop.permute.xlu0 %2327
      %2329 = vrot.lane.b32.xlu0 %v1309, 104
      %v2330 = vpop.permute.xlu0 %2329
      %2331 = vrot.lane.b32.xlu0 %v1306, 72
      %v2332 = vpop.permute.xlu0 %2331
      %2333 = vrot.lane.b32.xlu0 %v1309, 72
      %v2334 = vpop.permute.xlu0 %2333
      %v2335 = vsel %vm1433, %v2328, 0
      %v2337 = vsel %vm1433, %v2330, 0
      %v2339 = vsel %vm1433, %v2332, 0
      %v2341 = vsel %vm1433, %v2334, 0
      %2343 = vmatprep.subr.mxu0 0.0
      %2344 = vmatpush1.xpose.msra.mxu0 0.0
      %2345 = vmatprep.subr.mxu0 0.0
      %2346 = vmatpush1.xpose.msra.mxu0 0.0
      %2347 = vmatprep.subr.mxu0 0.0
      %2348 = vmatpush1.xpose.msra.mxu0 0.0
      %2349 = vmatprep.subr.mxu0 0.0
      %2350 = vmatpush1.xpose.msra.mxu0 0.0
      %2351 = vmatprep.subr.mxu0 0.0
      %2352 = vmatpush1.xpose.msra.mxu0 0.0
      %2353 = vmatprep.subr.mxu0 0.0
      %2354 = vmatpush1.xpose.msra.mxu0 0.0
      %2355 = vmatprep.subr.mxu0 0.0
      %2356 = vmatpush1.xpose.msra.mxu0 0.0
      %2357 = vmatprep.subr.mxu0 0.0
      %2358 = vmatpush1.xpose.msra.mxu0 0.0
      %2359 = vmatprep.subr.mxu0 0.0
      %2360 = vmatpush1.xpose.msra.mxu0 0.0
      %2361 = vmatprep.subr.mxu0 0.0
      %2362 = vmatpush1.xpose.msra.mxu0 0.0
      %2363 = vmatprep.subr.mxu0 0.0
      %2364 = vmatpush1.xpose.msra.mxu0 0.0
      %2365 = vmatprep.subr.mxu0 0.0
      %2366 = vmatpush1.xpose.msra.mxu0 0.0
      %2367 = vmatprep.subr.mxu0 0.0
      %2368 = vmatpush1.xpose.msra.mxu0 0.0
      %2369 = vmatprep.subr.mxu0 0.0
      %2370 = vmatpush1.xpose.msra.mxu0 0.0
      %2371 = vmatprep.subr.mxu0 0.0
      %2372 = vmatpush1.xpose.msra.mxu0 %v2341
      %2373 = vmatprep.subr.mxu0 0.0
      %2374 = vmatpush1.xpose.msra.mxu0 %v2339
      %2375 = vmatprep.subr.mxu0 0.0
      %2376 = vmatpush2.xpose.msra.mxu0 0.0
      %2377 = vmatprep.subr.mxu0 0.0
      %2378 = vmatpush2.xpose.msra.mxu0 0.0
      %2379 = vmatprep.subr.mxu0 0.0
      %2380 = vmatpush2.xpose.msra.mxu0 0.0
      %2381 = vmatprep.subr.mxu0 0.0
      %2382 = vmatpush2.xpose.msra.mxu0 0.0
      %2383 = vmatprep.subr.mxu0 0.0
      %2384 = vmatpush2.xpose.msra.mxu0 0.0
      %2385 = vmatprep.subr.mxu0 0.0
      %2386 = vmatpush2.xpose.msra.mxu0 0.0
      %2387 = vmatprep.subr.mxu0 0.0
      %2388 = vmatpush2.xpose.msra.mxu0 0.0
      %2389 = vmatprep.subr.mxu0 0.0
      %2390 = vmatpush2.xpose.msra.mxu0 0.0
      %2391 = vmatprep.subr.mxu0 0.0
      %2392 = vmatpush2.xpose.msra.mxu0 0.0
      %2393 = vmatprep.subr.mxu0 0.0
      %2394 = vmatpush2.xpose.msra.mxu0 0.0
      %2395 = vmatprep.subr.mxu0 0.0
      %2396 = vmatpush2.xpose.msra.mxu0 0.0
      %2397 = vmatprep.subr.mxu0 0.0
      %2398 = vmatpush2.xpose.msra.mxu0 0.0
      %2399 = vmatprep.subr.mxu0 0.0
      %2400 = vmatpush2.xpose.msra.mxu0 0.0
      %2401 = vmatprep.subr.mxu0 0.0
      %2402 = vmatpush2.xpose.msra.mxu0 0.0
      %2403 = vmatprep.subr.mxu0 0.0
      %2404 = vmatpush2.xpose.msra.mxu0 0.0
      %2405 = vmatprep.subr.mxu0 0.0
      %2406 = vmatpush2.xpose.msra.mxu0 0.0
      %2407 = vmatprep.mubr.f32.mxu0 0.0
      %2408 = vmatmul.mubr.f32.gmra.mxu0 %v2335
      %v2409 = vpop.f32.mrf.mxu0
      %v2410 = vadd.f32 %v2325, %v2409
      %v2411 = vpop.f32.mrf.mxu0
      %2412 = vmatprep.mubr.f32.mxu0 0.0
      %2413 = vmatmul.mubr.f32.gmra.mxu0 %v2337
      %v2414 = vpop.f32.mrf.mxu0
      %v2415 = vadd.f32 %v2326, %v2414
      %v2416 = vpop.f32.mrf.mxu0
      %2417 = vdwg.mxu0
      %v2418 = vmul.f32 %v2410, 0.35355338
      %v2419 = vmul.f32 %v2415, 0.35355338
      %v2420 = vsel %vm1330, %v2418, -1e+30
      %v2421 = vsel %vm1330, %v2419, -1e+30
      %v2422 = vsel %vm1521, %v2420, -inf
      %2423 = vmax.xlane.f32.xlu0 %v2422
      %v2424 = vpop.xlane.xlu0 %2423
      %v2425 = vsel %vm1521, %v2421, -inf
      %2426 = vmax.xlane.f32.xlu0 %v2425
      %v2427 = vpop.xlane.xlu0 %2426
      %v2428 = vsub.f32 %v2420, %v2424
      %v2429 = vsub.f32 %v2421, %v2427
      %v2430 = vmul.f32 %v2428, 1.442695
      %v2431 = vpow.pop %v2430
      %v2432 = vmul.f32 %v2429, 1.442695
      %v2433 = vpow.pop %v2432
      %v2434 = vsel %vm1521, %v2431, 0.0
      %2435 = vadd.xlane.f32.xlu0 %v2434
      %v2436 = vpop.xlane.xlu0 %2435
      %v2437 = vsel %vm1521, %v2433, 0.0
      %2438 = vadd.xlane.f32.xlu0 %v2437
      %v2439 = vpop.xlane.xlu0 %2438
      %v2440 = vrcp.pop %v2436
      %v2441 = vmul.f32 %v2431, %v2440
      %v2442 = vrcp.pop %v2439
      %v2443 = vmul.f32 %v2433, %v2442
      %2444 = vrot.lane.b32.xlu0 %v1306, 40
      %v2445 = vpop.permute.xlu0 %2444
      %2446 = vrot.lane.b32.xlu0 %v1309, 40
      %v2447 = vpop.permute.xlu0 %2446
      %v2451 = vsel %vm1521, %v2441, 0
      %v2454 = vsel %vm1521, %v2443, 0
      %2456 = vmatprep.subr.mxu0 0.0
      %2457 = vmatpush1.msra.mxu0 0.0
      %2458 = vmatprep.subr.mxu0 0.0
      %2459 = vmatpush1.msra.mxu0 0.0
      %2460 = vmatprep.subr.mxu0 0.0
      %2461 = vmatpush1.msra.mxu0 0.0
      %2462 = vmatprep.subr.mxu0 0.0
      %2463 = vmatpush1.msra.mxu0 0.0
      %2464 = vmatprep.subr.mxu0 0.0
      %2465 = vmatpush1.msra.mxu0 0.0
      %2466 = vmatprep.subr.mxu0 0.0
      %2467 = vmatpush1.msra.mxu0 0.0
      %2468 = vmatprep.subr.mxu0 0.0
      %2469 = vmatpush1.msra.mxu0 0.0
      %2470 = vmatprep.subr.mxu0 0.0
      %2471 = vmatpush1.msra.mxu0 0.0
      %2472 = vmatprep.subr.mxu0 0.0
      %2473 = vmatpush1.msra.mxu0 0.0
      %2474 = vmatprep.subr.mxu0 0.0
      %2475 = vmatpush1.msra.mxu0 0.0
      %2476 = vmatprep.subr.mxu0 0.0
      %2477 = vmatpush1.msra.mxu0 0.0
      %2478 = vmatprep.subr.mxu0 0.0
      %2479 = vmatpush1.msra.mxu0 0.0
      %2480 = vmatprep.subr.mxu0 0.0
      %2481 = vmatpush1.msra.mxu0 0.0
      %2482 = vmatprep.subr.mxu0 0.0
      %2483 = vmatpush1.msra.mxu0 0.0
      %2484 = vmatprep.subr.mxu0 0.0
      %2485 = vmatpush1.msra.mxu0 %v2447
      %2486 = vmatprep.subr.mxu0 0.0
      %2487 = vmatpush1.msra.mxu0 %v2445
      %2488 = vmatprep.subr.mxu0 0.0
      %2489 = vmatpush2.msra.mxu0 0.0
      %2490 = vmatprep.subr.mxu0 0.0
      %2491 = vmatpush2.msra.mxu0 0.0
      %2492 = vmatprep.subr.mxu0 0.0
      %2493 = vmatpush2.msra.mxu0 0.0
      %2494 = vmatprep.subr.mxu0 0.0
      %2495 = vmatpush2.msra.mxu0 0.0
      %2496 = vmatprep.subr.mxu0 0.0
      %2497 = vmatpush2.msra.mxu0 0.0
      %2498 = vmatprep.subr.mxu0 0.0
      %2499 = vmatpush2.msra.mxu0 0.0
      %2500 = vmatprep.subr.mxu0 0.0
      %2501 = vmatpush2.msra.mxu0 0.0
      %2502 = vmatprep.subr.mxu0 0.0
      %2503 = vmatpush2.msra.mxu0 0.0
      %2504 = vmatprep.subr.mxu0 0.0
      %2505 = vmatpush2.msra.mxu0 0.0
      %2506 = vmatprep.subr.mxu0 0.0
      %2507 = vmatpush2.msra.mxu0 0.0
      %2508 = vmatprep.subr.mxu0 0.0
      %2509 = vmatpush2.msra.mxu0 0.0
      %2510 = vmatprep.subr.mxu0 0.0
      %2511 = vmatpush2.msra.mxu0 0.0
      %2512 = vmatprep.subr.mxu0 0.0
      %2513 = vmatpush2.msra.mxu0 0.0
      %2514 = vmatprep.subr.mxu0 0.0
      %2515 = vmatpush2.msra.mxu0 0.0
      %2516 = vmatprep.subr.mxu0 0.0
      %2517 = vmatpush2.msra.mxu0 0.0
      %2518 = vmatprep.subr.mxu0 0.0
      %2519 = vmatpush2.msra.mxu0 0.0
      %2520 = vmatprep.mubr.f32.mxu0 0.0
      %2521 = vmatmul.mubr.f32.gmra.mxu0 %v2451
      %v2522 = vpop.f32.mrf.mxu0
      %v2523 = vadd.f32 0.0, %v2522
      %v2524 = vpop.f32.mrf.mxu0
      %2525 = vmatprep.mubr.f32.mxu0 0.0
      %2526 = vmatmul.mubr.f32.gmra.mxu0 %v2454
      %v2527 = vpop.f32.mrf.mxu0
      %v2528 = vadd.f32 0.0, %v2527
      %v2529 = vpop.f32.mrf.mxu0
      %2530 = vdwg.mxu0
      %2533 = vrot.lane.b32.xlu0 %v1923, 8
      %v2534 = vpop.permute.xlu0 %2533
      %2535 = vrot.lane.b32.xlu0 %v1928, 8
      %v2536 = vpop.permute.xlu0 %2535
      %2541 = vrot.lane.b32.xlu0 %v2223, 16
      %v2542 = vpop.permute.xlu0 %2541
      %2543 = vrot.lane.b32.xlu0 %v2228, 16
      %v2544 = vpop.permute.xlu0 %2543
      %2549 = vrot.lane.b32.xlu0 %v2523, 24
      %v2550 = vpop.permute.xlu0 %2549
      %2551 = vrot.lane.b32.xlu0 %v2528, 24
      %v2552 = vpop.permute.xlu0 %2551
      %v2555 = vsel %vm1433, %v1623, %v2534
      %v2556 = vsel %vm1433, %v1628, %v2536
      %v2557 = vsel %vm1521, %v2555, %v2542
      %v2558 = vsel %vm1521, %v2556, %v2544
      %vm2559 = vcmask 195584
      %v2560 = vsel %vm2559, %v2557, %v2550
      %v2561 = vsel %vm2559, %v2558, %v2552
      %v2562 = vpack.c.bf16 %v2561, %v2560
      %v2563 = vld [vmem:[%s23] sm:$0xf]
      %v2564 = vld [vmem:[%s23 + $0x4] sm:$0xf]
      %v2565 = vld [vmem:[%s23 + $0x8] sm:$0xf]
      %v2566 = vld [vmem:[%s23 + $0xc] sm:$0xf]
      %v2567 = vld [vmem:[%s25] sm:$0x1]
      %v2569 = vlaneseq
      %v2570 = vshrl.u32 %v2569, 7
      %v2571 = vsub.s32 0, %v2570
      %v2572 = vrot.slane %v2567, %v2571
      %v2578 = vunpack.c.l.b16 %v2563
      %v2579 = vunpack.c.l.b16 %v2564
      %v2580 = vunpack.c.l.b16 %v2565
      %v2581 = vunpack.c.l.b16 %v2566
      %v2582 = vpack.c.b16 %v2579, %v2578
      %v2583 = vpack.c.b16 %v2581, %v2580
      %v2587 = vsel %vm962, %v2562, 0
      %2589 = vmatprep.subr.bf16.mxu0 0
      %2590 = vmatpush1.bf16.msra.mxu0 0
      %2591 = vmatprep.subr.bf16.mxu0 0
      %2592 = vmatpush1.bf16.msra.mxu0 0
      %2593 = vmatprep.subr.bf16.mxu0 0
      %2594 = vmatpush1.bf16.msra.mxu0 0
      %2595 = vmatprep.subr.bf16.mxu0 0
      %2596 = vmatpush1.bf16.msra.mxu0 0
      %2597 = vmatprep.subr.bf16.mxu0 0
      %2598 = vmatpush1.bf16.msra.mxu0 0
      %2599 = vmatprep.subr.bf16.mxu0 0
      %2600 = vmatpush1.bf16.msra.mxu0 0
      %2601 = vmatprep.subr.bf16.mxu0 0
      %2602 = vmatpush1.bf16.msra.mxu0 %v2583
      %2603 = vmatprep.subr.bf16.mxu0 0
      %2604 = vmatpush1.bf16.msra.mxu0 %v2582
      %2605 = vmatprep.subr.bf16.mxu0 0
      %2606 = vmatpush2.bf16.msra.mxu0 0
      %2607 = vmatprep.subr.bf16.mxu0 0
      %2608 = vmatpush2.bf16.msra.mxu0 0
      %2609 = vmatprep.subr.bf16.mxu0 0
      %2610 = vmatpush2.bf16.msra.mxu0 0
      %2611 = vmatprep.subr.bf16.mxu0 0
      %2612 = vmatpush2.bf16.msra.mxu0 0
      %2613 = vmatprep.subr.bf16.mxu0 0
      %2614 = vmatpush2.bf16.msra.mxu0 0
      %2615 = vmatprep.subr.bf16.mxu0 0
      %2616 = vmatpush2.bf16.msra.mxu0 0
      %2617 = vmatprep.subr.bf16.mxu0 0
      %2618 = vmatpush2.bf16.msra.mxu0 0
      %2619 = vmatprep.subr.bf16.mxu0 0
      %2620 = vmatpush2.bf16.msra.mxu0 0
      %2621 = vmatprep.mubr.bf16.mxu0 0
      %2622 = vmatmul.mubr.bf16.gmra.mxu0 %v2587
      %v2623 = vpop.f32.mrf.mxu0
      %v2624 = vadd.f32 %v2572, %v2623
      %v2625 = vpop.f32.mrf.mxu0
      %v2626 = vpop.f32.mrf.mxu0
      %v2627 = vadd.f32 %v2572, %v2626
      %v2628 = vpop.f32.mrf.mxu0
      %2629 = vdwg.mxu0
      %v2630 = vadd.f32 %v1205, %v2624
      %v2631 = vadd.f32 %v1206, %v2627
      %v2632 = vsel %vm962, %v2630, 0.0
      %2633 = vadd.xlane.f32.xlu0 %v2632
      %v2634 = vpop.xlane.xlu0 %2633
      %v2635 = vsel %vm962, %v2631, 0.0
      %2636 = vadd.xlane.f32.xlu0 %v2635
      %v2637 = vpop.xlane.xlu0 %2636
      %v2638 = vmul.f32 %v2634, %v969
      %v2639 = vmul.f32 %v2637, %v969
      %v2640 = vsub.f32 %v2630, %v2638
      %v2641 = vsub.f32 %v2631, %v2639
      %v2642 = vmul.f32 %v2640, %v2640
      %v2643 = vmul.f32 %v2641, %v2641
      %v2644 = vsel %vm962, %v2642, 0.0
      %2645 = vadd.xlane.f32.xlu0 %v2644
      %v2646 = vpop.xlane.xlu0 %2645
      %v2647 = vsel %vm962, %v2643, 0.0
      %2648 = vadd.xlane.f32.xlu0 %v2647
      %v2649 = vpop.xlane.xlu0 %2648
      %v2650 = vmul.f32 %v2646, %v969
      %v2651 = vmul.f32 %v2649, %v969
      %v2652 = vadd.f32 %v2650, 1e-05
      %v2653 = vadd.f32 %v2651, 1e-05
      %v2654 = vrsqrt.pop %v2652
      %v2655 = vrsqrt.pop %v2653
      %v2656 = vmul.f32 %v2640, %v2654
      %v2657 = vmul.f32 %v2641, %v2655
      %v2658 = vld [vmem:[%s27] sm:$0x1]
      %v2660 = vlaneseq
      %v2661 = vshrl.u32 %v2660, 7
      %v2662 = vsub.s32 0, %v2661
      %v2663 = vrot.slane %v2658, %v2662
      %v2665 = vmul.f32 %v2656, %v2663
      %v2666 = vmul.f32 %v2657, %v2663
      %v2667 = vld [vmem:[%s29] sm:$0x1]
      %v2669 = vlaneseq
      %v2670 = vshrl.u32 %v2669, 7
      %v2671 = vsub.s32 0, %v2670
      %v2672 = vrot.slane %v2667, %v2671
      %v2674 = vadd.f32 %v2665, %v2672
      %v2675 = vadd.f32 %v2666, %v2672
      %v2676 = vpack.c.bf16 %v2675, %v2674
      %v2677 = vld [vmem:[%s31] sm:$0xf]
      %v2678 = vld [vmem:[%s31 + $0x4] sm:$0xf]
      %v2679 = vld [vmem:[%s31 + $0x8] sm:$0xf]
      %v2680 = vld [vmem:[%s31 + $0xc] sm:$0xf]
      %v2681 = vld [vmem:[%s33] sm:$0x1]
      %v2683 = vlaneseq
      %v2684 = vshrl.u32 %v2683, 7
      %v2685 = vsub.s32 0, %v2684
      %v2686 = vrot.slane %v2681, %v2685
      %v2692 = vunpack.c.l.b16 %v2677
      %v2693 = vunpack.c.l.b16 %v2678
      %v2694 = vunpack.c.l.b16 %v2679
      %v2695 = vunpack.c.l.b16 %v2680
      %v2696 = vpack.c.b16 %v2693, %v2692
      %v2697 = vpack.c.b16 %v2695, %v2694
      %v2701 = vsel %vm962, %v2676, 0
      %2703 = vmatprep.subr.bf16.mxu0 0
      %2704 = vmatpush1.bf16.msra.mxu0 0
      %2705 = vmatprep.subr.bf16.mxu0 0
      %2706 = vmatpush1.bf16.msra.mxu0 0
      %2707 = vmatprep.subr.bf16.mxu0 0
      %2708 = vmatpush1.bf16.msra.mxu0 0
      %2709 = vmatprep.subr.bf16.mxu0 0
      %2710 = vmatpush1.bf16.msra.mxu0 0
      %2711 = vmatprep.subr.bf16.mxu0 0
      %2712 = vmatpush1.bf16.msra.mxu0 0
      %2713 = vmatprep.subr.bf16.mxu0 0
      %2714 = vmatpush1.bf16.msra.mxu0 0
      %2715 = vmatprep.subr.bf16.mxu0 0
      %2716 = vmatpush1.bf16.msra.mxu0 %v2697
      %2717 = vmatprep.subr.bf16.mxu0 0
      %2718 = vmatpush1.bf16.msra.mxu0 %v2696
      %2719 = vmatprep.subr.bf16.mxu0 0
      %2720 = vmatpush2.bf16.msra.mxu0 0
      %2721 = vmatprep.subr.bf16.mxu0 0
      %2722 = vmatpush2.bf16.msra.mxu0 0
      %2723 = vmatprep.subr.bf16.mxu0 0
      %2724 = vmatpush2.bf16.msra.mxu0 0
      %2725 = vmatprep.subr.bf16.mxu0 0
      %2726 = vmatpush2.bf16.msra.mxu0 0
      %2727 = vmatprep.subr.bf16.mxu0 0
      %2728 = vmatpush2.bf16.msra.mxu0 0
      %2729 = vmatprep.subr.bf16.mxu0 0
      %2730 = vmatpush2.bf16.msra.mxu0 0
      %2731 = vmatprep.subr.bf16.mxu0 0
      %2732 = vmatpush2.bf16.msra.mxu0 0
      %2733 = vmatprep.subr.bf16.mxu0 0
      %2734 = vmatpush2.bf16.msra.mxu0 0
      %2735 = vmatprep.mubr.bf16.mxu0 0
      %2736 = vmatmul.mubr.bf16.gmra.mxu0 %v2701
      %v2737 = vpop.f32.mrf.mxu0
      %v2738 = vadd.f32 %v2686, %v2737
      %v2739 = vpop.f32.mrf.mxu0
      %v2740 = vpop.f32.mrf.mxu0
      %v2741 = vadd.f32 %v2686, %v2740
      %v2742 = vpop.f32.mrf.mxu0
      %2743 = vdwg.mxu0
      %v2744 = vxor.u32 %v2738, 2147483648
      %v2745 = vxor.u32 %v2741, 2147483648
      %v2746 = vmul.f32 %v2744, 1.442695
      %v2747 = vpow.pop %v2746
      %v2748 = vmul.f32 %v2745, 1.442695
      %v2749 = vpow.pop %v2748
      %v2750 = vadd.f32 %v2747, 1.0
      %v2751 = vadd.f32 %v2749, 1.0
      %v2752 = vrcp.pop %v2750
      %v2753 = vmul.f32 1.0, %v2752
      %v2754 = vrcp.pop %v2751
      %v2755 = vmul.f32 1.0, %v2754
      %2758 = vrot.lane.b32.xlu0 %v2753, 64
      %v2759 = vpop.permute.xlu0 %2758
      %2760 = vrot.lane.b32.xlu0 %v2755, 64
      %v2761 = vpop.permute.xlu0 %2760
      %v2764 = vmul.f32 %v2738, %v2759
      %v2765 = vmul.f32 %v2741, %v2761
      %v2766 = vlaneseq
      %v2767 = vshrl.u32 %v2766, 7
      %v2768 = vadd.s32 %v2767, 8
      %vm2769 = vcmp.lt.s32.totalorder %v2767, 9
      %vm2770 = vcmp.lt.s32.totalorder %v2768, 9
      %v2771 = vsel %vm2769, 1, 0
      %v2772 = vsel %vm2770, 1, 0
      %vm2773 = vcmp.eq.s32.totalorder %v2771, 1
      %vm2774 = vcmp.eq.s32.totalorder %v2772, 1
      %v2775 = vsel %vm2773, %v2764, 0.0
      %v2776 = vsel %vm2774, %v2765, 0.0
      %vm2777 = vcmask 523264
      %2778 = vst.msk [vmem:[#allocation2] sm:$0xff] %vm2777, 0.0
      %2779 = vst.msk [vmem:[#allocation2 + $0x8] sm:$0xff] %vm2777, 0.0
      %2780 = vst.msk [vmem:[#allocation2 + $0x10] sm:$0xff] %vm2777, 0.0
      %2781 = vst.msk [vmem:[#allocation2 + $0x18] sm:$0xff] %vm2777, 0.0
      %2782 = vst.msk [vmem:[#allocation2 + $0x8] sm:$0xff] %vm2777, %v2775
      %2783 = vst.msk [vmem:[#allocation2 + $0x10] sm:$0xff] %vm2777, %v2776
      %v2784 = vld [vmem:[#allocation2] sm:$0xff]
      %v2785 = vld [vmem:[#allocation2 + $0x8] sm:$0xff]
      %v2786 = vld [vmem:[#allocation2 + $0x10] sm:$0xff]
      %v2787 = vld [vmem:[#allocation2 + $0x18] sm:$0xff]
      %v2788 = vld [vmem:[%s35] sm:$0x7f]
      %v2789 = vlaneseq
      %v2790 = vshrl.u32 %v2789, 7
      %v2791 = vsub.s32 0, %v2790
      %v2792 = vrot.slane %v2788, %v2791
      %v2793 = vmul.f32 %v2784, %v2792
      %v2794 = vmul.f32 %v2785, %v2792
      %v2795 = vmul.f32 %v2786, %v2792
      %v2796 = vadd.f32 %v2793, 0.0
      %v2797 = vadd.f32 %v2794, 0.0
      %v2798 = vadd.f32 %v2795, 0.0
      %v2799 = vlaneseq
      %v2800 = vshrl.u32 %v2799, 7
      %v2801 = vsub.s32 1, %v2800
      %v2802 = vrot.slane %v2788, %v2801
      %v2803 = vmul.f32 %v2784, %v2802
      %v2804 = vmul.f32 %v2785, %v2802
      %v2805 = vmul.f32 %v2786, %v2802
      %vm2809 = vcmask 1046528
      %v2810 = vrot.slane %v2803, 1
      %v2811 = vrot.slane %v2804, 1
      %v2812 = vsel %vm2809, %v2810, %v2811
      %v2813 = vrot.slane %v2805, 1
      %v2814 = vsel %vm2809, %v2811, %v2813
      %v2818 = vadd.f32 %v2796, %v2812
      %v2819 = vadd.f32 %v2797, %v2814
      %v2820 = vadd.f32 %v2798, %v2813
      %v2821 = vlaneseq
      %v2822 = vshrl.u32 %v2821, 7
      %v2823 = vsub.s32 2, %v2822
      %v2824 = vrot.slane %v2788, %v2823
      %v2825 = vmul.f32 %v2784, %v2824
      %v2826 = vmul.f32 %v2785, %v2824
      %v2827 = vmul.f32 %v2786, %v2824
      %vm2831 = vcmask 1045504
      %v2832 = vrot.slane %v2825, 2
      %v2833 = vrot.slane %v2826, 2
      %v2834 = vsel %vm2831, %v2832, %v2833
      %v2835 = vrot.slane %v2827, 2
      %v2836 = vsel %vm2831, %v2833, %v2835
      %v2840 = vadd.f32 %v2818, %v2834
      %v2841 = vadd.f32 %v2819, %v2836
      %v2842 = vadd.f32 %v2820, %v2835
      %v2843 = vlaneseq
      %v2844 = vshrl.u32 %v2843, 7
      %v2845 = vsub.s32 3, %v2844
      %v2846 = vrot.slane %v2788, %v2845
      %v2847 = vmul.f32 %v2785, %v2846
      %v2848 = vmul.f32 %v2786, %v2846
      %vm2851 = vcmask 1044480
      %v2852 = vrot.slane %v2847, 3
      %v2853 = vrot.slane %v2848, 3
      %v2854 = vsel %vm2851, %v2852, %v2853
      %v2858 = vadd.f32 %v2840, %v2852
      %v2859 = vadd.f32 %v2841, %v2854
      %v2860 = vadd.f32 %v2842, %v2853
      %v2861 = vlaneseq
      %v2862 = vshrl.u32 %v2861, 7
      %v2863 = vsub.s32 4, %v2862
      %v2864 = vrot.slane %v2788, %v2863
      %v2865 = vmul.f32 %v2785, %v2864
      %v2866 = vmul.f32 %v2786, %v2864
      %v2867 = vmul.f32 %v2787, %v2864
      %vm2871 = vcmask 1043456
      %v2872 = vrot.slane %v2865, 4
      %v2873 = vrot.slane %v2866, 4
      %v2874 = vsel %vm2871, %v2872, %v2873
      %v2875 = vrot.slane %v2867, 4
      %v2876 = vsel %vm2871, %v2873, %v2875
      %v2880 = vadd.f32 %v2858, %v2872
      %v2881 = vadd.f32 %v2859, %v2874
      %v2882 = vadd.f32 %v2860, %v2876
      %v2883 = vlaneseq
      %v2884 = vshrl.u32 %v2883, 7
      %v2885 = vsub.s32 5, %v2884
      %v2886 = vrot.slane %v2788, %v2885
      %v2887 = vmul.f32 %v2785, %v2886
      %v2888 = vmul.f32 %v2786, %v2886
      %v2889 = vmul.f32 %v2787, %v2886
      %vm2893 = vcmask 1042432
      %v2894 = vrot.slane %v2887, 5
      %v2895 = vrot.slane %v2888, 5
      %v2896 = vsel %vm2893, %v2894, %v2895
      %v2897 = vrot.slane %v2889, 5
      %v2898 = vsel %vm2893, %v2895, %v2897
      %v2902 = vadd.f32 %v2880, %v2894
      %v2903 = vadd.f32 %v2881, %v2896
      %v2904 = vadd.f32 %v2882, %v2898
      %v2905 = vlaneseq
      %v2906 = vshrl.u32 %v2905, 7
      %v2907 = vsub.s32 6, %v2906
      %v2908 = vrot.slane %v2788, %v2907
      %v2909 = vmul.f32 %v2785, %v2908
      %v2910 = vmul.f32 %v2786, %v2908
      %v2911 = vmul.f32 %v2787, %v2908
      %vm2915 = vcmask 1041408
      %v2916 = vrot.slane %v2909, 6
      %v2917 = vrot.slane %v2910, 6
      %v2918 = vsel %vm2915, %v2916, %v2917
      %v2919 = vrot.slane %v2911, 6
      %v2920 = vsel %vm2915, %v2917, %v2919
      %v2924 = vadd.f32 %v2902, %v2916
      %v2925 = vadd.f32 %v2903, %v2918
      %v2926 = vadd.f32 %v2904, %v2920
      %v2927 = vld [vmem:[%s37] sm:$0x1]
      %v2929 = vlaneseq
      %v2930 = vshrl.u32 %v2929, 7
      %v2931 = vsub.s32 0, %v2930
      %v2932 = vrot.slane %v2927, %v2931
      %v2934 = vadd.f32 %v2924, %v2932
      %v2935 = vadd.f32 %v2925, %v2932
      %v2936 = vadd.f32 %v2926, %v2932
      %v2937 = vld [vmem:[%s39] sm:$0x1]
      %v2939 = vlaneseq
      %v2940 = vshrl.u32 %v2939, 7
      %v2941 = vsub.s32 0, %v2940
      %v2942 = vrot.slane %v2937, %v2941
      %v2944 = vmul.f32 %v2934, %v2942
      %v2945 = vmul.f32 %v2935, %v2942
      %v2946 = vmul.f32 %v2936, %v2942
      %v2947 = vld [vmem:[%s41] sm:$0x1]
      %v2949 = vlaneseq
      %v2950 = vshrl.u32 %v2949, 7
      %v2951 = vsub.s32 0, %v2950
      %v2952 = vrot.slane %v2947, %v2951
      %v2954 = vadd.f32 %v2944, %v2952
      %v2955 = vadd.f32 %v2945, %v2952
      %v2956 = vadd.f32 %v2946, %v2952
      %v2957 = vxor.u32 %v2954, 2147483648
      %v2958 = vxor.u32 %v2955, 2147483648
      %v2959 = vxor.u32 %v2956, 2147483648
      %v2960 = vmul.f32 %v2957, 1.442695
      %v2961 = vpow.pop %v2960
      %v2962 = vmul.f32 %v2958, 1.442695
      %v2963 = vpow.pop %v2962
      %v2964 = vmul.f32 %v2959, 1.442695
      %v2965 = vpow.pop %v2964
      %v2966 = vadd.f32 %v2961, 1.0
      %v2967 = vadd.f32 %v2963, 1.0
      %v2968 = vadd.f32 %v2965, 1.0
      %v2969 = vrcp.pop %v2966
      %v2970 = vmul.f32 1.0, %v2969
      %v2971 = vrcp.pop %v2967
      %v2972 = vmul.f32 1.0, %v2971
      %v2973 = vrcp.pop %v2968
      %v2974 = vmul.f32 1.0, %v2973
      %v2975 = vmul.f32 %v2954, %v2970
      %v2976 = vmul.f32 %v2955, %v2972
      %v2977 = vmul.f32 %v2956, %v2974
      %v2978 = vpack.c.bf16 %v2976, %v2975
      %v2979 = vpack.c.bf16 %v2977, %v2977
      %v2980 = vld [vmem:[%s43] sm:$0xf]
      %v2981 = vld [vmem:[%s43 + $0x4] sm:$0xf]
      %v2982 = vld [vmem:[%s43 + $0x8] sm:$0xf]
      %v2983 = vld [vmem:[%s43 + $0xc] sm:$0xf]
      %v2984 = vld [vmem:[%s43 + $0x10] sm:$0xf]
      %v2985 = vld [vmem:[%s43 + $0x14] sm:$0xf]
      %v2986 = vld [vmem:[%s43 + $0x18] sm:$0xf]
      %v2987 = vld [vmem:[%s43 + $0x1c] sm:$0xf]
      %v2988 = vld [vmem:[%s45] sm:$0x1]
      %v2990 = vlaneseq
      %v2991 = vshrl.u32 %v2990, 7
      %v2992 = vsub.s32 0, %v2991
      %v2993 = vrot.slane %v2988, %v2992
      %vm2995 = vsmask.f32 5376
      %v2997 = vshrl.u32 %v2978, 16
      %v2999 = vrot.slane %v2997, 2
      %v3000 = vshll.u32 %v2978, 16
      %v3002 = vrot.slane %v3000, 3
      %v3003 = vor.u32 %v2999, %v3002
      %v3005 = vshrl.u32 %v2979, 16
      %v3007 = vrot.slane %v3005, 2
      %v3008 = vshll.u32 %v2979, 16
      %v3010 = vrot.slane %v3008, 3
      %v3011 = vor.u32 %v3007, %v3010
      %v3012 = vsel %vm2995, %v3003, %v3011
      %v3021 = vunpack.c.l.b16 %v2980
      %v3022 = vunpack.c.l.b16 %v2981
      %v3023 = vunpack.c.l.b16 %v2982
      %v3024 = vunpack.c.l.b16 %v2983
      %v3025 = vunpack.c.l.b16 %v2984
      %v3026 = vunpack.c.l.b16 %v2985
      %v3027 = vunpack.c.l.b16 %v2986
      %v3028 = vunpack.c.l.b16 %v2987
      %v3029 = vpack.c.b16 %v3022, %v3021
      %v3030 = vpack.c.b16 %v3024, %v3023
      %v3031 = vpack.c.b16 %v3026, %v3025
      %v3032 = vpack.c.b16 %v3028, %v3027
      %v3038 = vsel %vm2777, %v3012, 0
      %3040 = vmatprep.subr.bf16.mxu0 0
      %3041 = vmatpush1.bf16.msra.mxu0 0
      %3042 = vmatprep.subr.bf16.mxu0 0
      %3043 = vmatpush1.bf16.msra.mxu0 0
      %3044 = vmatprep.subr.bf16.mxu0 0
      %3045 = vmatpush1.bf16.msra.mxu0 0
      %3046 = vmatprep.subr.bf16.mxu0 0
      %3047 = vmatpush1.bf16.msra.mxu0 0
      %3048 = vmatprep.subr.bf16.mxu0 0
      %3049 = vmatpush1.bf16.msra.mxu0 %v3032
      %3050 = vmatprep.subr.bf16.mxu0 0
      %3051 = vmatpush1.bf16.msra.mxu0 %v3031
      %3052 = vmatprep.subr.bf16.mxu0 0
      %3053 = vmatpush1.bf16.msra.mxu0 %v3030
      %3054 = vmatprep.subr.bf16.mxu0 0
      %3055 = vmatpush1.bf16.msra.mxu0 %v3029
      %3056 = vmatprep.subr.bf16.mxu0 0
      %3057 = vmatpush2.bf16.msra.mxu0 0
      %3058 = vmatprep.subr.bf16.mxu0 0
      %3059 = vmatpush2.bf16.msra.mxu0 0
      %3060 = vmatprep.subr.bf16.mxu0 0
      %3061 = vmatpush2.bf16.msra.mxu0 0
      %3062 = vmatprep.subr.bf16.mxu0 0
      %3063 = vmatpush2.bf16.msra.mxu0 0
      %3064 = vmatprep.subr.bf16.mxu0 0
      %3065 = vmatpush2.bf16.msra.mxu0 0
      %3066 = vmatprep.subr.bf16.mxu0 0
      %3067 = vmatpush2.bf16.msra.mxu0 0
      %3068 = vmatprep.subr.bf16.mxu0 0
      %3069 = vmatpush2.bf16.msra.mxu0 0
      %3070 = vmatprep.subr.bf16.mxu0 0
      %3071 = vmatpush2.bf16.msra.mxu0 0
      %3072 = vmatprep.mubr.bf16.mxu0 0
      %3073 = vmatmul.mubr.bf16.gmra.mxu0 %v3038
      %v3074 = vpop.f32.mrf.mxu0
      %v3075 = vadd.f32 %v2993, %v3074
      %v3076 = vpop.f32.mrf.mxu0
      %v3077 = vpop.f32.mrf.mxu0
      %v3078 = vadd.f32 %v2993, %v3077
      %v3079 = vpop.f32.mrf.mxu0
      %3080 = vdwg.mxu0
      %v3081 = vadd.f32 %v2630, %v3075
      %v3082 = vadd.f32 %v2631, %v3078
      %v3083 = vsel %vm962, %v3081, 0.0
      %3084 = vadd.xlane.f32.xlu0 %v3083
      %v3085 = vpop.xlane.xlu0 %3084
      %v3086 = vsel %vm962, %v3082, 0.0
      %3087 = vadd.xlane.f32.xlu0 %v3086
      %v3088 = vpop.xlane.xlu0 %3087
      %v3089 = vmul.f32 %v3085, %v969
      %v3090 = vmul.f32 %v3088, %v969
      %v3091 = vsub.f32 %v3081, %v3089
      %v3092 = vsub.f32 %v3082, %v3090
      %v3093 = vmul.f32 %v3091, %v3091
      %v3094 = vmul.f32 %v3092, %v3092
      %v3095 = vsel %vm962, %v3093, 0.0
      %3096 = vadd.xlane.f32.xlu0 %v3095
      %v3097 = vpop.xlane.xlu0 %3096
      %v3098 = vsel %vm962, %v3094, 0.0
      %3099 = vadd.xlane.f32.xlu0 %v3098
      %v3100 = vpop.xlane.xlu0 %3099
      %v3101 = vmul.f32 %v3097, %v969
      %v3102 = vmul.f32 %v3100, %v969
      %v3103 = vadd.f32 %v3101, 1e-05
      %v3104 = vadd.f32 %v3102, 1e-05
      %v3105 = vrsqrt.pop %v3103
      %v3106 = vrsqrt.pop %v3104
      %v3107 = vmul.f32 %v3091, %v3105
      %v3108 = vmul.f32 %v3092, %v3106
      %v3109 = vld [vmem:[%s47] sm:$0x1]
      %v3111 = vlaneseq
      %v3112 = vshrl.u32 %v3111, 7
      %v3113 = vsub.s32 0, %v3112
      %v3114 = vrot.slane %v3109, %v3113
      %v3116 = vmul.f32 %v3107, %v3114
      %v3117 = vmul.f32 %v3108, %v3114
      %v3118 = vld [vmem:[%s49] sm:$0x1]
      %v3120 = vlaneseq
      %v3121 = vshrl.u32 %v3120, 7
      %v3122 = vsub.s32 0, %v3121
      %v3123 = vrot.slane %v3118, %v3122
      %v3125 = vadd.f32 %v3116, %v3123
      %v3126 = vadd.f32 %v3117, %v3123
      %v3127 = vpack.c.bf16 %v3126, %v3125
      %v3128 = vld [vmem:[%s51] sm:$0xf]
      %v3129 = vld [vmem:[%s51 + $0x4] sm:$0xf]
      %v3130 = vld [vmem:[%s51 + $0x8] sm:$0xf]
      %v3131 = vld [vmem:[%s51 + $0xc] sm:$0xf]
      %v3132 = vld [vmem:[%s53] sm:$0x1]
      %v3134 = vlaneseq
      %v3135 = vshrl.u32 %v3134, 7
      %v3136 = vsub.s32 0, %v3135
      %v3137 = vrot.slane %v3132, %v3136
      %v3143 = vunpack.c.l.b16 %v3128
      %v3144 = vunpack.c.l.b16 %v3129
      %v3145 = vunpack.c.l.b16 %v3130
      %v3146 = vunpack.c.l.b16 %v3131
      %v3147 = vpack.c.b16 %v3144, %v3143
      %v3148 = vpack.c.b16 %v3146, %v3145
      %v3152 = vsel %vm962, %v3127, 0
      %3154 = vmatprep.subr.bf16.mxu0 0
      %3155 = vmatpush1.bf16.msra.mxu0 0
      %3156 = vmatprep.subr.bf16.mxu0 0
      %3157 = vmatpush1.bf16.msra.mxu0 0
      %3158 = vmatprep.subr.bf16.mxu0 0
      %3159 = vmatpush1.bf16.msra.mxu0 0
      %3160 = vmatprep.subr.bf16.mxu0 0
      %3161 = vmatpush1.bf16.msra.mxu0 0
      %3162 = vmatprep.subr.bf16.mxu0 0
      %3163 = vmatpush1.bf16.msra.mxu0 0
      %3164 = vmatprep.subr.bf16.mxu0 0
      %3165 = vmatpush1.bf16.msra.mxu0 0
      %3166 = vmatprep.subr.bf16.mxu0 0
      %3167 = vmatpush1.bf16.msra.mxu0 %v3148
      %3168 = vmatprep.subr.bf16.mxu0 0
      %3169 = vmatpush1.bf16.msra.mxu0 %v3147
      %3170 = vmatprep.subr.bf16.mxu0 0
      %3171 = vmatpush2.bf16.msra.mxu0 0
      %3172 = vmatprep.subr.bf16.mxu0 0
      %3173 = vmatpush2.bf16.msra.mxu0 0
      %3174 = vmatprep.subr.bf16.mxu0 0
      %3175 = vmatpush2.bf16.msra.mxu0 0
      %3176 = vmatprep.subr.bf16.mxu0 0
      %3177 = vmatpush2.bf16.msra.mxu0 0
      %3178 = vmatprep.subr.bf16.mxu0 0
      %3179 = vmatpush2.bf16.msra.mxu0 0
      %3180 = vmatprep.subr.bf16.mxu0 0
      %3181 = vmatpush2.bf16.msra.mxu0 0
      %3182 = vmatprep.subr.bf16.mxu0 0
      %3183 = vmatpush2.bf16.msra.mxu0 0
      %3184 = vmatprep.subr.bf16.mxu0 0
      %3185 = vmatpush2.bf16.msra.mxu0 0
      %3186 = vmatprep.mubr.bf16.mxu0 0
      %3187 = vmatmul.mubr.bf16.gmra.mxu0 %v3152
      %v3188 = vpop.f32.mrf.mxu0
      %v3189 = vadd.f32 %v3137, %v3188
      %v3190 = vpop.f32.mrf.mxu0
      %v3191 = vpop.f32.mrf.mxu0
      %v3192 = vadd.f32 %v3137, %v3191
      %v3193 = vpop.f32.mrf.mxu0
      %3194 = vdwg.mxu0
      %v3195 = vxor.u32 %v3189, 2147483648
      %v3196 = vxor.u32 %v3192, 2147483648
      %v3197 = vmul.f32 %v3195, 1.442695
      %v3198 = vpow.pop %v3197
      %v3199 = vmul.f32 %v3196, 1.442695
      %v3200 = vpow.pop %v3199
      %v3201 = vadd.f32 %v3198, 1.0
      %v3202 = vadd.f32 %v3200, 1.0
      %v3203 = vrcp.pop %v3201
      %v3204 = vmul.f32 1.0, %v3203
      %v3205 = vrcp.pop %v3202
      %v3206 = vmul.f32 1.0, %v3205
      %v3207 = vmul.f32 %v3189, %v3204
      %v3208 = vmul.f32 %v3192, %v3206
      %v3209 = vpack.c.bf16 %v3208, %v3207
      %v3210 = vld [vmem:[%s55] sm:$0xf]
      %v3211 = vld [vmem:[%s55 + $0x4] sm:$0xf]
      %v3212 = vld [vmem:[%s55 + $0x8] sm:$0xf]
      %v3213 = vld [vmem:[%s55 + $0xc] sm:$0xf]
      %v3214 = vld [vmem:[%s55 + $0x10] sm:$0xf]
      %v3215 = vld [vmem:[%s55 + $0x14] sm:$0xf]
      %v3216 = vld [vmem:[%s55 + $0x18] sm:$0xf]
      %v3217 = vld [vmem:[%s55 + $0x1c] sm:$0xf]
      %v3218 = vld [vmem:[%s55 + $0x20] sm:$0xf]
      %v3219 = vld [vmem:[%s55 + $0x24] sm:$0xf]
      %v3220 = vld [vmem:[%s55 + $0x28] sm:$0xf]
      %v3221 = vld [vmem:[%s55 + $0x2c] sm:$0xf]
      %v3222 = vld [vmem:[%s55 + $0x30] sm:$0xf]
      %v3223 = vld [vmem:[%s55 + $0x34] sm:$0xf]
      %v3224 = vld [vmem:[%s55 + $0x38] sm:$0xf]
      %v3225 = vld [vmem:[%s55 + $0x3c] sm:$0xf]
      %v3226 = vld [vmem:[%s57] sm:$0x1]
      %v3228 = vlaneseq
      %v3229 = vshrl.u32 %v3228, 7
      %v3230 = vsub.s32 0, %v3229
      %v3231 = vrot.slane %v3226, %v3230
      %v3249 = vunpack.c.l.b16 %v3210
      %v3250 = vunpack.c.l.b16 %v3211
      %v3251 = vunpack.c.l.b16 %v3212
      %v3252 = vunpack.c.l.b16 %v3213
      %v3253 = vunpack.c.l.b16 %v3214
      %v3254 = vunpack.c.l.b16 %v3215
      %v3255 = vunpack.c.l.b16 %v3216
      %v3256 = vunpack.c.l.b16 %v3217
      %v3257 = vunpack.c.l.b16 %v3218
      %v3258 = vunpack.c.l.b16 %v3219
      %v3259 = vunpack.c.l.b16 %v3220
      %v3260 = vunpack.c.l.b16 %v3221
      %v3261 = vunpack.c.l.b16 %v3222
      %v3262 = vunpack.c.l.b16 %v3223
      %v3263 = vunpack.c.l.b16 %v3224
      %v3264 = vunpack.c.l.b16 %v3225
      %v3265 = vpack.c.b16 %v3250, %v3249
      %v3266 = vpack.c.b16 %v3252, %v3251
      %v3267 = vpack.c.b16 %v3254, %v3253
      %v3268 = vpack.c.b16 %v3256, %v3255
      %v3269 = vpack.c.b16 %v3258, %v3257
      %v3270 = vpack.c.b16 %v3260, %v3259
      %v3271 = vpack.c.b16 %v3262, %v3261
      %v3272 = vpack.c.b16 %v3264, %v3263
      %3281 = vmatprep.subr.bf16.mxu0 0
      %3282 = vmatpush1.bf16.msra.mxu0 %v3272
      %3283 = vmatprep.subr.bf16.mxu0 0
      %3284 = vmatpush1.bf16.msra.mxu0 %v3271
      %3285 = vmatprep.subr.bf16.mxu0 0
      %3286 = vmatpush1.bf16.msra.mxu0 %v3270
      %3287 = vmatprep.subr.bf16.mxu0 0
      %3288 = vmatpush1.bf16.msra.mxu0 %v3269
      %3289 = vmatprep.subr.bf16.mxu0 0
      %3290 = vmatpush1.bf16.msra.mxu0 %v3268
      %3291 = vmatprep.subr.bf16.mxu0 0
      %3292 = vmatpush1.bf16.msra.mxu0 %v3267
      %3293 = vmatprep.subr.bf16.mxu0 0
      %3294 = vmatpush1.bf16.msra.mxu0 %v3266
      %3295 = vmatprep.subr.bf16.mxu0 0
      %3296 = vmatpush1.bf16.msra.mxu0 %v3265
      %3297 = vmatprep.subr.bf16.mxu0 0
      %3298 = vmatpush2.bf16.msra.mxu0 0
      %3299 = vmatprep.subr.bf16.mxu0 0
      %3300 = vmatpush2.bf16.msra.mxu0 0
      %3301 = vmatprep.subr.bf16.mxu0 0
      %3302 = vmatpush2.bf16.msra.mxu0 0
      %3303 = vmatprep.subr.bf16.mxu0 0
      %3304 = vmatpush2.bf16.msra.mxu0 0
      %3305 = vmatprep.subr.bf16.mxu0 0
      %3306 = vmatpush2.bf16.msra.mxu0 0
      %3307 = vmatprep.subr.bf16.mxu0 0
      %3308 = vmatpush2.bf16.msra.mxu0 0
      %3309 = vmatprep.subr.bf16.mxu0 0
      %3310 = vmatpush2.bf16.msra.mxu0 0
      %3311 = vmatprep.subr.bf16.mxu0 0
      %3312 = vmatpush2.bf16.msra.mxu0 0
      %3313 = vmatprep.mubr.bf16.mxu0 0
      %3314 = vmatmul.mubr.bf16.gmra.mxu0 %v3209
      %v3315 = vpop.f32.mrf.mxu0
      %v3316 = vadd.f32 %v3231, %v3315
      %v3317 = vpop.f32.mrf.mxu0
      %v3318 = vpop.f32.mrf.mxu0
      %v3319 = vadd.f32 %v3231, %v3318
      %v3320 = vpop.f32.mrf.mxu0
      %3321 = vdwg.mxu0
      %v3322 = vmul.f32 %v3316, 0.5
      %v3323 = vmul.f32 %v3319, 0.5
      %v3324 = vadd.f32 %v3081, %v3322
      %v3325 = vadd.f32 %v3082, %v3323
      %v3326 = vsel %vm962, %v3324, 0.0
      %3327 = vadd.xlane.f32.xlu0 %v3326
      %v3328 = vpop.xlane.xlu0 %3327
      %v3329 = vsel %vm962, %v3325, 0.0
      %3330 = vadd.xlane.f32.xlu0 %v3329
      %v3331 = vpop.xlane.xlu0 %3330
      %v3332 = vmul.f32 %v3328, %v969
      %v3333 = vmul.f32 %v3331, %v969
      %v3334 = vsub.f32 %v3324, %v3332
      %v3335 = vsub.f32 %v3325, %v3333
      %v3336 = vmul.f32 %v3334, %v3334
      %v3337 = vmul.f32 %v3335, %v3335
      %v3338 = vsel %vm962, %v3336, 0.0
      %3339 = vadd.xlane.f32.xlu0 %v3338
      %v3340 = vpop.xlane.xlu0 %3339
      %v3341 = vsel %vm962, %v3337, 0.0
      %3342 = vadd.xlane.f32.xlu0 %v3341
      %v3343 = vpop.xlane.xlu0 %3342
      %v3344 = vmul.f32 %v3340, %v969
      %v3345 = vmul.f32 %v3343, %v969
      %v3346 = vadd.f32 %v3344, 1e-05
      %v3347 = vadd.f32 %v3345, 1e-05
      %v3348 = vrsqrt.pop %v3346
      %v3349 = vrsqrt.pop %v3347
      %v3350 = vmul.f32 %v3334, %v3348
      %v3351 = vmul.f32 %v3335, %v3349
      %v3352 = vld [vmem:[%s59] sm:$0x1]
      %v3354 = vlaneseq
      %v3355 = vshrl.u32 %v3354, 7
      %v3356 = vsub.s32 0, %v3355
      %v3357 = vrot.slane %v3352, %v3356
      %v3359 = vmul.f32 %v3350, %v3357
      %v3360 = vmul.f32 %v3351, %v3357
      %v3361 = vld [vmem:[%s61] sm:$0x1]
      %v3363 = vlaneseq
      %v3364 = vshrl.u32 %v3363, 7
      %v3365 = vsub.s32 0, %v3364
      %v3366 = vrot.slane %v3361, %v3365
      %v3368 = vadd.f32 %v3359, %v3366
      %v3369 = vadd.f32 %v3360, %v3366
      %3370 = vst.msk [vmem:[%s958] sm:$0xff] %vm962, %v3368
      %3371 = vst.msk [vmem:[%s958 + $0x8] sm:$0xff] %vm962, %v3369
      %p3372 = scmp.lt.s32.totalorder %s74, 1
      %s3373 = scalar_select %p3372, %s74, 1
      %s3374 = smul.addr %s3373, 2
      %s3375 = smul.addr %s3374, 8
      %s3376 = scalar_lea.vmem %s63, %s3375
      // Predicated region
      $region145: #{_lambda_.4} parent=143 // pred_check
        %p3377 = pneg %p748
      $region146: #{_lambda_.4} parent=143 // pred_check_branch
        %3379 = sbr.rel (%p3377) target = $region148
      $region147: #{_lambda_.4} parent=143 // pred_region
        _
      $region148: #{_lambda_.4} parent=143 // pred_fallthru
        _
    $region144: #{_lambda_.4} parent=5 // pred_fallthru
      _
    %p3380 = scmp.le.s32.totalorder 2, %s69
    // Predicated region
    $region149: #{_lambda_.4} parent=5 // pred_check
      %p3381 = pneg %p3380
    $region150: #{_lambda_.4} parent=5 // pred_check_branch
      %3383 = sbr.rel (%p3381) target = $region152
    $region151: #{_lambda_.4} parent=5 // pred_region
      %s3384 = ssub.s32 %s69, 2
      // Predicated region
      $region153: #{_lambda_.4} parent=151 // pred_check
        %p3385 = pneg %p754
      $region154: #{_lambda_.4} parent=151 // pred_check_branch
        %3387 = sbr.rel (%p3385) target = $region156
      $region155: #{_lambda_.4} parent=151 // pred_region
        %p3388 = scmp.lt.s32.totalorder %s75, 1
        %s3389 = scalar_select %p3388, %s75, 1
        %s3390 = smul.addr %s3389, 2
        %s3391 = smul.addr %s3390, 8
        %s3392 = scalar_lea.vmem %s63, %s3391
      $region156: #{_lambda_.4} parent=151 // pred_fallthru
        _
    $region152: #{_lambda_.4} parent=5 // pred_fallthru
      _
  $region6: #{_lambda_.4} parent=0 // loop_footer
    %s73 = sadd.s32 1, %s69
  $region7: #{_lambda_.4} parent=0 // loop_footer_branch
    %68 = sbr.rel target = $region3
  $region8: #{_lambda_.4} parent=0 // loop_exit
    _

</llo_original>
